<compile_context>
chip_gen: v7x
topology: tpu7x:2x2x1
jax: 0.10.0
libtpu: 0.0.40
codegen_flags: <defaults>
</compile_context>

<pallas_src>
import functools
import math

import jax
import jax.numpy as jnp
from jax.experimental import pallas as pl
from jax.experimental.pallas import tpu as pltpu


# ----------------------------------------------------------------------------
# Fused kernel: QKV projections + per-head attention + output projection.
# One (batch) slab per grid step.
# ----------------------------------------------------------------------------
def _fused_mhca_kernel(x_ref, y_ref, wq_ref, bq_ref, wkv_ref, bkv_ref,
                       wo_ref, bo_ref, o_ref, *, num_heads, scale):
    Lq, E = x_ref.shape[1], x_ref.shape[2]
    Dh = E // num_heads

    x = x_ref[0]                                    # (Lq, E)  bf16
    y = y_ref[0]                                    # (Lk, E)  bf16

    # Projections: bf16 operands, fp32 MXU accumulation, fp32 bias add.
    q = jnp.dot(x, wq_ref[...],
                preferred_element_type=jnp.float32) + bq_ref[...]   # (Lq, E)
    kv = jnp.dot(y, wkv_ref[...],
                 preferred_element_type=jnp.float32) + bkv_ref[...]  # (Lk, 2E)

    # Fold the softmax scale into q (touches Lq*E elems, not Lq*Lk*H).
    qb = (q * scale).astype(jnp.bfloat16)           # (Lq, E)
    kb = kv[:, :E].astype(jnp.bfloat16)             # (Lk, E)
    vb = kv[:, E:].astype(jnp.bfloat16)             # (Lk, E)

    acc = jnp.zeros((Lq, E), dtype=jnp.float32)     # out-projection accumulator

    # Static (unrolled) per-head loop; out-projection fused per head.
    for h in range(num_heads):
        sl = slice(h * Dh, (h + 1) * Dh)
        # scores = q_h @ k_h^T   (contract over head_dim)
        s = jax.lax.dot_general(
            qb[:, sl], kb[:, sl], (((1,), (1,)), ((), ())),
            preferred_element_type=jnp.float32)     # (Lq, Lk)  fp32

        # softmax in fp32 (max-subtracted); EUP reciprocal for the denominator.
        m = jnp.max(s, axis=-1, keepdims=True)
        p = jnp.exp(s - m)
        l = jnp.sum(p, axis=-1, keepdims=True)
        inv_l = pl.reciprocal(l, approx=True)

        o_h = jnp.dot(p.astype(jnp.bfloat16), vb[:, sl],
                      preferred_element_type=jnp.float32) * inv_l    # (Lq, Dh)

        # Fused out-projection slice:  acc += o_h @ Wo[h*Dh:(h+1)*Dh, :]
        acc = acc + jnp.dot(o_h.astype(jnp.bfloat16), wo_ref[sl, :],
                            preferred_element_type=jnp.float32)      # (Lq, E)

    o_ref[0] = (acc + bo_ref[...]).astype(o_ref.dtype)


# ----------------------------------------------------------------------------
# Module forward wrapper
# ----------------------------------------------------------------------------
def multi_head_flash_cross_attention(x, y, params, num_heads):
    B, Lq, E = x.shape
    _, Lk, _ = y.shape
    Dh = E // num_heads
    scale = 1.0 / math.sqrt(Dh)

    # bf16 activations / weights at the kernel boundary (fp16 flash-attn path
    # of the PyTorch module); biases stay fp32 (added to fp32 accumulators).
    xb = x.astype(jnp.bfloat16)
    yb = y.astype(jnp.bfloat16)
    wq = params["wq"].astype(jnp.bfloat16)
    wkv = jnp.concatenate([params["wk"], params["wv"]], axis=1).astype(jnp.bfloat16)
    wo = params["wo"].astype(jnp.bfloat16)
    bq = params["bq"].reshape(1, E).astype(jnp.float32)
    bkv = jnp.concatenate([params["bk"], params["bv"]]).reshape(1, 2 * E).astype(jnp.float32)
    bo = params["bo"].reshape(1, E).astype(jnp.float32)

    kernel = functools.partial(_fused_mhca_kernel,
                               num_heads=num_heads, scale=scale)

    return pl.pallas_call(
        kernel,
        out_shape=jax.ShapeDtypeStruct((B, Lq, E), jnp.float32),
        grid=(B,),
        in_specs=[
            pl.BlockSpec((1, Lq, E), lambda b: (b, 0, 0)),     # x
            pl.BlockSpec((1, Lk, E), lambda b: (b, 0, 0)),     # y
            pl.BlockSpec((E, E), lambda b: (0, 0)),            # wq
            pl.BlockSpec((1, E), lambda b: (0, 0)),            # bq
            pl.BlockSpec((E, 2 * E), lambda b: (0, 0)),        # wkv
            pl.BlockSpec((1, 2 * E), lambda b: (0, 0)),        # bkv
            pl.BlockSpec((E, E), lambda b: (0, 0)),            # wo
            pl.BlockSpec((1, E), lambda b: (0, 0)),            # bo
        ],
        out_specs=pl.BlockSpec((1, Lq, E), lambda b: (b, 0, 0)),
        compiler_params=pltpu.CompilerParams(
            dimension_semantics=("parallel",),
            # Explicit scoped-VMEM budget; well above what the double-buffered
            # blocks + in-kernel temporaries need at these shapes and within
            # every generation's physical VMEM (incl. v7x's 64 MiB).
            vmem_limit_bytes=32 * 1024 * 1024,
        ),
    )(xb, yb, wq, bq, wkv, bkv, wo, bo)


# ----------------------------------------------------------------------------
# Pure-JAX reference (mirrors the kernel's bf16-operand / fp32-accum numerics,
# matching the module's half-precision flash-attn path).
# ----------------------------------------------------------------------------
def reference(x, y, params, num_heads):
    B, Lq, E = x.shape
    _, Lk, _ = y.shape
    Dh = E // num_heads
    scale = 1.0 / math.sqrt(Dh)
    bf, f32 = jnp.bfloat16, jnp.float32

    def lin(a, w, b):
        return jnp.dot(a.astype(bf), w.astype(bf),
                       preferred_element_type=f32) + b

    q = lin(x, params["wq"], params["bq"])          # (B, Lq, E)
    k = lin(y, params["wk"], params["bk"])          # (B, Lk, E)
    v = lin(y, params["wv"], params["bv"])          # (B, Lk, E)

    qh = (q * scale).astype(bf).reshape(B, Lq, num_heads, Dh)
    kh = k.astype(bf).reshape(B, Lk, num_heads, Dh)
    vh = v.astype(bf).reshape(B, Lk, num_heads, Dh)

    s = jnp.einsum("bqhd,bkhd->bhqk", qh, kh, preferred_element_type=f32)
    p = jax.nn.softmax(s, axis=-1)
    o = jnp.einsum("bhqk,bkhd->bqhd", p.astype(bf), vh,
                   preferred_element_type=f32).reshape(B, Lq, E)
    return jnp.dot(o.astype(bf), params["wo"].astype(bf),
                   preferred_element_type=f32) + params["bo"]


if __name__ == "__main__":
    # Small shapes consistent with the module (embed_dim divisible by heads,
    # lane-dense E = 2*128).
    B, Lq, Lk = 2, 16, 32
    num_heads, embed_dim = 8, 256        # head_dim = 32

    key = jax.random.PRNGKey(0)
    keys = jax.random.split(key, 10)
    x = jax.random.normal(keys[0], (B, Lq, embed_dim), dtype=jnp.float32)
    y = jax.random.normal(keys[1], (B, Lk, embed_dim), dtype=jnp.float32)

    def init_linear(kw, kb):
        w = jax.random.normal(kw, (embed_dim, embed_dim), dtype=jnp.float32) * 0.05
        b = jax.random.normal(kb, (embed_dim,), dtype=jnp.float32) * 0.05
        return w, b

    wq, bq = init_linear(keys[2], keys[3])
    wk, bk = init_linear(keys[4], keys[5])
    wv, bv = init_linear(keys[6], keys[7])
    wo, bo = init_linear(keys[8], keys[9])
    params = dict(wq=wq, bq=bq, wk=wk, bk=bk, wv=wv, bv=bv, wo=wo, bo=bo)

    out = multi_head_flash_cross_attention(x, y, params, num_heads)
    out = jax.block_until_ready(out)

    ref = reference(x, y, params, num_heads)
    assert out.shape == (B, Lq, embed_dim)
    max_err = float(jnp.max(jnp.abs(out - ref)))
    assert jnp.allclose(out, ref, atol=2e-2, rtol=2e-2), (
        f"mismatch vs reference (max |diff| = {max_err})")

    print("KERNEL_OK")
</pallas_src>

<mosaic_0001>
module attributes {stable_mosaic.version = 11 : i64} {
  func.func @_fused_mhca_kernel(%arg0: i32, %arg1: memref<1x16x256xbf16, #tpu.memory_space<vmem>>, %arg2: memref<1x32x256xbf16, #tpu.memory_space<vmem>>, %arg3: memref<256x256xbf16, #tpu.memory_space<vmem>>, %arg4: memref<1x256xf32, #tpu.memory_space<vmem>>, %arg5: memref<256x512xbf16, #tpu.memory_space<vmem>>, %arg6: memref<1x512xf32, #tpu.memory_space<vmem>>, %arg7: memref<256x256xbf16, #tpu.memory_space<vmem>>, %arg8: memref<1x256xf32, #tpu.memory_space<vmem>>, %arg9: memref<1x16x256xf32, #tpu.memory_space<vmem>>) attributes {dimension_semantics = [#tpu.dimension_semantics<parallel>], iteration_bounds = array<i64: 2>, scalar_prefetch = 0 : i64, scratch_operands = 0 : i64, tpu.core_type = #tpu.core_type<tc>, window_params = [{transform_indices = @transform_0, window_bounds = array<i64: 1, 16, 256>}, {transform_indices = @transform_1, window_bounds = array<i64: 1, 32, 256>}, {pipeline_mode = #tpu.pipeline_mode<synchronous>, transform_indices = @transform_2, window_bounds = array<i64: 256, 256>}, {pipeline_mode = #tpu.pipeline_mode<synchronous>, transform_indices = @transform_3, window_bounds = array<i64: 1, 256>}, {pipeline_mode = #tpu.pipeline_mode<synchronous>, transform_indices = @transform_4, window_bounds = array<i64: 256, 512>}, {pipeline_mode = #tpu.pipeline_mode<synchronous>, transform_indices = @transform_5, window_bounds = array<i64: 1, 512>}, {pipeline_mode = #tpu.pipeline_mode<synchronous>, transform_indices = @transform_6, window_bounds = array<i64: 256, 256>}, {pipeline_mode = #tpu.pipeline_mode<synchronous>, transform_indices = @transform_7, window_bounds = array<i64: 1, 256>}, {transform_indices = @transform_8, window_bounds = array<i64: 1, 16, 256>}]} {
    %c0 = arith.constant 0 : index
    %c0_0 = arith.constant 0 : index
    %c0_1 = arith.constant 0 : index
    %0 = vector.load %arg1[%c0, %c0_0, %c0_1] : memref<1x16x256xbf16, #tpu.memory_space<vmem>>, vector<1x16x256xbf16>
    %1 = vector.shape_cast %0 : vector<1x16x256xbf16> to vector<16x256xbf16>
    %c0_2 = arith.constant 0 : index
    %c0_3 = arith.constant 0 : index
    %c0_4 = arith.constant 0 : index
    %2 = vector.load %arg2[%c0_2, %c0_3, %c0_4] : memref<1x32x256xbf16, #tpu.memory_space<vmem>>, vector<1x32x256xbf16>
    %3 = vector.shape_cast %2 : vector<1x32x256xbf16> to vector<32x256xbf16>
    %c0_5 = arith.constant 0 : index
    %c0_6 = arith.constant 0 : index
    %4 = vector.load %arg3[%c0_5, %c0_6] : memref<256x256xbf16, #tpu.memory_space<vmem>>, vector<256x256xbf16>
    %cst = arith.constant dense<0.000000e+00> : vector<16x256xf32>
    %5 = tpu.matmul %1, %4, %cst {dimension_numbers = #tpu.dot_dimension_numbers<[1], [0], [0], [1], [0, 0, 1, 1], [], []>} : vector<16x256xbf16>, vector<256x256xbf16>, vector<16x256xf32> -> vector<16x256xf32>
    %c0_7 = arith.constant 0 : index
    %c0_8 = arith.constant 0 : index
    %6 = vector.load %arg4[%c0_7, %c0_8] : memref<1x256xf32, #tpu.memory_space<vmem>>, vector<1x256xf32>
    %7 = vector.broadcast %6 : vector<1x256xf32> to vector<16x256xf32>
    %8 = arith.addf %5, %7 : vector<16x256xf32>
    %c0_9 = arith.constant 0 : index
    %c0_10 = arith.constant 0 : index
    %9 = vector.load %arg5[%c0_9, %c0_10] : memref<256x512xbf16, #tpu.memory_space<vmem>>, vector<256x512xbf16>
    %cst_11 = arith.constant dense<0.000000e+00> : vector<32x512xf32>
    %10 = tpu.matmul %3, %9, %cst_11 {dimension_numbers = #tpu.dot_dimension_numbers<[1], [0], [0], [1], [0, 0, 1, 1], [], []>} : vector<32x256xbf16>, vector<256x512xbf16>, vector<32x512xf32> -> vector<32x512xf32>
    %c0_12 = arith.constant 0 : index
    %c0_13 = arith.constant 0 : index
    %11 = vector.load %arg6[%c0_12, %c0_13] : memref<1x512xf32, #tpu.memory_space<vmem>>, vector<1x512xf32>
    %12 = vector.broadcast %11 : vector<1x512xf32> to vector<32x512xf32>
    %13 = arith.addf %10, %12 : vector<32x512xf32>
    %cst_14 = arith.constant 0.176776692 : f32
    %14 = vector.broadcast %cst_14 : f32 to vector<16x256xf32>
    %15 = arith.mulf %8, %14 : vector<16x256xf32>
    %16 = arith.truncf %15 : vector<16x256xf32> to vector<16x256xbf16>
    %17 = vector.extract_strided_slice %13 {offsets = [0, 0], sizes = [32, 256], strides = [1, 1]} : vector<32x512xf32> to vector<32x256xf32>
    %18 = arith.truncf %17 : vector<32x256xf32> to vector<32x256xbf16>
    %19 = vector.extract_strided_slice %13 {offsets = [0, 256], sizes = [32, 256], strides = [1, 1]} : vector<32x512xf32> to vector<32x256xf32>
    %20 = arith.truncf %19 : vector<32x256xf32> to vector<32x256xbf16>
    %cst_15 = arith.constant 0.000000e+00 : f32
    %21 = vector.broadcast %cst_15 : f32 to vector<16x256xf32>
    %22 = vector.extract_strided_slice %16 {offsets = [0, 0], sizes = [16, 32], strides = [1, 1]} : vector<16x256xbf16> to vector<16x32xbf16>
    %23 = vector.extract_strided_slice %18 {offsets = [0, 0], sizes = [32, 32], strides = [1, 1]} : vector<32x256xbf16> to vector<32x32xbf16>
    %cst_16 = arith.constant dense<0.000000e+00> : vector<16x32xf32>
    %24 = tpu.matmul %22, %23, %cst_16 {dimension_numbers = #tpu.dot_dimension_numbers<[1], [1], [0], [0], [0, 0, 1, 0], [], []>} : vector<16x32xbf16>, vector<32x32xbf16>, vector<16x32xf32> -> vector<16x32xf32>
    %cst_17 = arith.constant dense<0xFF800000> : vector<16xf32>
    %25 = vector.multi_reduction <maximumf>, %24, %cst_17 [1] : vector<16x32xf32> to vector<16xf32>
    %26 = vector.shape_cast %25 : vector<16xf32> to vector<16x1xf32>
    %27 = vector.broadcast %26 : vector<16x1xf32> to vector<16x32xf32>
    %28 = arith.subf %24, %27 : vector<16x32xf32>
    %29 = math.exp %28 : vector<16x32xf32>
    %cst_18 = arith.constant dense<0.000000e+00> : vector<16xf32>
    %30 = vector.multi_reduction <add>, %29, %cst_18 [1] : vector<16x32xf32> to vector<16xf32>
    %31 = vector.shape_cast %30 : vector<16xf32> to vector<16x1xf32>
    %32 = tpu.reciprocal %31 {approx = true} : vector<16x1xf32> -> vector<16x1xf32>
    %33 = arith.truncf %29 : vector<16x32xf32> to vector<16x32xbf16>
    %34 = vector.extract_strided_slice %20 {offsets = [0, 0], sizes = [32, 32], strides = [1, 1]} : vector<32x256xbf16> to vector<32x32xbf16>
    %cst_19 = arith.constant dense<0.000000e+00> : vector<16x32xf32>
    %35 = tpu.matmul %33, %34, %cst_19 {dimension_numbers = #tpu.dot_dimension_numbers<[1], [0], [0], [1], [0, 0, 1, 1], [], []>} : vector<16x32xbf16>, vector<32x32xbf16>, vector<16x32xf32> -> vector<16x32xf32>
    %36 = vector.broadcast %32 : vector<16x1xf32> to vector<16x32xf32>
    %37 = arith.mulf %35, %36 : vector<16x32xf32>
    %38 = arith.truncf %37 : vector<16x32xf32> to vector<16x32xbf16>
    %c0_20 = arith.constant 0 : index
    %c0_21 = arith.constant 0 : index
    %39 = vector.load %arg7[%c0_20, %c0_21] : memref<256x256xbf16, #tpu.memory_space<vmem>>, vector<32x256xbf16>
    %cst_22 = arith.constant dense<0.000000e+00> : vector<16x256xf32>
    %40 = tpu.matmul %38, %39, %cst_22 {dimension_numbers = #tpu.dot_dimension_numbers<[1], [0], [0], [1], [0, 0, 1, 1], [], []>} : vector<16x32xbf16>, vector<32x256xbf16>, vector<16x256xf32> -> vector<16x256xf32>
    %41 = arith.addf %21, %40 : vector<16x256xf32>
    %42 = vector.extract_strided_slice %16 {offsets = [0, 32], sizes = [16, 32], strides = [1, 1]} : vector<16x256xbf16> to vector<16x32xbf16>
    %43 = vector.extract_strided_slice %18 {offsets = [0, 32], sizes = [32, 32], strides = [1, 1]} : vector<32x256xbf16> to vector<32x32xbf16>
    %cst_23 = arith.constant dense<0.000000e+00> : vector<16x32xf32>
    %44 = tpu.matmul %42, %43, %cst_23 {dimension_numbers = #tpu.dot_dimension_numbers<[1], [1], [0], [0], [0, 0, 1, 0], [], []>} : vector<16x32xbf16>, vector<32x32xbf16>, vector<16x32xf32> -> vector<16x32xf32>
    %cst_24 = arith.constant dense<0xFF800000> : vector<16xf32>
    %45 = vector.multi_reduction <maximumf>, %44, %cst_24 [1] : vector<16x32xf32> to vector<16xf32>
    %46 = vector.shape_cast %45 : vector<16xf32> to vector<16x1xf32>
    %47 = vector.broadcast %46 : vector<16x1xf32> to vector<16x32xf32>
    %48 = arith.subf %44, %47 : vector<16x32xf32>
    %49 = math.exp %48 : vector<16x32xf32>
    %cst_25 = arith.constant dense<0.000000e+00> : vector<16xf32>
    %50 = vector.multi_reduction <add>, %49, %cst_25 [1] : vector<16x32xf32> to vector<16xf32>
    %51 = vector.shape_cast %50 : vector<16xf32> to vector<16x1xf32>
    %52 = tpu.reciprocal %51 {approx = true} : vector<16x1xf32> -> vector<16x1xf32>
    %53 = arith.truncf %49 : vector<16x32xf32> to vector<16x32xbf16>
    %54 = vector.extract_strided_slice %20 {offsets = [0, 32], sizes = [32, 32], strides = [1, 1]} : vector<32x256xbf16> to vector<32x32xbf16>
    %cst_26 = arith.constant dense<0.000000e+00> : vector<16x32xf32>
    %55 = tpu.matmul %53, %54, %cst_26 {dimension_numbers = #tpu.dot_dimension_numbers<[1], [0], [0], [1], [0, 0, 1, 1], [], []>} : vector<16x32xbf16>, vector<32x32xbf16>, vector<16x32xf32> -> vector<16x32xf32>
    %56 = vector.broadcast %52 : vector<16x1xf32> to vector<16x32xf32>
    %57 = arith.mulf %55, %56 : vector<16x32xf32>
    %58 = arith.truncf %57 : vector<16x32xf32> to vector<16x32xbf16>
    %c32 = arith.constant 32 : index
    %c0_27 = arith.constant 0 : index
    %59 = vector.load %arg7[%c32, %c0_27] : memref<256x256xbf16, #tpu.memory_space<vmem>>, vector<32x256xbf16>
    %cst_28 = arith.constant dense<0.000000e+00> : vector<16x256xf32>
    %60 = tpu.matmul %58, %59, %cst_28 {dimension_numbers = #tpu.dot_dimension_numbers<[1], [0], [0], [1], [0, 0, 1, 1], [], []>} : vector<16x32xbf16>, vector<32x256xbf16>, vector<16x256xf32> -> vector<16x256xf32>
    %61 = arith.addf %41, %60 : vector<16x256xf32>
    %62 = vector.extract_strided_slice %16 {offsets = [0, 64], sizes = [16, 32], strides = [1, 1]} : vector<16x256xbf16> to vector<16x32xbf16>
    %63 = vector.extract_strided_slice %18 {offsets = [0, 64], sizes = [32, 32], strides = [1, 1]} : vector<32x256xbf16> to vector<32x32xbf16>
    %cst_29 = arith.constant dense<0.000000e+00> : vector<16x32xf32>
    %64 = tpu.matmul %62, %63, %cst_29 {dimension_numbers = #tpu.dot_dimension_numbers<[1], [1], [0], [0], [0, 0, 1, 0], [], []>} : vector<16x32xbf16>, vector<32x32xbf16>, vector<16x32xf32> -> vector<16x32xf32>
    %cst_30 = arith.constant dense<0xFF800000> : vector<16xf32>
    %65 = vector.multi_reduction <maximumf>, %64, %cst_30 [1] : vector<16x32xf32> to vector<16xf32>
    %66 = vector.shape_cast %65 : vector<16xf32> to vector<16x1xf32>
    %67 = vector.broadcast %66 : vector<16x1xf32> to vector<16x32xf32>
    %68 = arith.subf %64, %67 : vector<16x32xf32>
    %69 = math.exp %68 : vector<16x32xf32>
    %cst_31 = arith.constant dense<0.000000e+00> : vector<16xf32>
    %70 = vector.multi_reduction <add>, %69, %cst_31 [1] : vector<16x32xf32> to vector<16xf32>
    %71 = vector.shape_cast %70 : vector<16xf32> to vector<16x1xf32>
    %72 = tpu.reciprocal %71 {approx = true} : vector<16x1xf32> -> vector<16x1xf32>
    %73 = arith.truncf %69 : vector<16x32xf32> to vector<16x32xbf16>
    %74 = vector.extract_strided_slice %20 {offsets = [0, 64], sizes = [32, 32], strides = [1, 1]} : vector<32x256xbf16> to vector<32x32xbf16>
    %cst_32 = arith.constant dense<0.000000e+00> : vector<16x32xf32>
    %75 = tpu.matmul %73, %74, %cst_32 {dimension_numbers = #tpu.dot_dimension_numbers<[1], [0], [0], [1], [0, 0, 1, 1], [], []>} : vector<16x32xbf16>, vector<32x32xbf16>, vector<16x32xf32> -> vector<16x32xf32>
    %76 = vector.broadcast %72 : vector<16x1xf32> to vector<16x32xf32>
    %77 = arith.mulf %75, %76 : vector<16x32xf32>
    %78 = arith.truncf %77 : vector<16x32xf32> to vector<16x32xbf16>
    %c64 = arith.constant 64 : index
    %c0_33 = arith.constant 0 : index
    %79 = vector.load %arg7[%c64, %c0_33] : memref<256x256xbf16, #tpu.memory_space<vmem>>, vector<32x256xbf16>
    %cst_34 = arith.constant dense<0.000000e+00> : vector<16x256xf32>
    %80 = tpu.matmul %78, %79, %cst_34 {dimension_numbers = #tpu.dot_dimension_numbers<[1], [0], [0], [1], [0, 0, 1, 1], [], []>} : vector<16x32xbf16>, vector<32x256xbf16>, vector<16x256xf32> -> vector<16x256xf32>
    %81 = arith.addf %61, %80 : vector<16x256xf32>
    %82 = vector.extract_strided_slice %16 {offsets = [0, 96], sizes = [16, 32], strides = [1, 1]} : vector<16x256xbf16> to vector<16x32xbf16>
    %83 = vector.extract_strided_slice %18 {offsets = [0, 96], sizes = [32, 32], strides = [1, 1]} : vector<32x256xbf16> to vector<32x32xbf16>
    %cst_35 = arith.constant dense<0.000000e+00> : vector<16x32xf32>
    %84 = tpu.matmul %82, %83, %cst_35 {dimension_numbers = #tpu.dot_dimension_numbers<[1], [1], [0], [0], [0, 0, 1, 0], [], []>} : vector<16x32xbf16>, vector<32x32xbf16>, vector<16x32xf32> -> vector<16x32xf32>
    %cst_36 = arith.constant dense<0xFF800000> : vector<16xf32>
    %85 = vector.multi_reduction <maximumf>, %84, %cst_36 [1] : vector<16x32xf32> to vector<16xf32>
    %86 = vector.shape_cast %85 : vector<16xf32> to vector<16x1xf32>
    %87 = vector.broadcast %86 : vector<16x1xf32> to vector<16x32xf32>
    %88 = arith.subf %84, %87 : vector<16x32xf32>
    %89 = math.exp %88 : vector<16x32xf32>
    %cst_37 = arith.constant dense<0.000000e+00> : vector<16xf32>
    %90 = vector.multi_reduction <add>, %89, %cst_37 [1] : vector<16x32xf32> to vector<16xf32>
    %91 = vector.shape_cast %90 : vector<16xf32> to vector<16x1xf32>
    %92 = tpu.reciprocal %91 {approx = true} : vector<16x1xf32> -> vector<16x1xf32>
    %93 = arith.truncf %89 : vector<16x32xf32> to vector<16x32xbf16>
    %94 = vector.extract_strided_slice %20 {offsets = [0, 96], sizes = [32, 32], strides = [1, 1]} : vector<32x256xbf16> to vector<32x32xbf16>
    %cst_38 = arith.constant dense<0.000000e+00> : vector<16x32xf32>
    %95 = tpu.matmul %93, %94, %cst_38 {dimension_numbers = #tpu.dot_dimension_numbers<[1], [0], [0], [1], [0, 0, 1, 1], [], []>} : vector<16x32xbf16>, vector<32x32xbf16>, vector<16x32xf32> -> vector<16x32xf32>
    %96 = vector.broadcast %92 : vector<16x1xf32> to vector<16x32xf32>
    %97 = arith.mulf %95, %96 : vector<16x32xf32>
    %98 = arith.truncf %97 : vector<16x32xf32> to vector<16x32xbf16>
    %c96 = arith.constant 96 : index
    %c0_39 = arith.constant 0 : index
    %99 = vector.load %arg7[%c96, %c0_39] : memref<256x256xbf16, #tpu.memory_space<vmem>>, vector<32x256xbf16>
    %cst_40 = arith.constant dense<0.000000e+00> : vector<16x256xf32>
    %100 = tpu.matmul %98, %99, %cst_40 {dimension_numbers = #tpu.dot_dimension_numbers<[1], [0], [0], [1], [0, 0, 1, 1], [], []>} : vector<16x32xbf16>, vector<32x256xbf16>, vector<16x256xf32> -> vector<16x256xf32>
    %101 = arith.addf %81, %100 : vector<16x256xf32>
    %102 = vector.extract_strided_slice %16 {offsets = [0, 128], sizes = [16, 32], strides = [1, 1]} : vector<16x256xbf16> to vector<16x32xbf16>
    %103 = vector.extract_strided_slice %18 {offsets = [0, 128], sizes = [32, 32], strides = [1, 1]} : vector<32x256xbf16> to vector<32x32xbf16>
    %cst_41 = arith.constant dense<0.000000e+00> : vector<16x32xf32>
    %104 = tpu.matmul %102, %103, %cst_41 {dimension_numbers = #tpu.dot_dimension_numbers<[1], [1], [0], [0], [0, 0, 1, 0], [], []>} : vector<16x32xbf16>, vector<32x32xbf16>, vector<16x32xf32> -> vector<16x32xf32>
    %cst_42 = arith.constant dense<0xFF800000> : vector<16xf32>
    %105 = vector.multi_reduction <maximumf>, %104, %cst_42 [1] : vector<16x32xf32> to vector<16xf32>
    %106 = vector.shape_cast %105 : vector<16xf32> to vector<16x1xf32>
    %107 = vector.broadcast %106 : vector<16x1xf32> to vector<16x32xf32>
    %108 = arith.subf %104, %107 : vector<16x32xf32>
    %109 = math.exp %108 : vector<16x32xf32>
    %cst_43 = arith.constant dense<0.000000e+00> : vector<16xf32>
    %110 = vector.multi_reduction <add>, %109, %cst_43 [1] : vector<16x32xf32> to vector<16xf32>
    %111 = vector.shape_cast %110 : vector<16xf32> to vector<16x1xf32>
    %112 = tpu.reciprocal %111 {approx = true} : vector<16x1xf32> -> vector<16x1xf32>
    %113 = arith.truncf %109 : vector<16x32xf32> to vector<16x32xbf16>
    %114 = vector.extract_strided_slice %20 {offsets = [0, 128], sizes = [32, 32], strides = [1, 1]} : vector<32x256xbf16> to vector<32x32xbf16>
    %cst_44 = arith.constant dense<0.000000e+00> : vector<16x32xf32>
    %115 = tpu.matmul %113, %114, %cst_44 {dimension_numbers = #tpu.dot_dimension_numbers<[1], [0], [0], [1], [0, 0, 1, 1], [], []>} : vector<16x32xbf16>, vector<32x32xbf16>, vector<16x32xf32> -> vector<16x32xf32>
    %116 = vector.broadcast %112 : vector<16x1xf32> to vector<16x32xf32>
    %117 = arith.mulf %115, %116 : vector<16x32xf32>
    %118 = arith.truncf %117 : vector<16x32xf32> to vector<16x32xbf16>
    %c128 = arith.constant 128 : index
    %c0_45 = arith.constant 0 : index
    %119 = vector.load %arg7[%c128, %c0_45] : memref<256x256xbf16, #tpu.memory_space<vmem>>, vector<32x256xbf16>
    %cst_46 = arith.constant dense<0.000000e+00> : vector<16x256xf32>
    %120 = tpu.matmul %118, %119, %cst_46 {dimension_numbers = #tpu.dot_dimension_numbers<[1], [0], [0], [1], [0, 0, 1, 1], [], []>} : vector<16x32xbf16>, vector<32x256xbf16>, vector<16x256xf32> -> vector<16x256xf32>
    %121 = arith.addf %101, %120 : vector<16x256xf32>
    %122 = vector.extract_strided_slice %16 {offsets = [0, 160], sizes = [16, 32], strides = [1, 1]} : vector<16x256xbf16> to vector<16x32xbf16>
    %123 = vector.extract_strided_slice %18 {offsets = [0, 160], sizes = [32, 32], strides = [1, 1]} : vector<32x256xbf16> to vector<32x32xbf16>
    %cst_47 = arith.constant dense<0.000000e+00> : vector<16x32xf32>
    %124 = tpu.matmul %122, %123, %cst_47 {dimension_numbers = #tpu.dot_dimension_numbers<[1], [1], [0], [0], [0, 0, 1, 0], [], []>} : vector<16x32xbf16>, vector<32x32xbf16>, vector<16x32xf32> -> vector<16x32xf32>
    %cst_48 = arith.constant dense<0xFF800000> : vector<16xf32>
    %125 = vector.multi_reduction <maximumf>, %124, %cst_48 [1] : vector<16x32xf32> to vector<16xf32>
    %126 = vector.shape_cast %125 : vector<16xf32> to vector<16x1xf32>
    %127 = vector.broadcast %126 : vector<16x1xf32> to vector<16x32xf32>
    %128 = arith.subf %124, %127 : vector<16x32xf32>
    %129 = math.exp %128 : vector<16x32xf32>
    %cst_49 = arith.constant dense<0.000000e+00> : vector<16xf32>
    %130 = vector.multi_reduction <add>, %129, %cst_49 [1] : vector<16x32xf32> to vector<16xf32>
    %131 = vector.shape_cast %130 : vector<16xf32> to vector<16x1xf32>
    %132 = tpu.reciprocal %131 {approx = true} : vector<16x1xf32> -> vector<16x1xf32>
    %133 = arith.truncf %129 : vector<16x32xf32> to vector<16x32xbf16>
    %134 = vector.extract_strided_slice %20 {offsets = [0, 160], sizes = [32, 32], strides = [1, 1]} : vector<32x256xbf16> to vector<32x32xbf16>
    %cst_50 = arith.constant dense<0.000000e+00> : vector<16x32xf32>
    %135 = tpu.matmul %133, %134, %cst_50 {dimension_numbers = #tpu.dot_dimension_numbers<[1], [0], [0], [1], [0, 0, 1, 1], [], []>} : vector<16x32xbf16>, vector<32x32xbf16>, vector<16x32xf32> -> vector<16x32xf32>
    %136 = vector.broadcast %132 : vector<16x1xf32> to vector<16x32xf32>
    %137 = arith.mulf %135, %136 : vector<16x32xf32>
    %138 = arith.truncf %137 : vector<16x32xf32> to vector<16x32xbf16>
    %c160 = arith.constant 160 : index
    %c0_51 = arith.constant 0 : index
    %139 = vector.load %arg7[%c160, %c0_51] : memref<256x256xbf16, #tpu.memory_space<vmem>>, vector<32x256xbf16>
    %cst_52 = arith.constant dense<0.000000e+00> : vector<16x256xf32>
    %140 = tpu.matmul %138, %139, %cst_52 {dimension_numbers = #tpu.dot_dimension_numbers<[1], [0], [0], [1], [0, 0, 1, 1], [], []>} : vector<16x32xbf16>, vector<32x256xbf16>, vector<16x256xf32> -> vector<16x256xf32>
    %141 = arith.addf %121, %140 : vector<16x256xf32>
    %142 = vector.extract_strided_slice %16 {offsets = [0, 192], sizes = [16, 32], strides = [1, 1]} : vector<16x256xbf16> to vector<16x32xbf16>
    %143 = vector.extract_strided_slice %18 {offsets = [0, 192], sizes = [32, 32], strides = [1, 1]} : vector<32x256xbf16> to vector<32x32xbf16>
    %cst_53 = arith.constant dense<0.000000e+00> : vector<16x32xf32>
    %144 = tpu.matmul %142, %143, %cst_53 {dimension_numbers = #tpu.dot_dimension_numbers<[1], [1], [0], [0], [0, 0, 1, 0], [], []>} : vector<16x32xbf16>, vector<32x32xbf16>, vector<16x32xf32> -> vector<16x32xf32>
    %cst_54 = arith.constant dense<0xFF800000> : vector<16xf32>
    %145 = vector.multi_reduction <maximumf>, %144, %cst_54 [1] : vector<16x32xf32> to vector<16xf32>
    %146 = vector.shape_cast %145 : vector<16xf32> to vector<16x1xf32>
    %147 = vector.broadcast %146 : vector<16x1xf32> to vector<16x32xf32>
    %148 = arith.subf %144, %147 : vector<16x32xf32>
    %149 = math.exp %148 : vector<16x32xf32>
    %cst_55 = arith.constant dense<0.000000e+00> : vector<16xf32>
    %150 = vector.multi_reduction <add>, %149, %cst_55 [1] : vector<16x32xf32> to vector<16xf32>
    %151 = vector.shape_cast %150 : vector<16xf32> to vector<16x1xf32>
    %152 = tpu.reciprocal %151 {approx = true} : vector<16x1xf32> -> vector<16x1xf32>
    %153 = arith.truncf %149 : vector<16x32xf32> to vector<16x32xbf16>
    %154 = vector.extract_strided_slice %20 {offsets = [0, 192], sizes = [32, 32], strides = [1, 1]} : vector<32x256xbf16> to vector<32x32xbf16>
    %cst_56 = arith.constant dense<0.000000e+00> : vector<16x32xf32>
    %155 = tpu.matmul %153, %154, %cst_56 {dimension_numbers = #tpu.dot_dimension_numbers<[1], [0], [0], [1], [0, 0, 1, 1], [], []>} : vector<16x32xbf16>, vector<32x32xbf16>, vector<16x32xf32> -> vector<16x32xf32>
    %156 = vector.broadcast %152 : vector<16x1xf32> to vector<16x32xf32>
    %157 = arith.mulf %155, %156 : vector<16x32xf32>
    %158 = arith.truncf %157 : vector<16x32xf32> to vector<16x32xbf16>
    %c192 = arith.constant 192 : index
    %c0_57 = arith.constant 0 : index
    %159 = vector.load %arg7[%c192, %c0_57] : memref<256x256xbf16, #tpu.memory_space<vmem>>, vector<32x256xbf16>
    %cst_58 = arith.constant dense<0.000000e+00> : vector<16x256xf32>
    %160 = tpu.matmul %158, %159, %cst_58 {dimension_numbers = #tpu.dot_dimension_numbers<[1], [0], [0], [1], [0, 0, 1, 1], [], []>} : vector<16x32xbf16>, vector<32x256xbf16>, vector<16x256xf32> -> vector<16x256xf32>
    %161 = arith.addf %141, %160 : vector<16x256xf32>
    %162 = vector.extract_strided_slice %16 {offsets = [0, 224], sizes = [16, 32], strides = [1, 1]} : vector<16x256xbf16> to vector<16x32xbf16>
    %163 = vector.extract_strided_slice %18 {offsets = [0, 224], sizes = [32, 32], strides = [1, 1]} : vector<32x256xbf16> to vector<32x32xbf16>
    %cst_59 = arith.constant dense<0.000000e+00> : vector<16x32xf32>
    %164 = tpu.matmul %162, %163, %cst_59 {dimension_numbers = #tpu.dot_dimension_numbers<[1], [1], [0], [0], [0, 0, 1, 0], [], []>} : vector<16x32xbf16>, vector<32x32xbf16>, vector<16x32xf32> -> vector<16x32xf32>
    %cst_60 = arith.constant dense<0xFF800000> : vector<16xf32>
    %165 = vector.multi_reduction <maximumf>, %164, %cst_60 [1] : vector<16x32xf32> to vector<16xf32>
    %166 = vector.shape_cast %165 : vector<16xf32> to vector<16x1xf32>
    %167 = vector.broadcast %166 : vector<16x1xf32> to vector<16x32xf32>
    %168 = arith.subf %164, %167 : vector<16x32xf32>
    %169 = math.exp %168 : vector<16x32xf32>
    %cst_61 = arith.constant dense<0.000000e+00> : vector<16xf32>
    %170 = vector.multi_reduction <add>, %169, %cst_61 [1] : vector<16x32xf32> to vector<16xf32>
    %171 = vector.shape_cast %170 : vector<16xf32> to vector<16x1xf32>
    %172 = tpu.reciprocal %171 {approx = true} : vector<16x1xf32> -> vector<16x1xf32>
    %173 = arith.truncf %169 : vector<16x32xf32> to vector<16x32xbf16>
    %174 = vector.extract_strided_slice %20 {offsets = [0, 224], sizes = [32, 32], strides = [1, 1]} : vector<32x256xbf16> to vector<32x32xbf16>
    %cst_62 = arith.constant dense<0.000000e+00> : vector<16x32xf32>
    %175 = tpu.matmul %173, %174, %cst_62 {dimension_numbers = #tpu.dot_dimension_numbers<[1], [0], [0], [1], [0, 0, 1, 1], [], []>} : vector<16x32xbf16>, vector<32x32xbf16>, vector<16x32xf32> -> vector<16x32xf32>
    %176 = vector.broadcast %172 : vector<16x1xf32> to vector<16x32xf32>
    %177 = arith.mulf %175, %176 : vector<16x32xf32>
    %178 = arith.truncf %177 : vector<16x32xf32> to vector<16x32xbf16>
    %c224 = arith.constant 224 : index
    %c0_63 = arith.constant 0 : index
    %179 = vector.load %arg7[%c224, %c0_63] : memref<256x256xbf16, #tpu.memory_space<vmem>>, vector<32x256xbf16>
    %cst_64 = arith.constant dense<0.000000e+00> : vector<16x256xf32>
    %180 = tpu.matmul %178, %179, %cst_64 {dimension_numbers = #tpu.dot_dimension_numbers<[1], [0], [0], [1], [0, 0, 1, 1], [], []>} : vector<16x32xbf16>, vector<32x256xbf16>, vector<16x256xf32> -> vector<16x256xf32>
    %181 = arith.addf %161, %180 : vector<16x256xf32>
    %c0_65 = arith.constant 0 : index
    %c0_66 = arith.constant 0 : index
    %182 = vector.load %arg8[%c0_65, %c0_66] : memref<1x256xf32, #tpu.memory_space<vmem>>, vector<1x256xf32>
    %183 = vector.broadcast %182 : vector<1x256xf32> to vector<16x256xf32>
    %184 = arith.addf %181, %183 : vector<16x256xf32>
    %c0_67 = arith.constant 0 : index
    %c0_68 = arith.constant 0 : index
    %c0_69 = arith.constant 0 : index
    %185 = vector.load %arg9[%c0_67, %c0_68, %c0_69] : memref<1x16x256xf32, #tpu.memory_space<vmem>>, vector<1x16x256xf32>
    %186 = vector.shape_cast %185 : vector<1x16x256xf32> to vector<16x256xf32>
    %187 = vector.shape_cast %184 : vector<16x256xf32> to vector<1x16x256xf32>
    tpu.vector_store %arg9[%c0_67, %c0_68, %c0_69], %187 {strides = array<i32>} : memref<1x16x256xf32, #tpu.memory_space<vmem>>, vector<1x16x256xf32>,
    return
  }
  func.func @transform_0(%arg0: i32) -> (i32, i32, i32) {
    %c0_i32 = arith.constant 0 : i32
    %c0_i32_0 = arith.constant 0 : i32
    %c0_i32_1 = arith.constant 0 : i32
    return %arg0, %c0_i32, %c0_i32_0 : i32, i32, i32
  }
  func.func @transform_1(%arg0: i32) -> (i32, i32, i32) {
    %c0_i32 = arith.constant 0 : i32
    %c0_i32_0 = arith.constant 0 : i32
    %c0_i32_1 = arith.constant 0 : i32
    return %arg0, %c0_i32, %c0_i32_0 : i32, i32, i32
  }
  func.func @transform_2(%arg0: i32) -> (i32, i32) {
    %c0_i32 = arith.constant 0 : i32
    %c0_i32_0 = arith.constant 0 : i32
    %c0_i32_1 = arith.constant 0 : i32
    return %c0_i32, %c0_i32_0 : i32, i32
  }
  func.func @transform_3(%arg0: i32) -> (i32, i32) {
    %c0_i32 = arith.constant 0 : i32
    %c0_i32_0 = arith.constant 0 : i32
    %c0_i32_1 = arith.constant 0 : i32
    return %c0_i32, %c0_i32_0 : i32, i32
  }
  func.func @transform_4(%arg0: i32) -> (i32, i32) {
    %c0_i32 = arith.constant 0 : i32
    %c0_i32_0 = arith.constant 0 : i32
    %c0_i32_1 = arith.constant 0 : i32
    return %c0_i32, %c0_i32_0 : i32, i32
  }
  func.func @transform_5(%arg0: i32) -> (i32, i32) {
    %c0_i32 = arith.constant 0 : i32
    %c0_i32_0 = arith.constant 0 : i32
    %c0_i32_1 = arith.constant 0 : i32
    return %c0_i32, %c0_i32_0 : i32, i32
  }
  func.func @transform_6(%arg0: i32) -> (i32, i32) {
    %c0_i32 = arith.constant 0 : i32
    %c0_i32_0 = arith.constant 0 : i32
    %c0_i32_1 = arith.constant 0 : i32
    return %c0_i32, %c0_i32_0 : i32, i32
  }
  func.func @transform_7(%arg0: i32) -> (i32, i32) {
    %c0_i32 = arith.constant 0 : i32
    %c0_i32_0 = arith.constant 0 : i32
    %c0_i32_1 = arith.constant 0 : i32
    return %c0_i32, %c0_i32_0 : i32, i32
  }
  func.func @transform_8(%arg0: i32) -> (i32, i32, i32) {
    %c0_i32 = arith.constant 0 : i32
    %c0_i32_0 = arith.constant 0 : i32
    %c0_i32_1 = arith.constant 0 : i32
    return %arg0, %c0_i32, %c0_i32_0 : i32, i32, i32
  }
}

</mosaic_0001>

<llo_original>
// kernel: tpu_custom_call.1
$region0: #{tpu_custom_call.1}
  #allocation0 [shape = 'u32[]', space=smem, size = 0x4, offset = 0x4, fixed_abs, tag = 'smem constant byte address 0x4 - core index']
  #allocation1 [shape = 'u32[144,128]{1,0:T(1,128)}', space=vmem, size = 0x12000, scoped, tag = 'internal scratch']
  %s0 = inlined_call_operand.hbm [shape: bf16[2,16,256], index: 0, kind: input, shape index: {}]
  %s1 = inlined_call_operand.hbm [shape: bf16[2,32,256], index: 1, kind: input, shape index: {}]
  %s2 = inlined_call_operand.hbm [shape: bf16[256,256], index: 2, kind: input, shape index: {}]
  %s3 = inlined_call_operand.vmem [shape: f32[1,256], index: 3, kind: input, shape index: {}]
  %s4 = inlined_call_operand.hbm [shape: bf16[256,512], index: 4, kind: input, shape index: {}]
  %s5 = inlined_call_operand.vmem [shape: f32[1,512], index: 5, kind: input, shape index: {}]
  %s6 = inlined_call_operand.hbm [shape: bf16[256,256], index: 6, kind: input, shape index: {}]
  %s7 = inlined_call_operand.vmem [shape: f32[1,256], index: 7, kind: input, shape index: {}]
  %s8 = inlined_call_operand.hbm [shape: f32[2,16,256], index: 8, kind: output, shape index: {}]
  %s9 = sld [smem:[#allocation0]]
  $region85: #{tpu_custom_call.1} parent=0
    _
  %s11 = ssub.s32 1, %s9
  %s12 = scalar_select 0, %s11, %s9
  $region1: #{tpu_custom_call.1} parent=0
    #allocation2 [shape = 'u8[16384]{0}', space=vmem, size = 0x4000, scoped, tag = 'input window, operand 0']
    #allocation3 [shape = 's32[2]{0}', space=sflag, size = 0x8, scoped, tag = 'scoped memory for tpu_custom_call.1']
    #allocation4 [shape = 's32[2]{0}', space=sflag, size = 0x8, scoped, tag = 'scoped memory for tpu_custom_call.1']
    #allocation5 [shape = 'u8[32768]{0}', space=vmem, size = 0x8000, scoped, tag = 'input window, operand 1']
    #allocation6 [shape = 's32[2]{0}', space=sflag, size = 0x8, scoped, tag = 'scoped memory for tpu_custom_call.1']
    #allocation7 [shape = 'u8[131072]{0}', space=vmem, size = 0x20000, scoped, tag = 'input window, operand 2, single buffered']
    #allocation8 [shape = 'u8[262144]{0}', space=vmem, size = 0x40000, scoped, tag = 'input window, operand 4, single buffered']
    #allocation9 [shape = 's32[1]{0}', space=sflag, size = 0x4, scoped, tag = 'scoped memory for tpu_custom_call.1']
    #allocation10 [shape = 'u8[131072]{0}', space=vmem, size = 0x20000, scoped, tag = 'input window, operand 6, single buffered']
    #allocation11 [shape = 'u8[32768]{0}', space=vmem, size = 0x8000, scoped, tag = 'output window, operand 0']
    %13 = vsyncpa [#allocation3], 0
    %s14 = scalar_lea.sflag [#allocation3], 1
    %15 = vsyncpa %s14, 0
    %16 = vsyncpa [#allocation6], 0
    %s17 = scalar_lea.sflag [#allocation6], 1
    %18 = vsyncpa %s17, 0
    %19 = vsyncpa [#allocation9], 0
    %20 = vsyncpa [#allocation4], 0
    %s21 = scalar_lea.sflag [#allocation4], 1
    %22 = vsyncpa %s21, 0
    loop: start=0, step=1, limit=4
    $region2: #{tpu_custom_call.1} parent=1 // loop_pre_header
      _
    $region3: #{tpu_custom_call.1} parent=1 // loop_header
      %s24 = sphi 0, %s28
      %p25 = scmp.ge.s32.totalorder %s24, 4
      %s34 = sphi 0, %s36
      %s37 = sphi 0, %s34
      %s38 = sphi 0, %s37
      %s54 = sphi 0, %s38
      %s60 = sphi 0, %s62
      %s63 = sphi 0, %s60
      %s64 = sphi 0, %s63
      %s80 = sphi 0, %s64
      %s84 = sphi 0, %s84
      %s86 = sphi 0, %s84
      %s87 = sphi 0, %s86
      %s101 = sphi 0, %s87
      %s105 = sphi 0, %s105
      %s107 = sphi 0, %s105
      %s108 = sphi 0, %s107
      %s122 = sphi 0, %s108
      %s126 = sphi 0, %s126
      %s128 = sphi 0, %s126
      %s129 = sphi 0, %s128
      %s143 = sphi 0, %s129
      %s147 = sphi 0, %s147
      %s149 = sphi 0, %s147
      %s150 = sphi 0, %s149
      %s164 = sphi 0, %s150
      %s168 = sphi 0, %s168
      %s170 = sphi 0, %s168
      %s171 = sphi 0, %s170
      %s185 = sphi 0, %s171
      %s189 = sphi 0, %s189
      %s191 = sphi 0, %s189
      %s192 = sphi 0, %s191
      %s206 = sphi 0, %s192
      %s212 = sphi 0, %s214
      %s215 = sphi 0, %s212
      %s216 = sphi 0, %s215
      %s232 = sphi 0, %s216
    $region4: #{tpu_custom_call.1} parent=1 // loop_header_branch
      %27 = sbr.rel (%p25) target = $region8
    $region5: #{tpu_custom_call.1} parent=1 // loop_body
      %s29 = ssub.s32 %s24, 1
      %s30 = ssub.s32 %s24, 2
      %s31 = sadd.s32 %s24, 1
      %s32 = ssub.s32 %s24, %s31
      %p33 = scmp.eq.s32.totalorder %s32, 0
      %s35 = sadd.s32 %s34, 1
      %s36 = scalar_select %p33, %s34, %s35
      %p39 = pneg %p33
      %p40 = scmp.eq.s32.totalorder %s24, 1
      %p41 = por %p39, %p40
      %p42 = scmp.ne.s32.totalorder %s34, %s37
      %p43 = scmp.eq.s32.totalorder %s24, 0
      %p44 = por %p42, %p43
      %p45 = scmp.ne.s32.totalorder %s34, %s37
      %p46 = scmp.eq.s32.totalorder %s29, 1
      %p47 = por %p45, %p46
      %p48 = scmp.ne.s32.totalorder %s37, %s38
      %p49 = scmp.eq.s32.totalorder %s29, 0
      %p50 = por %p48, %p49
      %p51 = scmp.ne.s32.totalorder %s37, %s38
      %p52 = scmp.eq.s32.totalorder %s30, 1
      %p53 = por %p51, %p52
      %p55 = scmp.ne.s32.totalorder %s38, %s54
      %p56 = scmp.eq.s32.totalorder %s30, 0
      %p57 = por %p55, %p56
      %s58 = ssub.s32 %s24, %s31
      %p59 = scmp.eq.s32.totalorder %s58, 0
      %s61 = sadd.s32 %s60, 1
      %s62 = scalar_select %p59, %s60, %s61
      %p65 = pneg %p59
      %p66 = scmp.eq.s32.totalorder %s24, 1
      %p67 = por %p65, %p66
      %p68 = scmp.ne.s32.totalorder %s60, %s63
      %p69 = scmp.eq.s32.totalorder %s24, 0
      %p70 = por %p68, %p69
      %p71 = scmp.ne.s32.totalorder %s60, %s63
      %p72 = scmp.eq.s32.totalorder %s29, 1
      %p73 = por %p71, %p72
      %p74 = scmp.ne.s32.totalorder %s63, %s64
      %p75 = scmp.eq.s32.totalorder %s29, 0
      %p76 = por %p74, %p75
      %p77 = scmp.ne.s32.totalorder %s63, %s64
      %p78 = scmp.eq.s32.totalorder %s30, 1
      %p79 = por %p77, %p78
      %p81 = scmp.ne.s32.totalorder %s64, %s80
      %p82 = scmp.eq.s32.totalorder %s30, 0
      %p83 = por %p81, %p82
      %s85 = sadd.s32 %s84, 1
      %p88 = scmp.eq.s32.totalorder %s24, 1
      %p89 = scmp.ne.s32.totalorder %s84, %s86
      %p90 = scmp.eq.s32.totalorder %s24, 0
      %p91 = por %p89, %p90
      %p92 = scmp.ne.s32.totalorder %s84, %s86
      %p93 = scmp.eq.s32.totalorder %s29, 1
      %p94 = por %p92, %p93
      %p95 = scmp.ne.s32.totalorder %s86, %s87
      %p96 = scmp.eq.s32.totalorder %s29, 0
      %p97 = por %p95, %p96
      %p98 = scmp.ne.s32.totalorder %s86, %s87
      %p99 = scmp.eq.s32.totalorder %s30, 1
      %p100 = por %p98, %p99
      %p102 = scmp.ne.s32.totalorder %s87, %s101
      %p103 = scmp.eq.s32.totalorder %s30, 0
      %p104 = por %p102, %p103
      %s106 = sadd.s32 %s105, 1
      %p109 = scmp.eq.s32.totalorder %s24, 1
      %p110 = scmp.ne.s32.totalorder %s105, %s107
      %p111 = scmp.eq.s32.totalorder %s24, 0
      %p112 = por %p110, %p111
      %p113 = scmp.ne.s32.totalorder %s105, %s107
      %p114 = scmp.eq.s32.totalorder %s29, 1
      %p115 = por %p113, %p114
      %p116 = scmp.ne.s32.totalorder %s107, %s108
      %p117 = scmp.eq.s32.totalorder %s29, 0
      %p118 = por %p116, %p117
      %p119 = scmp.ne.s32.totalorder %s107, %s108
      %p120 = scmp.eq.s32.totalorder %s30, 1
      %p121 = por %p119, %p120
      %p123 = scmp.ne.s32.totalorder %s108, %s122
      %p124 = scmp.eq.s32.totalorder %s30, 0
      %p125 = por %p123, %p124
      %s127 = sadd.s32 %s126, 1
      %p130 = scmp.eq.s32.totalorder %s24, 1
      %p131 = scmp.ne.s32.totalorder %s126, %s128
      %p132 = scmp.eq.s32.totalorder %s24, 0
      %p133 = por %p131, %p132
      %p134 = scmp.ne.s32.totalorder %s126, %s128
      %p135 = scmp.eq.s32.totalorder %s29, 1
      %p136 = por %p134, %p135
      %p137 = scmp.ne.s32.totalorder %s128, %s129
      %p138 = scmp.eq.s32.totalorder %s29, 0
      %p139 = por %p137, %p138
      %p140 = scmp.ne.s32.totalorder %s128, %s129
      %p141 = scmp.eq.s32.totalorder %s30, 1
      %p142 = por %p140, %p141
      %p144 = scmp.ne.s32.totalorder %s129, %s143
      %p145 = scmp.eq.s32.totalorder %s30, 0
      %p146 = por %p144, %p145
      %s148 = sadd.s32 %s147, 1
      %p151 = scmp.eq.s32.totalorder %s24, 1
      %p152 = scmp.ne.s32.totalorder %s147, %s149
      %p153 = scmp.eq.s32.totalorder %s24, 0
      %p154 = por %p152, %p153
      %p155 = scmp.ne.s32.totalorder %s147, %s149
      %p156 = scmp.eq.s32.totalorder %s29, 1
      %p157 = por %p155, %p156
      %p158 = scmp.ne.s32.totalorder %s149, %s150
      %p159 = scmp.eq.s32.totalorder %s29, 0
      %p160 = por %p158, %p159
      %p161 = scmp.ne.s32.totalorder %s149, %s150
      %p162 = scmp.eq.s32.totalorder %s30, 1
      %p163 = por %p161, %p162
      %p165 = scmp.ne.s32.totalorder %s150, %s164
      %p166 = scmp.eq.s32.totalorder %s30, 0
      %p167 = por %p165, %p166
      %s169 = sadd.s32 %s168, 1
      %p172 = scmp.eq.s32.totalorder %s24, 1
      %p173 = scmp.ne.s32.totalorder %s168, %s170
      %p174 = scmp.eq.s32.totalorder %s24, 0
      %p175 = por %p173, %p174
      %p176 = scmp.ne.s32.totalorder %s168, %s170
      %p177 = scmp.eq.s32.totalorder %s29, 1
      %p178 = por %p176, %p177
      %p179 = scmp.ne.s32.totalorder %s170, %s171
      %p180 = scmp.eq.s32.totalorder %s29, 0
      %p181 = por %p179, %p180
      %p182 = scmp.ne.s32.totalorder %s170, %s171
      %p183 = scmp.eq.s32.totalorder %s30, 1
      %p184 = por %p182, %p183
      %p186 = scmp.ne.s32.totalorder %s171, %s185
      %p187 = scmp.eq.s32.totalorder %s30, 0
      %p188 = por %p186, %p187
      %s190 = sadd.s32 %s189, 1
      %p193 = scmp.eq.s32.totalorder %s24, 1
      %p194 = scmp.ne.s32.totalorder %s189, %s191
      %p195 = scmp.eq.s32.totalorder %s24, 0
      %p196 = por %p194, %p195
      %p197 = scmp.ne.s32.totalorder %s189, %s191
      %p198 = scmp.eq.s32.totalorder %s29, 1
      %p199 = por %p197, %p198
      %p200 = scmp.ne.s32.totalorder %s191, %s192
      %p201 = scmp.eq.s32.totalorder %s29, 0
      %p202 = por %p200, %p201
      %p203 = scmp.ne.s32.totalorder %s191, %s192
      %p204 = scmp.eq.s32.totalorder %s30, 1
      %p205 = por %p203, %p204
      %p207 = scmp.ne.s32.totalorder %s192, %s206
      %p208 = scmp.eq.s32.totalorder %s30, 0
      %p209 = por %p207, %p208
      %s210 = ssub.s32 %s24, %s31
      %p211 = scmp.eq.s32.totalorder %s210, 0
      %s213 = sadd.s32 %s212, 1
      %s214 = scalar_select %p211, %s212, %s213
      %p217 = pneg %p211
      %p218 = scmp.eq.s32.totalorder %s24, 1
      %p219 = por %p217, %p218
      %p220 = scmp.ne.s32.totalorder %s212, %s215
      %p221 = scmp.eq.s32.totalorder %s24, 0
      %p222 = por %p220, %p221
      %p223 = scmp.ne.s32.totalorder %s212, %s215
      %p224 = scmp.eq.s32.totalorder %s29, 1
      %p225 = por %p223, %p224
      %p226 = scmp.ne.s32.totalorder %s215, %s216
      %p227 = scmp.eq.s32.totalorder %s29, 0
      %p228 = por %p226, %p227
      %p229 = scmp.ne.s32.totalorder %s215, %s216
      %p230 = scmp.eq.s32.totalorder %s30, 1
      %p231 = por %p229, %p230
      %p233 = scmp.ne.s32.totalorder %s216, %s232
      %p234 = scmp.eq.s32.totalorder %s30, 0
      %p235 = por %p233, %p234
      %p236 = scmp.le.s32.totalorder 1, %s24
      %p237 = scmp.lt.s32.totalorder %s24, 3
      %p238 = pnand %p236, %p237
      %p239 = pneg %p238
      // Predicated region
      $region9: #{tpu_custom_call.1} parent=5 // pred_check
        _
      $region10: #{tpu_custom_call.1} parent=5 // pred_check_branch
        %241 = sbr.rel (%p238) target = $region12
      $region11: #{tpu_custom_call.1} parent=5 // pred_region
        %s242 = ssub.s32 %s24, 1
        // Predicated region
        $region13: #{tpu_custom_call.1} parent=11 // pred_check
          %p243 = pneg %p97
        $region14: #{tpu_custom_call.1} parent=11 // pred_check_branch
          %245 = sbr.rel (%p243) target = $region16
        $region15: #{tpu_custom_call.1} parent=11 // pred_region
          %s247 = ssub.s32 4096, 4096
          %248 = vsyncadd [#allocation6], %s247
          %s249 = sshll.u32 [#allocation7], 4
          %s250 = int_to_ptr.vmem [resolvable:$true] %s249
          %255 = dma.hbm_to_vmem [thread:$0]  %s2, 4096, %s250, [#allocation6], 128, 128, 8
        $region16: #{tpu_custom_call.1} parent=11 // pred_fallthru
          _
        // Predicated region
        $region17: #{tpu_custom_call.1} parent=11 // pred_check
          %p256 = pneg %p118
        $region18: #{tpu_custom_call.1} parent=11 // pred_check_branch
          %258 = sbr.rel (%p256) target = $region20
        $region19: #{tpu_custom_call.1} parent=11 // pred_region
          _
        $region20: #{tpu_custom_call.1} parent=11 // pred_fallthru
          _
        // Predicated region
        $region21: #{tpu_custom_call.1} parent=11 // pred_check
          %p259 = pneg %p139
        $region22: #{tpu_custom_call.1} parent=11 // pred_check_branch
          %261 = sbr.rel (%p259) target = $region24
        $region23: #{tpu_custom_call.1} parent=11 // pred_region
          %s263 = ssub.s32 8192, 8192
          %264 = vsyncadd [#allocation9], %s263
          %s265 = sshll.u32 [#allocation8], 4
          %s266 = int_to_ptr.vmem [resolvable:$true] %s265
          %271 = dma.hbm_to_vmem [thread:$0]  %s4, 8192, %s266, [#allocation9], 256, 256, 16
        $region24: #{tpu_custom_call.1} parent=11 // pred_fallthru
          _
        // Predicated region
        $region25: #{tpu_custom_call.1} parent=11 // pred_check
          %p272 = pneg %p160
        $region26: #{tpu_custom_call.1} parent=11 // pred_check_branch
          %274 = sbr.rel (%p272) target = $region28
        $region27: #{tpu_custom_call.1} parent=11 // pred_region
          _
        $region28: #{tpu_custom_call.1} parent=11 // pred_fallthru
          _
        // Predicated region
        $region29: #{tpu_custom_call.1} parent=11 // pred_check
          %p275 = pneg %p181
        $region30: #{tpu_custom_call.1} parent=11 // pred_check_branch
          %277 = sbr.rel (%p275) target = $region32
        $region31: #{tpu_custom_call.1} parent=11 // pred_region
          %s279 = ssub.s32 4096, 4096
          %280 = vsyncadd [#allocation9], %s279
          %s281 = sshll.u32 [#allocation10], 4
          %s282 = int_to_ptr.vmem [resolvable:$true] %s281
          %287 = dma.hbm_to_vmem [thread:$0]  %s6, 4096, %s282, [#allocation9], 128, 128, 8
        $region32: #{tpu_custom_call.1} parent=11 // pred_fallthru
          _
        // Predicated region
        $region33: #{tpu_custom_call.1} parent=11 // pred_check
          %p288 = pneg %p202
        $region34: #{tpu_custom_call.1} parent=11 // pred_check_branch
          %290 = sbr.rel (%p288) target = $region36
        $region35: #{tpu_custom_call.1} parent=11 // pred_region
          _
        $region36: #{tpu_custom_call.1} parent=11 // pred_fallthru
          _
      $region12: #{tpu_custom_call.1} parent=5 // pred_fallthru
        _
      %p291 = scmp.lt.s32.totalorder %s24, 2
      // Predicated region
      $region37: #{tpu_custom_call.1} parent=5 // pred_check
        %p292 = pneg %p291
      $region38: #{tpu_custom_call.1} parent=5 // pred_check_branch
        %294 = sbr.rel (%p292) target = $region40
      $region39: #{tpu_custom_call.1} parent=5 // pred_region
        // Predicated region
        $region41: #{tpu_custom_call.1} parent=39 // pred_check
          %p295 = pneg %p44
        $region42: #{tpu_custom_call.1} parent=39 // pred_check_branch
          %297 = sbr.rel (%p295) target = $region44
        $region43: #{tpu_custom_call.1} parent=39 // pred_region
          %s298 = sand.u32 %s34, 1
          %s299 = scalar_lea.sflag [#allocation3], %s298
          %s300 = sand.u32 %s34, 1
          %s301 = smul.addr %s300, 16
          %s302 = scalar_lea.vmem [#allocation2], %s301
          %s304 = ssub.s32 256, 256
          %305 = vsyncadd %s299, %s304
          %s306 = smul.addr %s24, 4
          %s307 = smul.addr %s306, 64
          %s308 = scalar_lea.hbm %s0, %s307
          %s309 = sshll.u32 %s302, 4
          %s310 = int_to_ptr.vmem [resolvable:$true] %s309
          %315 = dma.hbm_to_vmem [thread:$0]  %s308, 256, %s310, %s299, 128, 128, 8
        $region44: #{tpu_custom_call.1} parent=39 // pred_fallthru
          _
        // Predicated region
        $region45: #{tpu_custom_call.1} parent=39 // pred_check
          %p316 = pneg %p70
        $region46: #{tpu_custom_call.1} parent=39 // pred_check_branch
          %318 = sbr.rel (%p316) target = $region48
        $region47: #{tpu_custom_call.1} parent=39 // pred_region
          %s319 = sand.u32 %s24, 1
          %s320 = scalar_lea.sflag [#allocation6], %s319
          %s321 = sand.u32 %s60, 1
          %s322 = smul.addr %s321, 32
          %s323 = scalar_lea.vmem [#allocation5], %s322
          %s325 = ssub.s32 512, 512
          %326 = vsyncadd %s320, %s325
          %s327 = smul.addr %s24, 8
          %s328 = smul.addr %s327, 64
          %s329 = scalar_lea.hbm %s1, %s328
          %s330 = sshll.u32 %s323, 4
          %s331 = int_to_ptr.vmem [resolvable:$true] %s330
          %336 = dma.hbm_to_vmem [thread:$0]  %s329, 512, %s331, %s320, 128, 128, 8
        $region48: #{tpu_custom_call.1} parent=39 // pred_fallthru
          _
      $region40: #{tpu_custom_call.1} parent=5 // pred_fallthru
        _
      %p337 = scmp.le.s32.totalorder 1, %s24
      %p338 = scmp.lt.s32.totalorder %s24, 3
      %p339 = pnand %p337, %p338
      %p340 = pneg %p339
      // Predicated region
      $region49: #{tpu_custom_call.1} parent=5 // pred_check
        _
      $region50: #{tpu_custom_call.1} parent=5 // pred_check_branch
        %342 = sbr.rel (%p339) target = $region52
      $region51: #{tpu_custom_call.1} parent=5 // pred_region
        %s343 = ssub.s32 %s24, 1
        %s344 = sand.u32 %s37, 1
        %s345 = scalar_lea.sflag [#allocation3], %s344
        %s346 = sand.u32 %s37, 1
        %s347 = smul.addr %s346, 16
        %s348 = scalar_lea.vmem [#allocation2], %s347
        // Predicated region
        $region53: #{tpu_custom_call.1} parent=51 // pred_check
          %p349 = pneg %p50
        $region54: #{tpu_custom_call.1} parent=51 // pred_check_branch
          %351 = sbr.rel (%p349) target = $region56
        $region55: #{tpu_custom_call.1} parent=51 // pred_region
          %352 = dma.done %s345, 256
        $region56: #{tpu_custom_call.1} parent=51 // pred_fallthru
          _
        %s353 = sand.u32 %s29, 1
        %s354 = scalar_lea.sflag [#allocation6], %s353
        %s355 = sand.u32 %s63, 1
        %s356 = smul.addr %s355, 32
        %s357 = scalar_lea.vmem [#allocation5], %s356
        // Predicated region
        $region57: #{tpu_custom_call.1} parent=51 // pred_check
          %p358 = pneg %p76
        $region58: #{tpu_custom_call.1} parent=51 // pred_check_branch
          %360 = sbr.rel (%p358) target = $region60
        $region59: #{tpu_custom_call.1} parent=51 // pred_region
          %361 = dma.done %s354, 512
        $region60: #{tpu_custom_call.1} parent=51 // pred_fallthru
          _
        // Predicated region
        $region61: #{tpu_custom_call.1} parent=51 // pred_check
          %p362 = pneg %p97
        $region62: #{tpu_custom_call.1} parent=51 // pred_check_branch
          %364 = sbr.rel (%p362) target = $region64
        $region63: #{tpu_custom_call.1} parent=51 // pred_region
          %365 = dma.done [#allocation6], 4096
        $region64: #{tpu_custom_call.1} parent=51 // pred_fallthru
          _
        // Predicated region
        $region65: #{tpu_custom_call.1} parent=51 // pred_check
          %p366 = pneg %p139
        $region66: #{tpu_custom_call.1} parent=51 // pred_check_branch
          %368 = sbr.rel (%p366) target = $region68
        $region67: #{tpu_custom_call.1} parent=51 // pred_region
          %369 = dma.done [#allocation9], 8192
        $region68: #{tpu_custom_call.1} parent=51 // pred_fallthru
          _
        // Predicated region
        $region69: #{tpu_custom_call.1} parent=51 // pred_check
          %p370 = pneg %p181
        $region70: #{tpu_custom_call.1} parent=51 // pred_check_branch
          %372 = sbr.rel (%p370) target = $region72
        $region71: #{tpu_custom_call.1} parent=51 // pred_region
          %373 = dma.done [#allocation9], 4096
        $region72: #{tpu_custom_call.1} parent=51 // pred_fallthru
          _
        %s374 = sand.u32 %s37, 1
        %s375 = scalar_lea.sflag [#allocation3], %s374
        %s376 = sand.u32 %s37, 1
        %s377 = smul.addr %s376, 16
        %s378 = scalar_lea.vmem [#allocation2], %s377
        %p379 = pneg %p50
        %p380 = pneg %p47
        %s381 = sand.u32 %s29, 1
        %s382 = scalar_lea.sflag [#allocation6], %s381
        %s383 = sand.u32 %s63, 1
        %s384 = smul.addr %s383, 32
        %s385 = scalar_lea.vmem [#allocation5], %s384
        %p386 = pneg %p76
        %p387 = pneg %p73
        %p388 = pneg %p97
        %p389 = pneg %p94
        %p390 = pneg %p118
        %p391 = pneg %p115
        %p392 = pneg %p139
        %p393 = pneg %p136
        %p394 = pneg %p160
        %p395 = pneg %p157
        %p396 = pneg %p181
        %p397 = pneg %p178
        %p398 = pneg %p202
        %p399 = pneg %p199
        %p400 = pneg %p228
        %p401 = pneg %p225
        %s402 = sand.u32 %s215, 1
        %s403 = scalar_lea.sflag [#allocation4], %s402
        %s404 = sand.u32 %s215, 1
        %s405 = smul.addr %s404, 32
        %s406 = scalar_lea.vmem [#allocation11], %s405
        %v408 = vld [vmem:[%s348] sm:$0xff]
        %v409 = vld [vmem:[%s348 + $0x8] sm:$0xff]
        %v410 = vld [vmem:[%s357] sm:$0xff]
        %v411 = vld [vmem:[%s357 + $0x8] sm:$0xff]
        %v412 = vld [vmem:[%s357 + $0x10] sm:$0xff]
        %v413 = vld [vmem:[%s357 + $0x18] sm:$0xff]
        %v414 = vld [vmem:[#allocation7] sm:$0xff]
        %v415 = vld [vmem:[#allocation7 + $0x8] sm:$0xff]
        %v416 = vld [vmem:[#allocation7 + $0x10] sm:$0xff]
        %v417 = vld [vmem:[#allocation7 + $0x18] sm:$0xff]
        %v418 = vld [vmem:[#allocation7 + $0x20] sm:$0xff]
        %v419 = vld [vmem:[#allocation7 + $0x28] sm:$0xff]
        %v420 = vld [vmem:[#allocation7 + $0x30] sm:$0xff]
        %v421 = vld [vmem:[#allocation7 + $0x38] sm:$0xff]
        %v422 = vld [vmem:[#allocation7 + $0x40] sm:$0xff]
        %v423 = vld [vmem:[#allocation7 + $0x48] sm:$0xff]
        %v424 = vld [vmem:[#allocation7 + $0x50] sm:$0xff]
        %v425 = vld [vmem:[#allocation7 + $0x58] sm:$0xff]
        %v426 = vld [vmem:[#allocation7 + $0x60] sm:$0xff]
        %v427 = vld [vmem:[#allocation7 + $0x68] sm:$0xff]
        %v428 = vld [vmem:[#allocation7 + $0x70] sm:$0xff]
        %v429 = vld [vmem:[#allocation7 + $0x78] sm:$0xff]
        %v430 = vld [vmem:[#allocation7 + $0x80] sm:$0xff]
        %v431 = vld [vmem:[#allocation7 + $0x88] sm:$0xff]
        %v432 = vld [vmem:[#allocation7 + $0x90] sm:$0xff]
        %v433 = vld [vmem:[#allocation7 + $0x98] sm:$0xff]
        %v434 = vld [vmem:[#allocation7 + $0xa0] sm:$0xff]
        %v435 = vld [vmem:[#allocation7 + $0xa8] sm:$0xff]
        %v436 = vld [vmem:[#allocation7 + $0xb0] sm:$0xff]
        %v437 = vld [vmem:[#allocation7 + $0xb8] sm:$0xff]
        %v438 = vld [vmem:[#allocation7 + $0xc0] sm:$0xff]
        %v439 = vld [vmem:[#allocation7 + $0xc8] sm:$0xff]
        %v440 = vld [vmem:[#allocation7 + $0xd0] sm:$0xff]
        %v441 = vld [vmem:[#allocation7 + $0xd8] sm:$0xff]
        %v442 = vld [vmem:[#allocation7 + $0xe0] sm:$0xff]
        %v443 = vld [vmem:[#allocation7 + $0xe8] sm:$0xff]
        %v444 = vld [vmem:[#allocation7 + $0xf0] sm:$0xff]
        %v445 = vld [vmem:[#allocation7 + $0xf8] sm:$0xff]
        %v446 = vld [vmem:[%s3] sm:$0x3]
        %v448 = vlaneseq
        %v449 = vshrl.u32 %v448, 7
        %v450 = vsub.s32 0, %v449
        %v451 = vrot.slane %v446, %v450
        %v452 = vlaneseq
        %v453 = vshrl.u32 %v452, 7
        %v454 = vsub.s32 1, %v453
        %v455 = vrot.slane %v446, %v454
        %v460 = vunpack.c.l.b16 %v408
        %v461 = vunpack.c.h.b16 %v408
        %v462 = vunpack.c.l.b16 %v409
        %v463 = vunpack.c.h.b16 %v409
        %v464 = vpack.c.b16 %v462, %v460
        %v465 = vpack.c.b16 %v463, %v461
        %v500 = vunpack.c.l.b16 %v414
        %v501 = vunpack.c.h.b16 %v414
        %v502 = vunpack.c.l.b16 %v415
        %v503 = vunpack.c.h.b16 %v415
        %v504 = vunpack.c.l.b16 %v416
        %v505 = vunpack.c.h.b16 %v416
        %v506 = vunpack.c.l.b16 %v417
        %v507 = vunpack.c.h.b16 %v417
        %v508 = vunpack.c.l.b16 %v418
        %v509 = vunpack.c.h.b16 %v418
        %v510 = vunpack.c.l.b16 %v419
        %v511 = vunpack.c.h.b16 %v419
        %v512 = vunpack.c.l.b16 %v420
        %v513 = vunpack.c.h.b16 %v420
        %v514 = vunpack.c.l.b16 %v421
        %v515 = vunpack.c.h.b16 %v421
        %v516 = vunpack.c.l.b16 %v422
        %v517 = vunpack.c.h.b16 %v422
        %v518 = vunpack.c.l.b16 %v423
        %v519 = vunpack.c.h.b16 %v423
        %v520 = vunpack.c.l.b16 %v424
        %v521 = vunpack.c.h.b16 %v424
        %v522 = vunpack.c.l.b16 %v425
        %v523 = vunpack.c.h.b16 %v425
        %v524 = vunpack.c.l.b16 %v426
        %v525 = vunpack.c.h.b16 %v426
        %v526 = vunpack.c.l.b16 %v427
        %v527 = vunpack.c.h.b16 %v427
        %v528 = vunpack.c.l.b16 %v428
        %v529 = vunpack.c.h.b16 %v428
        %v530 = vunpack.c.l.b16 %v429
        %v531 = vunpack.c.h.b16 %v429
        %v532 = vunpack.c.l.b16 %v430
        %v533 = vunpack.c.h.b16 %v430
        %v534 = vunpack.c.l.b16 %v431
        %v535 = vunpack.c.h.b16 %v431
        %v536 = vunpack.c.l.b16 %v432
        %v537 = vunpack.c.h.b16 %v432
        %v538 = vunpack.c.l.b16 %v433
        %v539 = vunpack.c.h.b16 %v433
        %v540 = vunpack.c.l.b16 %v434
        %v541 = vunpack.c.h.b16 %v434
        %v542 = vunpack.c.l.b16 %v435
        %v543 = vunpack.c.h.b16 %v435
        %v544 = vunpack.c.l.b16 %v436
        %v545 = vunpack.c.h.b16 %v436
        %v546 = vunpack.c.l.b16 %v437
        %v547 = vunpack.c.h.b16 %v437
        %v548 = vunpack.c.l.b16 %v438
        %v549 = vunpack.c.h.b16 %v438
        %v550 = vunpack.c.l.b16 %v439
        %v551 = vunpack.c.h.b16 %v439
        %v552 = vunpack.c.l.b16 %v440
        %v553 = vunpack.c.h.b16 %v440
        %v554 = vunpack.c.l.b16 %v441
        %v555 = vunpack.c.h.b16 %v441
        %v556 = vunpack.c.l.b16 %v442
        %v557 = vunpack.c.h.b16 %v442
        %v558 = vunpack.c.l.b16 %v443
        %v559 = vunpack.c.h.b16 %v443
        %v560 = vunpack.c.l.b16 %v444
        %v561 = vunpack.c.h.b16 %v444
        %v562 = vunpack.c.l.b16 %v445
        %v563 = vunpack.c.h.b16 %v445
        %v564 = vpack.c.b16 %v502, %v500
        %v565 = vpack.c.b16 %v503, %v501
        %v566 = vpack.c.b16 %v506, %v504
        %v567 = vpack.c.b16 %v507, %v505
        %v568 = vpack.c.b16 %v510, %v508
        %v569 = vpack.c.b16 %v511, %v509
        %v570 = vpack.c.b16 %v514, %v512
        %v571 = vpack.c.b16 %v515, %v513
        %v572 = vpack.c.b16 %v518, %v516
        %v573 = vpack.c.b16 %v519, %v517
        %v574 = vpack.c.b16 %v522, %v520
        %v575 = vpack.c.b16 %v523, %v521
        %v576 = vpack.c.b16 %v526, %v524
        %v577 = vpack.c.b16 %v527, %v525
        %v578 = vpack.c.b16 %v530, %v528
        %v579 = vpack.c.b16 %v531, %v529
        %v580 = vpack.c.b16 %v534, %v532
        %v581 = vpack.c.b16 %v535, %v533
        %v582 = vpack.c.b16 %v538, %v536
        %v583 = vpack.c.b16 %v539, %v537
        %v584 = vpack.c.b16 %v542, %v540
        %v585 = vpack.c.b16 %v543, %v541
        %v586 = vpack.c.b16 %v546, %v544
        %v587 = vpack.c.b16 %v547, %v545
        %v588 = vpack.c.b16 %v550, %v548
        %v589 = vpack.c.b16 %v551, %v549
        %v590 = vpack.c.b16 %v554, %v552
        %v591 = vpack.c.b16 %v555, %v553
        %v592 = vpack.c.b16 %v558, %v556
        %v593 = vpack.c.b16 %v559, %v557
        %v594 = vpack.c.b16 %v562, %v560
        %v595 = vpack.c.b16 %v563, %v561
        %628 = vmatprep.subr.bf16.mxu0 %v565
        %629 = vmatpush1.bf16.msra.mxu0 %v564
        %630 = vmatprep.subr.bf16.mxu0 %v567
        %631 = vmatpush1.bf16.msra.mxu0 %v566
        %632 = vmatprep.subr.bf16.mxu0 %v569
        %633 = vmatpush1.bf16.msra.mxu0 %v568
        %634 = vmatprep.subr.bf16.mxu0 %v571
        %635 = vmatpush1.bf16.msra.mxu0 %v570
        %636 = vmatprep.subr.bf16.mxu0 %v573
        %637 = vmatpush1.bf16.msra.mxu0 %v572
        %638 = vmatprep.subr.bf16.mxu0 %v575
        %639 = vmatpush1.bf16.msra.mxu0 %v574
        %640 = vmatprep.subr.bf16.mxu0 %v577
        %641 = vmatpush1.bf16.msra.mxu0 %v576
        %642 = vmatprep.subr.bf16.mxu0 %v579
        %643 = vmatpush1.bf16.msra.mxu0 %v578
        %644 = vmatprep.subr.bf16.mxu0 %v581
        %645 = vmatpush1.bf16.msra.mxu0 %v580
        %646 = vmatprep.subr.bf16.mxu0 %v583
        %647 = vmatpush1.bf16.msra.mxu0 %v582
        %648 = vmatprep.subr.bf16.mxu0 %v585
        %649 = vmatpush1.bf16.msra.mxu0 %v584
        %650 = vmatprep.subr.bf16.mxu0 %v587
        %651 = vmatpush1.bf16.msra.mxu0 %v586
        %652 = vmatprep.subr.bf16.mxu0 %v589
        %653 = vmatpush1.bf16.msra.mxu0 %v588
        %654 = vmatprep.subr.bf16.mxu0 %v591
        %655 = vmatpush1.bf16.msra.mxu0 %v590
        %656 = vmatprep.subr.bf16.mxu0 %v593
        %657 = vmatpush1.bf16.msra.mxu0 %v592
        %658 = vmatprep.subr.bf16.mxu0 %v595
        %659 = vmatpush1.bf16.msra.mxu0 %v594
        %660 = vmatprep.mubr.bf16.mxu0 %v465
        %661 = vmatmul.mubr.bf16.gmra.mrb[0].mxu0 %v464
        %v662 = vpop.f32.mrb[0].mxu0
        %v663 = vadd.f32 %v451, %v662
        %v664 = vpop.f32.mrb[0].mxu0
        %v665 = vadd.f32 %v455, %v664
        %v666 = vpop.f32.mrb[0].mxu0
        %v667 = vadd.f32 %v451, %v666
        %v668 = vpop.f32.mrb[0].mxu0
        %v669 = vadd.f32 %v455, %v668
        %670 = vdwg.mxu0
        %v671 = vld [vmem:[#allocation8] sm:$0xff]
        %v672 = vld [vmem:[#allocation8 + $0x8] sm:$0xff]
        %v673 = vld [vmem:[#allocation8 + $0x10] sm:$0xff]
        %v674 = vld [vmem:[#allocation8 + $0x18] sm:$0xff]
        %v675 = vld [vmem:[#allocation8 + $0x20] sm:$0xff]
        %v676 = vld [vmem:[#allocation8 + $0x28] sm:$0xff]
        %v677 = vld [vmem:[#allocation8 + $0x30] sm:$0xff]
        %v678 = vld [vmem:[#allocation8 + $0x38] sm:$0xff]
        %v679 = vld [vmem:[#allocation8 + $0x40] sm:$0xff]
        %v680 = vld [vmem:[#allocation8 + $0x48] sm:$0xff]
        %v681 = vld [vmem:[#allocation8 + $0x50] sm:$0xff]
        %v682 = vld [vmem:[#allocation8 + $0x58] sm:$0xff]
        %v683 = vld [vmem:[#allocation8 + $0x60] sm:$0xff]
        %v684 = vld [vmem:[#allocation8 + $0x68] sm:$0xff]
        %v685 = vld [vmem:[#allocation8 + $0x70] sm:$0xff]
        %v686 = vld [vmem:[#allocation8 + $0x78] sm:$0xff]
        %v687 = vld [vmem:[#allocation8 + $0x80] sm:$0xff]
        %v688 = vld [vmem:[#allocation8 + $0x88] sm:$0xff]
        %v689 = vld [vmem:[#allocation8 + $0x90] sm:$0xff]
        %v690 = vld [vmem:[#allocation8 + $0x98] sm:$0xff]
        %v691 = vld [vmem:[#allocation8 + $0xa0] sm:$0xff]
        %v692 = vld [vmem:[#allocation8 + $0xa8] sm:$0xff]
        %v693 = vld [vmem:[#allocation8 + $0xb0] sm:$0xff]
        %v694 = vld [vmem:[#allocation8 + $0xb8] sm:$0xff]
        %v695 = vld [vmem:[#allocation8 + $0xc0] sm:$0xff]
        %v696 = vld [vmem:[#allocation8 + $0xc8] sm:$0xff]
        %v697 = vld [vmem:[#allocation8 + $0xd0] sm:$0xff]
        %v698 = vld [vmem:[#allocation8 + $0xd8] sm:$0xff]
        %v699 = vld [vmem:[#allocation8 + $0xe0] sm:$0xff]
        %v700 = vld [vmem:[#allocation8 + $0xe8] sm:$0xff]
        %v701 = vld [vmem:[#allocation8 + $0xf0] sm:$0xff]
        %v702 = vld [vmem:[#allocation8 + $0xf8] sm:$0xff]
        %v703 = vld [vmem:[#allocation8 + $0x100] sm:$0xff]
        %v704 = vld [vmem:[#allocation8 + $0x108] sm:$0xff]
        %v705 = vld [vmem:[#allocation8 + $0x110] sm:$0xff]
        %v706 = vld [vmem:[#allocation8 + $0x118] sm:$0xff]
        %v707 = vld [vmem:[#allocation8 + $0x120] sm:$0xff]
        %v708 = vld [vmem:[#allocation8 + $0x128] sm:$0xff]
        %v709 = vld [vmem:[#allocation8 + $0x130] sm:$0xff]
        %v710 = vld [vmem:[#allocation8 + $0x138] sm:$0xff]
        %v711 = vld [vmem:[#allocation8 + $0x140] sm:$0xff]
        %v712 = vld [vmem:[#allocation8 + $0x148] sm:$0xff]
        %v713 = vld [vmem:[#allocation8 + $0x150] sm:$0xff]
        %v714 = vld [vmem:[#allocation8 + $0x158] sm:$0xff]
        %v715 = vld [vmem:[#allocation8 + $0x160] sm:$0xff]
        %v716 = vld [vmem:[#allocation8 + $0x168] sm:$0xff]
        %v717 = vld [vmem:[#allocation8 + $0x170] sm:$0xff]
        %v718 = vld [vmem:[#allocation8 + $0x178] sm:$0xff]
        %v719 = vld [vmem:[#allocation8 + $0x180] sm:$0xff]
        %v720 = vld [vmem:[#allocation8 + $0x188] sm:$0xff]
        %v721 = vld [vmem:[#allocation8 + $0x190] sm:$0xff]
        %v722 = vld [vmem:[#allocation8 + $0x198] sm:$0xff]
        %v723 = vld [vmem:[#allocation8 + $0x1a0] sm:$0xff]
        %v724 = vld [vmem:[#allocation8 + $0x1a8] sm:$0xff]
        %v725 = vld [vmem:[#allocation8 + $0x1b0] sm:$0xff]
        %v726 = vld [vmem:[#allocation8 + $0x1b8] sm:$0xff]
        %v727 = vld [vmem:[#allocation8 + $0x1c0] sm:$0xff]
        %v728 = vld [vmem:[#allocation8 + $0x1c8] sm:$0xff]
        %v729 = vld [vmem:[#allocation8 + $0x1d0] sm:$0xff]
        %v730 = vld [vmem:[#allocation8 + $0x1d8] sm:$0xff]
        %v731 = vld [vmem:[#allocation8 + $0x1e0] sm:$0xff]
        %v732 = vld [vmem:[#allocation8 + $0x1e8] sm:$0xff]
        %v733 = vld [vmem:[#allocation8 + $0x1f0] sm:$0xff]
        %v734 = vld [vmem:[#allocation8 + $0x1f8] sm:$0xff]
        %v735 = vld [vmem:[%s5] sm:$0xf]
        %v737 = vlaneseq
        %v738 = vshrl.u32 %v737, 7
        %v739 = vsub.s32 0, %v738
        %v740 = vrot.slane %v735, %v739
        %v741 = vlaneseq
        %v742 = vshrl.u32 %v741, 7
        %v743 = vsub.s32 1, %v742
        %v744 = vrot.slane %v735, %v743
        %v745 = vlaneseq
        %v746 = vshrl.u32 %v745, 7
        %v747 = vsub.s32 2, %v746
        %v748 = vrot.slane %v735, %v747
        %v749 = vlaneseq
        %v750 = vshrl.u32 %v749, 7
        %v751 = vsub.s32 3, %v750
        %v752 = vrot.slane %v735, %v751
        %v761 = vunpack.c.l.b16 %v410
        %v762 = vunpack.c.h.b16 %v410
        %v763 = vunpack.c.l.b16 %v411
        %v764 = vunpack.c.h.b16 %v411
        %v765 = vunpack.c.l.b16 %v412
        %v766 = vunpack.c.h.b16 %v412
        %v767 = vunpack.c.l.b16 %v413
        %v768 = vunpack.c.h.b16 %v413
        %v769 = vpack.c.b16 %v763, %v761
        %v770 = vpack.c.b16 %v764, %v762
        %v771 = vpack.c.b16 %v767, %v765
        %v772 = vpack.c.b16 %v768, %v766
        %v841 = vunpack.c.l.b16 %v671
        %v842 = vunpack.c.h.b16 %v671
        %v843 = vunpack.c.l.b16 %v672
        %v844 = vunpack.c.h.b16 %v672
        %v845 = vunpack.c.l.b16 %v673
        %v846 = vunpack.c.h.b16 %v673
        %v847 = vunpack.c.l.b16 %v674
        %v848 = vunpack.c.h.b16 %v674
        %v849 = vunpack.c.l.b16 %v675
        %v850 = vunpack.c.h.b16 %v675
        %v851 = vunpack.c.l.b16 %v676
        %v852 = vunpack.c.h.b16 %v676
        %v853 = vunpack.c.l.b16 %v677
        %v854 = vunpack.c.h.b16 %v677
        %v855 = vunpack.c.l.b16 %v678
        %v856 = vunpack.c.h.b16 %v678
        %v857 = vunpack.c.l.b16 %v679
        %v858 = vunpack.c.h.b16 %v679
        %v859 = vunpack.c.l.b16 %v680
        %v860 = vunpack.c.h.b16 %v680
        %v861 = vunpack.c.l.b16 %v681
        %v862 = vunpack.c.h.b16 %v681
        %v863 = vunpack.c.l.b16 %v682
        %v864 = vunpack.c.h.b16 %v682
        %v865 = vunpack.c.l.b16 %v683
        %v866 = vunpack.c.h.b16 %v683
        %v867 = vunpack.c.l.b16 %v684
        %v868 = vunpack.c.h.b16 %v684
        %v869 = vunpack.c.l.b16 %v685
        %v870 = vunpack.c.h.b16 %v685
        %v871 = vunpack.c.l.b16 %v686
        %v872 = vunpack.c.h.b16 %v686
        %v873 = vunpack.c.l.b16 %v687
        %v874 = vunpack.c.h.b16 %v687
        %v875 = vunpack.c.l.b16 %v688
        %v876 = vunpack.c.h.b16 %v688
        %v877 = vunpack.c.l.b16 %v689
        %v878 = vunpack.c.h.b16 %v689
        %v879 = vunpack.c.l.b16 %v690
        %v880 = vunpack.c.h.b16 %v690
        %v881 = vunpack.c.l.b16 %v691
        %v882 = vunpack.c.h.b16 %v691
        %v883 = vunpack.c.l.b16 %v692
        %v884 = vunpack.c.h.b16 %v692
        %v885 = vunpack.c.l.b16 %v693
        %v886 = vunpack.c.h.b16 %v693
        %v887 = vunpack.c.l.b16 %v694
        %v888 = vunpack.c.h.b16 %v694
        %v889 = vunpack.c.l.b16 %v695
        %v890 = vunpack.c.h.b16 %v695
        %v891 = vunpack.c.l.b16 %v696
        %v892 = vunpack.c.h.b16 %v696
        %v893 = vunpack.c.l.b16 %v697
        %v894 = vunpack.c.h.b16 %v697
        %v895 = vunpack.c.l.b16 %v698
        %v896 = vunpack.c.h.b16 %v698
        %v897 = vunpack.c.l.b16 %v699
        %v898 = vunpack.c.h.b16 %v699
        %v899 = vunpack.c.l.b16 %v700
        %v900 = vunpack.c.h.b16 %v700
        %v901 = vunpack.c.l.b16 %v701
        %v902 = vunpack.c.h.b16 %v701
        %v903 = vunpack.c.l.b16 %v702
        %v904 = vunpack.c.h.b16 %v702
        %v905 = vunpack.c.l.b16 %v703
        %v906 = vunpack.c.h.b16 %v703
        %v907 = vunpack.c.l.b16 %v704
        %v908 = vunpack.c.h.b16 %v704
        %v909 = vunpack.c.l.b16 %v705
        %v910 = vunpack.c.h.b16 %v705
        %v911 = vunpack.c.l.b16 %v706
        %v912 = vunpack.c.h.b16 %v706
        %v913 = vunpack.c.l.b16 %v707
        %v914 = vunpack.c.h.b16 %v707
        %v915 = vunpack.c.l.b16 %v708
        %v916 = vunpack.c.h.b16 %v708
        %v917 = vunpack.c.l.b16 %v709
        %v918 = vunpack.c.h.b16 %v709
        %v919 = vunpack.c.l.b16 %v710
        %v920 = vunpack.c.h.b16 %v710
        %v921 = vunpack.c.l.b16 %v711
        %v922 = vunpack.c.h.b16 %v711
        %v923 = vunpack.c.l.b16 %v712
        %v924 = vunpack.c.h.b16 %v712
        %v925 = vunpack.c.l.b16 %v713
        %v926 = vunpack.c.h.b16 %v713
        %v927 = vunpack.c.l.b16 %v714
        %v928 = vunpack.c.h.b16 %v714
        %v929 = vunpack.c.l.b16 %v715
        %v930 = vunpack.c.h.b16 %v715
        %v931 = vunpack.c.l.b16 %v716
        %v932 = vunpack.c.h.b16 %v716
        %v933 = vunpack.c.l.b16 %v717
        %v934 = vunpack.c.h.b16 %v717
        %v935 = vunpack.c.l.b16 %v718
        %v936 = vunpack.c.h.b16 %v718
        %v937 = vunpack.c.l.b16 %v719
        %v938 = vunpack.c.h.b16 %v719
        %v939 = vunpack.c.l.b16 %v720
        %v940 = vunpack.c.h.b16 %v720
        %v941 = vunpack.c.l.b16 %v721
        %v942 = vunpack.c.h.b16 %v721
        %v943 = vunpack.c.l.b16 %v722
        %v944 = vunpack.c.h.b16 %v722
        %v945 = vunpack.c.l.b16 %v723
        %v946 = vunpack.c.h.b16 %v723
        %v947 = vunpack.c.l.b16 %v724
        %v948 = vunpack.c.h.b16 %v724
        %v949 = vunpack.c.l.b16 %v725
        %v950 = vunpack.c.h.b16 %v725
        %v951 = vunpack.c.l.b16 %v726
        %v952 = vunpack.c.h.b16 %v726
        %v953 = vunpack.c.l.b16 %v727
        %v954 = vunpack.c.h.b16 %v727
        %v955 = vunpack.c.l.b16 %v728
        %v956 = vunpack.c.h.b16 %v728
        %v957 = vunpack.c.l.b16 %v729
        %v958 = vunpack.c.h.b16 %v729
        %v959 = vunpack.c.l.b16 %v730
        %v960 = vunpack.c.h.b16 %v730
        %v961 = vunpack.c.l.b16 %v731
        %v962 = vunpack.c.h.b16 %v731
        %v963 = vunpack.c.l.b16 %v732
        %v964 = vunpack.c.h.b16 %v732
        %v965 = vunpack.c.l.b16 %v733
        %v966 = vunpack.c.h.b16 %v733
        %v967 = vunpack.c.l.b16 %v734
        %v968 = vunpack.c.h.b16 %v734
        %v969 = vpack.c.b16 %v845, %v841
        %v970 = vpack.c.b16 %v846, %v842
        %v971 = vpack.c.b16 %v847, %v843
        %v972 = vpack.c.b16 %v848, %v844
        %v973 = vpack.c.b16 %v853, %v849
        %v974 = vpack.c.b16 %v854, %v850
        %v975 = vpack.c.b16 %v855, %v851
        %v976 = vpack.c.b16 %v856, %v852
        %v977 = vpack.c.b16 %v861, %v857
        %v978 = vpack.c.b16 %v862, %v858
        %v979 = vpack.c.b16 %v863, %v859
        %v980 = vpack.c.b16 %v864, %v860
        %v981 = vpack.c.b16 %v869, %v865
        %v982 = vpack.c.b16 %v870, %v866
        %v983 = vpack.c.b16 %v871, %v867
        %v984 = vpack.c.b16 %v872, %v868
        %v985 = vpack.c.b16 %v877, %v873
        %v986 = vpack.c.b16 %v878, %v874
        %v987 = vpack.c.b16 %v879, %v875
        %v988 = vpack.c.b16 %v880, %v876
        %v989 = vpack.c.b16 %v885, %v881
        %v990 = vpack.c.b16 %v886, %v882
        %v991 = vpack.c.b16 %v887, %v883
        %v992 = vpack.c.b16 %v888, %v884
        %v993 = vpack.c.b16 %v893, %v889
        %v994 = vpack.c.b16 %v894, %v890
        %v995 = vpack.c.b16 %v895, %v891
        %v996 = vpack.c.b16 %v896, %v892
        %v997 = vpack.c.b16 %v901, %v897
        %v998 = vpack.c.b16 %v902, %v898
        %v999 = vpack.c.b16 %v903, %v899
        %v1000 = vpack.c.b16 %v904, %v900
        %v1001 = vpack.c.b16 %v909, %v905
        %v1002 = vpack.c.b16 %v910, %v906
        %v1003 = vpack.c.b16 %v911, %v907
        %v1004 = vpack.c.b16 %v912, %v908
        %v1005 = vpack.c.b16 %v917, %v913
        %v1006 = vpack.c.b16 %v918, %v914
        %v1007 = vpack.c.b16 %v919, %v915
        %v1008 = vpack.c.b16 %v920, %v916
        %v1009 = vpack.c.b16 %v925, %v921
        %v1010 = vpack.c.b16 %v926, %v922
        %v1011 = vpack.c.b16 %v927, %v923
        %v1012 = vpack.c.b16 %v928, %v924
        %v1013 = vpack.c.b16 %v933, %v929
        %v1014 = vpack.c.b16 %v934, %v930
        %v1015 = vpack.c.b16 %v935, %v931
        %v1016 = vpack.c.b16 %v936, %v932
        %v1017 = vpack.c.b16 %v941, %v937
        %v1018 = vpack.c.b16 %v942, %v938
        %v1019 = vpack.c.b16 %v943, %v939
        %v1020 = vpack.c.b16 %v944, %v940
        %v1021 = vpack.c.b16 %v949, %v945
        %v1022 = vpack.c.b16 %v950, %v946
        %v1023 = vpack.c.b16 %v951, %v947
        %v1024 = vpack.c.b16 %v952, %v948
        %v1025 = vpack.c.b16 %v957, %v953
        %v1026 = vpack.c.b16 %v958, %v954
        %v1027 = vpack.c.b16 %v959, %v955
        %v1028 = vpack.c.b16 %v960, %v956
        %v1029 = vpack.c.b16 %v965, %v961
        %v1030 = vpack.c.b16 %v966, %v962
        %v1031 = vpack.c.b16 %v967, %v963
        %v1032 = vpack.c.b16 %v968, %v964
        %1097 = vmatprep.subr.bf16.mxu0 %v970
        %1098 = vmatpush1.bf16.msra.mxu0 %v969
        %1099 = vmatprep.subr.bf16.mxu0 %v974
        %1100 = vmatpush1.bf16.msra.mxu0 %v973
        %1101 = vmatprep.subr.bf16.mxu0 %v978
        %1102 = vmatpush1.bf16.msra.mxu0 %v977
        %1103 = vmatprep.subr.bf16.mxu0 %v982
        %1104 = vmatpush1.bf16.msra.mxu0 %v981
        %1105 = vmatprep.subr.bf16.mxu0 %v986
        %1106 = vmatpush1.bf16.msra.mxu0 %v985
        %1107 = vmatprep.subr.bf16.mxu0 %v990
        %1108 = vmatpush1.bf16.msra.mxu0 %v989
        %1109 = vmatprep.subr.bf16.mxu0 %v994
        %1110 = vmatpush1.bf16.msra.mxu0 %v993
        %1111 = vmatprep.subr.bf16.mxu0 %v998
        %1112 = vmatpush1.bf16.msra.mxu0 %v997
        %1113 = vmatprep.subr.bf16.mxu0 %v1002
        %1114 = vmatpush1.bf16.msra.mxu0 %v1001
        %1115 = vmatprep.subr.bf16.mxu0 %v1006
        %1116 = vmatpush1.bf16.msra.mxu0 %v1005
        %1117 = vmatprep.subr.bf16.mxu0 %v1010
        %1118 = vmatpush1.bf16.msra.mxu0 %v1009
        %1119 = vmatprep.subr.bf16.mxu0 %v1014
        %1120 = vmatpush1.bf16.msra.mxu0 %v1013
        %1121 = vmatprep.subr.bf16.mxu0 %v1018
        %1122 = vmatpush1.bf16.msra.mxu0 %v1017
        %1123 = vmatprep.subr.bf16.mxu0 %v1022
        %1124 = vmatpush1.bf16.msra.mxu0 %v1021
        %1125 = vmatprep.subr.bf16.mxu0 %v1026
        %1126 = vmatpush1.bf16.msra.mxu0 %v1025
        %1127 = vmatprep.subr.bf16.mxu0 %v1030
        %1128 = vmatpush1.bf16.msra.mxu0 %v1029
        %1129 = vmatprep.mubr.bf16.mxu0 %v770
        %1130 = vmatmul.mubr.bf16.gmra.mrb[0].mxu0 %v769
        %v1131 = vpop.f32.mrb[0].mxu0
        %v1132 = vadd.f32 %v740, %v1131
        %v1133 = vpop.f32.mrb[0].mxu0
        %v1134 = vadd.f32 %v744, %v1133
        %v1135 = vpop.f32.mrb[0].mxu0
        %v1136 = vadd.f32 %v740, %v1135
        %v1137 = vpop.f32.mrb[0].mxu0
        %v1138 = vadd.f32 %v744, %v1137
        %1139 = vmatprep.mubr.bf16.mxu0 %v772
        %1140 = vmatmul.mubr.bf16.gmra.mrb[0].mxu0 %v771
        %v1141 = vpop.f32.mrb[0].mxu0
        %v1142 = vadd.f32 %v740, %v1141
        %v1143 = vpop.f32.mrb[0].mxu0
        %v1144 = vadd.f32 %v744, %v1143
        %v1145 = vpop.f32.mrb[0].mxu0
        %v1146 = vadd.f32 %v740, %v1145
        %v1147 = vpop.f32.mrb[0].mxu0
        %v1148 = vadd.f32 %v744, %v1147
        %1149 = vdwg.mxu0
        %1150 = vmatprep.subr.bf16.mxu0 %v972
        %1151 = vmatpush1.bf16.msra.mxu0 %v971
        %1152 = vmatprep.subr.bf16.mxu0 %v976
        %1153 = vmatpush1.bf16.msra.mxu0 %v975
        %1154 = vmatprep.subr.bf16.mxu0 %v980
        %1155 = vmatpush1.bf16.msra.mxu0 %v979
        %1156 = vmatprep.subr.bf16.mxu0 %v984
        %1157 = vmatpush1.bf16.msra.mxu0 %v983
        %1158 = vmatprep.subr.bf16.mxu0 %v988
        %1159 = vmatpush1.bf16.msra.mxu0 %v987
        %1160 = vmatprep.subr.bf16.mxu0 %v992
        %1161 = vmatpush1.bf16.msra.mxu0 %v991
        %1162 = vmatprep.subr.bf16.mxu0 %v996
        %1163 = vmatpush1.bf16.msra.mxu0 %v995
        %1164 = vmatprep.subr.bf16.mxu0 %v1000
        %1165 = vmatpush1.bf16.msra.mxu0 %v999
        %1166 = vmatprep.subr.bf16.mxu0 %v1004
        %1167 = vmatpush1.bf16.msra.mxu0 %v1003
        %1168 = vmatprep.subr.bf16.mxu0 %v1008
        %1169 = vmatpush1.bf16.msra.mxu0 %v1007
        %1170 = vmatprep.subr.bf16.mxu0 %v1012
        %1171 = vmatpush1.bf16.msra.mxu0 %v1011
        %1172 = vmatprep.subr.bf16.mxu0 %v1016
        %1173 = vmatpush1.bf16.msra.mxu0 %v1015
        %1174 = vmatprep.subr.bf16.mxu0 %v1020
        %1175 = vmatpush1.bf16.msra.mxu0 %v1019
        %1176 = vmatprep.subr.bf16.mxu0 %v1024
        %1177 = vmatpush1.bf16.msra.mxu0 %v1023
        %1178 = vmatprep.subr.bf16.mxu0 %v1028
        %1179 = vmatpush1.bf16.msra.mxu0 %v1027
        %1180 = vmatprep.subr.bf16.mxu0 %v1032
        %1181 = vmatpush1.bf16.msra.mxu0 %v1031
        %1182 = vmatprep.mubr.bf16.mxu0 %v770
        %1183 = vmatmul.mubr.bf16.gmra.mrb[0].mxu0 %v769
        %v1184 = vpop.f32.mrb[0].mxu0
        %v1185 = vadd.f32 %v748, %v1184
        %v1186 = vpop.f32.mrb[0].mxu0
        %v1187 = vadd.f32 %v752, %v1186
        %v1188 = vpop.f32.mrb[0].mxu0
        %v1189 = vadd.f32 %v748, %v1188
        %v1190 = vpop.f32.mrb[0].mxu0
        %v1191 = vadd.f32 %v752, %v1190
        %1192 = vmatprep.mubr.bf16.mxu0 %v772
        %1193 = vmatmul.mubr.bf16.gmra.mrb[0].mxu0 %v771
        %v1194 = vpop.f32.mrb[0].mxu0
        %v1195 = vadd.f32 %v748, %v1194
        %v1196 = vpop.f32.mrb[0].mxu0
        %v1197 = vadd.f32 %v752, %v1196
        %v1198 = vpop.f32.mrb[0].mxu0
        %v1199 = vadd.f32 %v748, %v1198
        %v1200 = vpop.f32.mrb[0].mxu0
        %v1201 = vadd.f32 %v752, %v1200
        %1202 = vdwg.mxu0
        %v1203 = vmul.f32 %v663, 0.17677669
        %v1204 = vmul.f32 %v665, 0.17677669
        %v1205 = vmul.f32 %v667, 0.17677669
        %v1206 = vmul.f32 %v669, 0.17677669
        %v1207 = vpack.c.bf16 %v1205, %v1203
        %v1208 = vpack.c.bf16 %v1206, %v1204
        %v1209 = vpack.c.bf16 %v1136, %v1132
        %v1210 = vpack.c.bf16 %v1138, %v1134
        %v1211 = vpack.c.bf16 %v1146, %v1142
        %v1212 = vpack.c.bf16 %v1148, %v1144
        %v1213 = vpack.c.bf16 %v1189, %v1185
        %v1214 = vpack.c.bf16 %v1191, %v1187
        %v1215 = vpack.c.bf16 %v1199, %v1195
        %v1216 = vpack.c.bf16 %v1201, %v1197
        %vm1217 = vcmask 261120
        %v1219 = vsel %vm1217, %v1207, 0
        %v1222 = vsel %vm1217, %v1209, 0
        %v1225 = vsel %vm1217, %v1211, 0
        %1227 = vmatprep.subr.bf16.mxu0 0
        %1228 = vmatpush1.bf16.xpose.msra.mxu0 %v1222
        %1229 = vmatprep.subr.bf16.mxu0 0
        %1230 = vmatpush1.bf16.xpose.msra.mxu0 %v1225
        %1231 = vmatprep.subr.bf16.mxu0 0
        %1232 = vmatpush1.bf16.xpose.msra.mxu0 0
        %1233 = vmatprep.subr.bf16.mxu0 0
        %1234 = vmatpush1.bf16.xpose.msra.mxu0 0
        %1235 = vmatprep.subr.bf16.mxu0 0
        %1236 = vmatpush1.bf16.xpose.msra.mxu0 0
        %1237 = vmatprep.subr.bf16.mxu0 0
        %1238 = vmatpush1.bf16.xpose.msra.mxu0 0
        %1239 = vmatprep.subr.bf16.mxu0 0
        %1240 = vmatpush1.bf16.xpose.msra.mxu0 0
        %1241 = vmatprep.subr.bf16.mxu0 0
        %1242 = vmatpush1.bf16.xpose.msra.mxu0 0
        %1243 = vmatprep.subr.bf16.mxu0 0
        %1244 = vmatpush1.bf16.xpose.msra.mxu0 0
        %1245 = vmatprep.subr.bf16.mxu0 0
        %1246 = vmatpush1.bf16.xpose.msra.mxu0 0
        %1247 = vmatprep.subr.bf16.mxu0 0
        %1248 = vmatpush1.bf16.xpose.msra.mxu0 0
        %1249 = vmatprep.subr.bf16.mxu0 0
        %1250 = vmatpush1.bf16.xpose.msra.mxu0 0
        %1251 = vmatprep.subr.bf16.mxu0 0
        %1252 = vmatpush1.bf16.xpose.msra.mxu0 0
        %1253 = vmatprep.subr.bf16.mxu0 0
        %1254 = vmatpush1.bf16.xpose.msra.mxu0 0
        %1255 = vmatprep.subr.bf16.mxu0 0
        %1256 = vmatpush1.bf16.xpose.msra.mxu0 0
        %1257 = vmatprep.subr.bf16.mxu0 0
        %1258 = vmatpush1.bf16.xpose.msra.mxu0 0
        %1259 = vmatprep.mubr.bf16.mxu0 0
        %1260 = vmatmul.mubr.bf16.gmra.mrb[0].mxu0 %v1219
        %v1261 = vpop.f32.mrb[0].mxu0
        %v1262 = vadd.f32 0.0, %v1261
        %v1263 = vpop.f32.mrb[0].mxu0
        %v1264 = vpop.f32.mrb[0].mxu0
        %v1265 = vadd.f32 0.0, %v1264
        %v1266 = vpop.f32.mrb[0].mxu0
        %1267 = vdwg.mxu0
        %v1268 = vsel %vm1217, %v1262, -inf
        %1269 = vmax.xlane.f32.xlu0 %v1268
        %v1270 = vpop.xlane.xlu0 %1269
        %v1271 = vsel %vm1217, %v1265, -inf
        %1272 = vmax.xlane.f32.xlu0 %v1271
        %v1273 = vpop.xlane.xlu0 %1272
        %v1274 = vsub.f32 %v1262, %v1270
        %v1275 = vsub.f32 %v1265, %v1273
        %v1276 = vmul.f32 %v1274, 1.442695
        %v1277 = vpow.pop %v1276
        %v1278 = vmul.f32 %v1275, 1.442695
        %v1279 = vpow.pop %v1278
        %v1280 = vsel %vm1217, %v1277, 0.0
        %1281 = vadd.xlane.f32.xlu0 %v1280
        %v1282 = vpop.xlane.xlu0 %1281
        %v1283 = vsel %vm1217, %v1279, 0.0
        %1284 = vadd.xlane.f32.xlu0 %v1283
        %v1285 = vpop.xlane.xlu0 %1284
        %v1286 = vrcp.pop %v1282
        %v1287 = vrcp.pop %v1285
        %v1288 = vpack.c.bf16 %v1279, %v1277
        %v1290 = vsel %vm1217, %v1288, 0
        %1292 = vmatprep.subr.bf16.mxu0 0
        %1293 = vmatpush1.bf16.msra.mxu0 %v1213
        %1294 = vmatprep.subr.bf16.mxu0 0
        %1295 = vmatpush1.bf16.msra.mxu0 %v1215
        %1296 = vmatprep.subr.bf16.mxu0 0
        %1297 = vmatpush1.bf16.msra.mxu0 0
        %1298 = vmatprep.subr.bf16.mxu0 0
        %1299 = vmatpush1.bf16.msra.mxu0 0
        %1300 = vmatprep.subr.bf16.mxu0 0
        %1301 = vmatpush1.bf16.msra.mxu0 0
        %1302 = vmatprep.subr.bf16.mxu0 0
        %1303 = vmatpush1.bf16.msra.mxu0 0
        %1304 = vmatprep.subr.bf16.mxu0 0
        %1305 = vmatpush1.bf16.msra.mxu0 0
        %1306 = vmatprep.subr.bf16.mxu0 0
        %1307 = vmatpush1.bf16.msra.mxu0 0
        %1308 = vmatprep.subr.bf16.mxu0 0
        %1309 = vmatpush1.bf16.msra.mxu0 0
        %1310 = vmatprep.subr.bf16.mxu0 0
        %1311 = vmatpush1.bf16.msra.mxu0 0
        %1312 = vmatprep.subr.bf16.mxu0 0
        %1313 = vmatpush1.bf16.msra.mxu0 0
        %1314 = vmatprep.subr.bf16.mxu0 0
        %1315 = vmatpush1.bf16.msra.mxu0 0
        %1316 = vmatprep.subr.bf16.mxu0 0
        %1317 = vmatpush1.bf16.msra.mxu0 0
        %1318 = vmatprep.subr.bf16.mxu0 0
        %1319 = vmatpush1.bf16.msra.mxu0 0
        %1320 = vmatprep.subr.bf16.mxu0 0
        %1321 = vmatpush1.bf16.msra.mxu0 0
        %1322 = vmatprep.subr.bf16.mxu0 0
        %1323 = vmatpush1.bf16.msra.mxu0 0
        %1324 = vmatprep.mubr.bf16.mxu0 0
        %1325 = vmatmul.mubr.bf16.gmra.mrb[0].mxu0 %v1290
        %v1326 = vpop.f32.mrb[0].mxu0
        %v1327 = vadd.f32 0.0, %v1326
        %v1328 = vpop.f32.mrb[0].mxu0
        %v1329 = vpop.f32.mrb[0].mxu0
        %v1330 = vadd.f32 0.0, %v1329
        %v1331 = vpop.f32.mrb[0].mxu0
        %1332 = vdwg.mxu0
        %v1333 = vmul.f32 %v1327, %v1286
        %v1334 = vmul.f32 %v1330, %v1287
        %v1335 = vpack.c.bf16 %v1334, %v1333
        %v1336 = vld [vmem:[#allocation10] sm:$0xff]
        %v1337 = vld [vmem:[#allocation10 + $0x8] sm:$0xff]
        %v1338 = vld [vmem:[#allocation10 + $0x10] sm:$0xff]
        %v1339 = vld [vmem:[#allocation10 + $0x18] sm:$0xff]
        %1341 = vrot.lane.b32.xlu0 %v1207, 96
        %v1342 = vpop.permute.xlu0 %1341
        %1345 = vrot.lane.b32.xlu0 %v1209, 96
        %v1346 = vpop.permute.xlu0 %1345
        %1347 = vrot.lane.b32.xlu0 %v1211, 96
        %v1348 = vpop.permute.xlu0 %1347
        %v1350 = vsel %vm1217, %v1342, 0
        %v1353 = vsel %vm1217, %v1346, 0
        %v1356 = vsel %vm1217, %v1348, 0
        %1358 = vmatprep.subr.bf16.mxu0 0
        %1359 = vmatpush1.bf16.xpose.msra.mxu0 %v1353
        %1360 = vmatprep.subr.bf16.mxu0 0
        %1361 = vmatpush1.bf16.xpose.msra.mxu0 %v1356
        %1362 = vmatprep.subr.bf16.mxu0 0
        %1363 = vmatpush1.bf16.xpose.msra.mxu0 0
        %1364 = vmatprep.subr.bf16.mxu0 0
        %1365 = vmatpush1.bf16.xpose.msra.mxu0 0
        %1366 = vmatprep.subr.bf16.mxu0 0
        %1367 = vmatpush1.bf16.xpose.msra.mxu0 0
        %1368 = vmatprep.subr.bf16.mxu0 0
        %1369 = vmatpush1.bf16.xpose.msra.mxu0 0
        %1370 = vmatprep.subr.bf16.mxu0 0
        %1371 = vmatpush1.bf16.xpose.msra.mxu0 0
        %1372 = vmatprep.subr.bf16.mxu0 0
        %1373 = vmatpush1.bf16.xpose.msra.mxu0 0
        %1374 = vmatprep.subr.bf16.mxu0 0
        %1375 = vmatpush1.bf16.xpose.msra.mxu0 0
        %1376 = vmatprep.subr.bf16.mxu0 0
        %1377 = vmatpush1.bf16.xpose.msra.mxu0 0
        %1378 = vmatprep.subr.bf16.mxu0 0
        %1379 = vmatpush1.bf16.xpose.msra.mxu0 0
        %1380 = vmatprep.subr.bf16.mxu0 0
        %1381 = vmatpush1.bf16.xpose.msra.mxu0 0
        %1382 = vmatprep.subr.bf16.mxu0 0
        %1383 = vmatpush1.bf16.xpose.msra.mxu0 0
        %1384 = vmatprep.subr.bf16.mxu0 0
        %1385 = vmatpush1.bf16.xpose.msra.mxu0 0
        %1386 = vmatprep.subr.bf16.mxu0 0
        %1387 = vmatpush1.bf16.xpose.msra.mxu0 0
        %1388 = vmatprep.subr.bf16.mxu0 0
        %1389 = vmatpush1.bf16.xpose.msra.mxu0 0
        %1390 = vmatprep.mubr.bf16.mxu0 0
        %1391 = vmatmul.mubr.bf16.gmra.mrb[0].mxu0 %v1350
        %v1392 = vpop.f32.mrb[0].mxu0
        %v1393 = vadd.f32 0.0, %v1392
        %v1394 = vpop.f32.mrb[0].mxu0
        %v1395 = vpop.f32.mrb[0].mxu0
        %v1396 = vadd.f32 0.0, %v1395
        %v1397 = vpop.f32.mrb[0].mxu0
        %1398 = vdwg.mxu0
        %v1399 = vsel %vm1217, %v1393, -inf
        %1400 = vmax.xlane.f32.xlu0 %v1399
        %v1401 = vpop.xlane.xlu0 %1400
        %v1402 = vsel %vm1217, %v1396, -inf
        %1403 = vmax.xlane.f32.xlu0 %v1402
        %v1404 = vpop.xlane.xlu0 %1403
        %v1405 = vsub.f32 %v1393, %v1401
        %v1406 = vsub.f32 %v1396, %v1404
        %v1407 = vmul.f32 %v1405, 1.442695
        %v1408 = vpow.pop %v1407
        %v1409 = vmul.f32 %v1406, 1.442695
        %v1410 = vpow.pop %v1409
        %v1411 = vsel %vm1217, %v1408, 0.0
        %1412 = vadd.xlane.f32.xlu0 %v1411
        %v1413 = vpop.xlane.xlu0 %1412
        %v1414 = vsel %vm1217, %v1410, 0.0
        %1415 = vadd.xlane.f32.xlu0 %v1414
        %v1416 = vpop.xlane.xlu0 %1415
        %v1417 = vrcp.pop %v1413
        %v1418 = vrcp.pop %v1416
        %v1419 = vpack.c.bf16 %v1410, %v1408
        %1422 = vrot.lane.b32.xlu0 %v1213, 96
        %v1423 = vpop.permute.xlu0 %1422
        %1424 = vrot.lane.b32.xlu0 %v1215, 96
        %v1425 = vpop.permute.xlu0 %1424
        %v1429 = vsel %vm1217, %v1419, 0
        %1431 = vmatprep.subr.bf16.mxu0 0
        %1432 = vmatpush1.bf16.msra.mxu0 %v1423
        %1433 = vmatprep.subr.bf16.mxu0 0
        %1434 = vmatpush1.bf16.msra.mxu0 %v1425
        %1435 = vmatprep.subr.bf16.mxu0 0
        %1436 = vmatpush1.bf16.msra.mxu0 0
        %1437 = vmatprep.subr.bf16.mxu0 0
        %1438 = vmatpush1.bf16.msra.mxu0 0
        %1439 = vmatprep.subr.bf16.mxu0 0
        %1440 = vmatpush1.bf16.msra.mxu0 0
        %1441 = vmatprep.subr.bf16.mxu0 0
        %1442 = vmatpush1.bf16.msra.mxu0 0
        %1443 = vmatprep.subr.bf16.mxu0 0
        %1444 = vmatpush1.bf16.msra.mxu0 0
        %1445 = vmatprep.subr.bf16.mxu0 0
        %1446 = vmatpush1.bf16.msra.mxu0 0
        %1447 = vmatprep.subr.bf16.mxu0 0
        %1448 = vmatpush1.bf16.msra.mxu0 0
        %1449 = vmatprep.subr.bf16.mxu0 0
        %1450 = vmatpush1.bf16.msra.mxu0 0
        %1451 = vmatprep.subr.bf16.mxu0 0
        %1452 = vmatpush1.bf16.msra.mxu0 0
        %1453 = vmatprep.subr.bf16.mxu0 0
        %1454 = vmatpush1.bf16.msra.mxu0 0
        %1455 = vmatprep.subr.bf16.mxu0 0
        %1456 = vmatpush1.bf16.msra.mxu0 0
        %1457 = vmatprep.subr.bf16.mxu0 0
        %1458 = vmatpush1.bf16.msra.mxu0 0
        %1459 = vmatprep.subr.bf16.mxu0 0
        %1460 = vmatpush1.bf16.msra.mxu0 0
        %1461 = vmatprep.subr.bf16.mxu0 0
        %1462 = vmatpush1.bf16.msra.mxu0 0
        %1463 = vmatprep.mubr.bf16.mxu0 0
        %1464 = vmatmul.mubr.bf16.gmra.mrb[0].mxu0 %v1429
        %v1465 = vpop.f32.mrb[0].mxu0
        %v1466 = vadd.f32 0.0, %v1465
        %v1467 = vpop.f32.mrb[0].mxu0
        %v1468 = vpop.f32.mrb[0].mxu0
        %v1469 = vadd.f32 0.0, %v1468
        %v1470 = vpop.f32.mrb[0].mxu0
        %1471 = vdwg.mxu0
        %v1472 = vmul.f32 %v1466, %v1417
        %v1473 = vmul.f32 %v1469, %v1418
        %v1474 = vpack.c.bf16 %v1473, %v1472
        %v1475 = vld [vmem:[#allocation10 + $0x20] sm:$0xff]
        %v1476 = vld [vmem:[#allocation10 + $0x28] sm:$0xff]
        %v1477 = vld [vmem:[#allocation10 + $0x30] sm:$0xff]
        %v1478 = vld [vmem:[#allocation10 + $0x38] sm:$0xff]
        %v1483 = vunpack.c.l.b16 %v1475
        %v1484 = vunpack.c.h.b16 %v1475
        %v1485 = vunpack.c.l.b16 %v1476
        %v1486 = vunpack.c.h.b16 %v1476
        %v1487 = vunpack.c.l.b16 %v1477
        %v1488 = vunpack.c.h.b16 %v1477
        %v1489 = vunpack.c.l.b16 %v1478
        %v1490 = vunpack.c.h.b16 %v1478
        %v1491 = vpack.c.b16 %v1485, %v1483
        %v1492 = vpack.c.b16 %v1486, %v1484
        %v1493 = vpack.c.b16 %v1489, %v1487
        %v1494 = vpack.c.b16 %v1490, %v1488
        %v1500 = vsel %vm1217, %v1474, 0
        %1502 = vmatprep.subr.bf16.mxu0 %v1492
        %1503 = vmatpush1.bf16.msra.mxu0 %v1491
        %1504 = vmatprep.subr.bf16.mxu0 %v1494
        %1505 = vmatpush1.bf16.msra.mxu0 %v1493
        %1506 = vmatprep.subr.bf16.mxu0 0
        %1507 = vmatpush1.bf16.msra.mxu0 0
        %1508 = vmatprep.subr.bf16.mxu0 0
        %1509 = vmatpush1.bf16.msra.mxu0 0
        %1510 = vmatprep.subr.bf16.mxu0 0
        %1511 = vmatpush1.bf16.msra.mxu0 0
        %1512 = vmatprep.subr.bf16.mxu0 0
        %1513 = vmatpush1.bf16.msra.mxu0 0
        %1514 = vmatprep.subr.bf16.mxu0 0
        %1515 = vmatpush1.bf16.msra.mxu0 0
        %1516 = vmatprep.subr.bf16.mxu0 0
        %1517 = vmatpush1.bf16.msra.mxu0 0
        %1518 = vmatprep.subr.bf16.mxu0 0
        %1519 = vmatpush1.bf16.msra.mxu0 0
        %1520 = vmatprep.subr.bf16.mxu0 0
        %1521 = vmatpush1.bf16.msra.mxu0 0
        %1522 = vmatprep.subr.bf16.mxu0 0
        %1523 = vmatpush1.bf16.msra.mxu0 0
        %1524 = vmatprep.subr.bf16.mxu0 0
        %1525 = vmatpush1.bf16.msra.mxu0 0
        %1526 = vmatprep.subr.bf16.mxu0 0
        %1527 = vmatpush1.bf16.msra.mxu0 0
        %1528 = vmatprep.subr.bf16.mxu0 0
        %1529 = vmatpush1.bf16.msra.mxu0 0
        %1530 = vmatprep.subr.bf16.mxu0 0
        %1531 = vmatpush1.bf16.msra.mxu0 0
        %1532 = vmatprep.subr.bf16.mxu0 0
        %1533 = vmatpush1.bf16.msra.mxu0 0
        %1534 = vmatprep.mubr.bf16.mxu0 0
        %1535 = vmatmul.mubr.bf16.gmra.mrb[0].mxu0 %v1500
        %v1536 = vpop.f32.mrb[0].mxu0
        %v1537 = vadd.f32 0.0, %v1536
        %v1538 = vpop.f32.mrb[0].mxu0
        %v1539 = vadd.f32 0.0, %v1538
        %v1540 = vpop.f32.mrb[0].mxu0
        %v1541 = vadd.f32 0.0, %v1540
        %v1542 = vpop.f32.mrb[0].mxu0
        %v1543 = vadd.f32 0.0, %v1542
        %1544 = vdwg.mxu0
        %v1549 = vunpack.c.l.b16 %v1336
        %v1550 = vunpack.c.h.b16 %v1336
        %v1551 = vunpack.c.l.b16 %v1337
        %v1552 = vunpack.c.h.b16 %v1337
        %v1553 = vunpack.c.l.b16 %v1338
        %v1554 = vunpack.c.h.b16 %v1338
        %v1555 = vunpack.c.l.b16 %v1339
        %v1556 = vunpack.c.h.b16 %v1339
        %v1557 = vpack.c.b16 %v1551, %v1549
        %v1558 = vpack.c.b16 %v1552, %v1550
        %v1559 = vpack.c.b16 %v1555, %v1553
        %v1560 = vpack.c.b16 %v1556, %v1554
        %v1566 = vsel %vm1217, %v1335, 0
        %1568 = vmatprep.subr.bf16.mxu0 %v1558
        %1569 = vmatpush1.bf16.msra.mxu0 %v1557
        %1570 = vmatprep.subr.bf16.mxu0 %v1560
        %1571 = vmatpush1.bf16.msra.mxu0 %v1559
        %1572 = vmatprep.subr.bf16.mxu0 0
        %1573 = vmatpush1.bf16.msra.mxu0 0
        %1574 = vmatprep.subr.bf16.mxu0 0
        %1575 = vmatpush1.bf16.msra.mxu0 0
        %1576 = vmatprep.subr.bf16.mxu0 0
        %1577 = vmatpush1.bf16.msra.mxu0 0
        %1578 = vmatprep.subr.bf16.mxu0 0
        %1579 = vmatpush1.bf16.msra.mxu0 0
        %1580 = vmatprep.subr.bf16.mxu0 0
        %1581 = vmatpush1.bf16.msra.mxu0 0
        %1582 = vmatprep.subr.bf16.mxu0 0
        %1583 = vmatpush1.bf16.msra.mxu0 0
        %1584 = vmatprep.subr.bf16.mxu0 0
        %1585 = vmatpush1.bf16.msra.mxu0 0
        %1586 = vmatprep.subr.bf16.mxu0 0
        %1587 = vmatpush1.bf16.msra.mxu0 0
        %1588 = vmatprep.subr.bf16.mxu0 0
        %1589 = vmatpush1.bf16.msra.mxu0 0
        %1590 = vmatprep.subr.bf16.mxu0 0
        %1591 = vmatpush1.bf16.msra.mxu0 0
        %1592 = vmatprep.subr.bf16.mxu0 0
        %1593 = vmatpush1.bf16.msra.mxu0 0
        %1594 = vmatprep.subr.bf16.mxu0 0
        %1595 = vmatpush1.bf16.msra.mxu0 0
        %1596 = vmatprep.subr.bf16.mxu0 0
        %1597 = vmatpush1.bf16.msra.mxu0 0
        %1598 = vmatprep.subr.bf16.mxu0 0
        %1599 = vmatpush1.bf16.msra.mxu0 0
        %1600 = vmatprep.mubr.bf16.mxu0 0
        %1601 = vmatmul.mubr.bf16.gmra.mrb[0].mxu0 %v1566
        %v1602 = vpop.f32.mrb[0].mxu0
        %v1603 = vadd.f32 %v1537, %v1602
        %v1604 = vpop.f32.mrb[0].mxu0
        %v1605 = vadd.f32 %v1539, %v1604
        %v1606 = vpop.f32.mrb[0].mxu0
        %v1607 = vadd.f32 %v1541, %v1606
        %v1608 = vpop.f32.mrb[0].mxu0
        %v1609 = vadd.f32 %v1543, %v1608
        %1610 = vdwg.mxu0
        %1611 = vrot.lane.b32.xlu0 %v1207, 64
        %v1612 = vpop.permute.xlu0 %1611
        %1613 = vrot.lane.b32.xlu0 %v1209, 64
        %v1614 = vpop.permute.xlu0 %1613
        %1615 = vrot.lane.b32.xlu0 %v1211, 64
        %v1616 = vpop.permute.xlu0 %1615
        %v1618 = vsel %vm1217, %v1612, 0
        %v1621 = vsel %vm1217, %v1614, 0
        %v1624 = vsel %vm1217, %v1616, 0
        %1626 = vmatprep.subr.bf16.mxu0 0
        %1627 = vmatpush1.bf16.xpose.msra.mxu0 %v1621
        %1628 = vmatprep.subr.bf16.mxu0 0
        %1629 = vmatpush1.bf16.xpose.msra.mxu0 %v1624
        %1630 = vmatprep.subr.bf16.mxu0 0
        %1631 = vmatpush1.bf16.xpose.msra.mxu0 0
        %1632 = vmatprep.subr.bf16.mxu0 0
        %1633 = vmatpush1.bf16.xpose.msra.mxu0 0
        %1634 = vmatprep.subr.bf16.mxu0 0
        %1635 = vmatpush1.bf16.xpose.msra.mxu0 0
        %1636 = vmatprep.subr.bf16.mxu0 0
        %1637 = vmatpush1.bf16.xpose.msra.mxu0 0
        %1638 = vmatprep.subr.bf16.mxu0 0
        %1639 = vmatpush1.bf16.xpose.msra.mxu0 0
        %1640 = vmatprep.subr.bf16.mxu0 0
        %1641 = vmatpush1.bf16.xpose.msra.mxu0 0
        %1642 = vmatprep.subr.bf16.mxu0 0
        %1643 = vmatpush1.bf16.xpose.msra.mxu0 0
        %1644 = vmatprep.subr.bf16.mxu0 0
        %1645 = vmatpush1.bf16.xpose.msra.mxu0 0
        %1646 = vmatprep.subr.bf16.mxu0 0
        %1647 = vmatpush1.bf16.xpose.msra.mxu0 0
        %1648 = vmatprep.subr.bf16.mxu0 0
        %1649 = vmatpush1.bf16.xpose.msra.mxu0 0
        %1650 = vmatprep.subr.bf16.mxu0 0
        %1651 = vmatpush1.bf16.xpose.msra.mxu0 0
        %1652 = vmatprep.subr.bf16.mxu0 0
        %1653 = vmatpush1.bf16.xpose.msra.mxu0 0
        %1654 = vmatprep.subr.bf16.mxu0 0
        %1655 = vmatpush1.bf16.xpose.msra.mxu0 0
        %1656 = vmatprep.subr.bf16.mxu0 0
        %1657 = vmatpush1.bf16.xpose.msra.mxu0 0
        %1658 = vmatprep.mubr.bf16.mxu0 0
        %1659 = vmatmul.mubr.bf16.gmra.mrb[0].mxu0 %v1618
        %v1660 = vpop.f32.mrb[0].mxu0
        %v1661 = vadd.f32 0.0, %v1660
        %v1662 = vpop.f32.mrb[0].mxu0
        %v1663 = vpop.f32.mrb[0].mxu0
        %v1664 = vadd.f32 0.0, %v1663
        %v1665 = vpop.f32.mrb[0].mxu0
        %1666 = vdwg.mxu0
        %v1667 = vsel %vm1217, %v1661, -inf
        %1668 = vmax.xlane.f32.xlu0 %v1667
        %v1669 = vpop.xlane.xlu0 %1668
        %v1670 = vsel %vm1217, %v1664, -inf
        %1671 = vmax.xlane.f32.xlu0 %v1670
        %v1672 = vpop.xlane.xlu0 %1671
        %v1673 = vsub.f32 %v1661, %v1669
        %v1674 = vsub.f32 %v1664, %v1672
        %v1675 = vmul.f32 %v1673, 1.442695
        %v1676 = vpow.pop %v1675
        %v1677 = vmul.f32 %v1674, 1.442695
        %v1678 = vpow.pop %v1677
        %v1679 = vsel %vm1217, %v1676, 0.0
        %1680 = vadd.xlane.f32.xlu0 %v1679
        %v1681 = vpop.xlane.xlu0 %1680
        %v1682 = vsel %vm1217, %v1678, 0.0
        %1683 = vadd.xlane.f32.xlu0 %v1682
        %v1684 = vpop.xlane.xlu0 %1683
        %v1685 = vrcp.pop %v1681
        %v1686 = vrcp.pop %v1684
        %v1687 = vpack.c.bf16 %v1678, %v1676
        %1688 = vrot.lane.b32.xlu0 %v1213, 64
        %v1689 = vpop.permute.xlu0 %1688
        %1690 = vrot.lane.b32.xlu0 %v1215, 64
        %v1691 = vpop.permute.xlu0 %1690
        %v1695 = vsel %vm1217, %v1687, 0
        %1697 = vmatprep.subr.bf16.mxu0 0
        %1698 = vmatpush1.bf16.msra.mxu0 %v1689
        %1699 = vmatprep.subr.bf16.mxu0 0
        %1700 = vmatpush1.bf16.msra.mxu0 %v1691
        %1701 = vmatprep.subr.bf16.mxu0 0
        %1702 = vmatpush1.bf16.msra.mxu0 0
        %1703 = vmatprep.subr.bf16.mxu0 0
        %1704 = vmatpush1.bf16.msra.mxu0 0
        %1705 = vmatprep.subr.bf16.mxu0 0
        %1706 = vmatpush1.bf16.msra.mxu0 0
        %1707 = vmatprep.subr.bf16.mxu0 0
        %1708 = vmatpush1.bf16.msra.mxu0 0
        %1709 = vmatprep.subr.bf16.mxu0 0
        %1710 = vmatpush1.bf16.msra.mxu0 0
        %1711 = vmatprep.subr.bf16.mxu0 0
        %1712 = vmatpush1.bf16.msra.mxu0 0
        %1713 = vmatprep.subr.bf16.mxu0 0
        %1714 = vmatpush1.bf16.msra.mxu0 0
        %1715 = vmatprep.subr.bf16.mxu0 0
        %1716 = vmatpush1.bf16.msra.mxu0 0
        %1717 = vmatprep.subr.bf16.mxu0 0
        %1718 = vmatpush1.bf16.msra.mxu0 0
        %1719 = vmatprep.subr.bf16.mxu0 0
        %1720 = vmatpush1.bf16.msra.mxu0 0
        %1721 = vmatprep.subr.bf16.mxu0 0
        %1722 = vmatpush1.bf16.msra.mxu0 0
        %1723 = vmatprep.subr.bf16.mxu0 0
        %1724 = vmatpush1.bf16.msra.mxu0 0
        %1725 = vmatprep.subr.bf16.mxu0 0
        %1726 = vmatpush1.bf16.msra.mxu0 0
        %1727 = vmatprep.subr.bf16.mxu0 0
        %1728 = vmatpush1.bf16.msra.mxu0 0
        %1729 = vmatprep.mubr.bf16.mxu0 0
        %1730 = vmatmul.mubr.bf16.gmra.mrb[0].mxu0 %v1695
        %v1731 = vpop.f32.mrb[0].mxu0
        %v1732 = vadd.f32 0.0, %v1731
        %v1733 = vpop.f32.mrb[0].mxu0
        %v1734 = vpop.f32.mrb[0].mxu0
        %v1735 = vadd.f32 0.0, %v1734
        %v1736 = vpop.f32.mrb[0].mxu0
        %1737 = vdwg.mxu0
        %v1738 = vmul.f32 %v1732, %v1685
        %v1739 = vmul.f32 %v1735, %v1686
        %v1740 = vpack.c.bf16 %v1739, %v1738
        %v1741 = vld [vmem:[#allocation10 + $0x40] sm:$0xff]
        %v1742 = vld [vmem:[#allocation10 + $0x48] sm:$0xff]
        %v1743 = vld [vmem:[#allocation10 + $0x50] sm:$0xff]
        %v1744 = vld [vmem:[#allocation10 + $0x58] sm:$0xff]
        %v1749 = vunpack.c.l.b16 %v1741
        %v1750 = vunpack.c.h.b16 %v1741
        %v1751 = vunpack.c.l.b16 %v1742
        %v1752 = vunpack.c.h.b16 %v1742
        %v1753 = vunpack.c.l.b16 %v1743
        %v1754 = vunpack.c.h.b16 %v1743
        %v1755 = vunpack.c.l.b16 %v1744
        %v1756 = vunpack.c.h.b16 %v1744
        %v1757 = vpack.c.b16 %v1751, %v1749
        %v1758 = vpack.c.b16 %v1752, %v1750
        %v1759 = vpack.c.b16 %v1755, %v1753
        %v1760 = vpack.c.b16 %v1756, %v1754
        %v1766 = vsel %vm1217, %v1740, 0
        %1768 = vmatprep.subr.bf16.mxu0 %v1758
        %1769 = vmatpush1.bf16.msra.mxu0 %v1757
        %1770 = vmatprep.subr.bf16.mxu0 %v1760
        %1771 = vmatpush1.bf16.msra.mxu0 %v1759
        %1772 = vmatprep.subr.bf16.mxu0 0
        %1773 = vmatpush1.bf16.msra.mxu0 0
        %1774 = vmatprep.subr.bf16.mxu0 0
        %1775 = vmatpush1.bf16.msra.mxu0 0
        %1776 = vmatprep.subr.bf16.mxu0 0
        %1777 = vmatpush1.bf16.msra.mxu0 0
        %1778 = vmatprep.subr.bf16.mxu0 0
        %1779 = vmatpush1.bf16.msra.mxu0 0
        %1780 = vmatprep.subr.bf16.mxu0 0
        %1781 = vmatpush1.bf16.msra.mxu0 0
        %1782 = vmatprep.subr.bf16.mxu0 0
        %1783 = vmatpush1.bf16.msra.mxu0 0
        %1784 = vmatprep.subr.bf16.mxu0 0
        %1785 = vmatpush1.bf16.msra.mxu0 0
        %1786 = vmatprep.subr.bf16.mxu0 0
        %1787 = vmatpush1.bf16.msra.mxu0 0
        %1788 = vmatprep.subr.bf16.mxu0 0
        %1789 = vmatpush1.bf16.msra.mxu0 0
        %1790 = vmatprep.subr.bf16.mxu0 0
        %1791 = vmatpush1.bf16.msra.mxu0 0
        %1792 = vmatprep.subr.bf16.mxu0 0
        %1793 = vmatpush1.bf16.msra.mxu0 0
        %1794 = vmatprep.subr.bf16.mxu0 0
        %1795 = vmatpush1.bf16.msra.mxu0 0
        %1796 = vmatprep.subr.bf16.mxu0 0
        %1797 = vmatpush1.bf16.msra.mxu0 0
        %1798 = vmatprep.subr.bf16.mxu0 0
        %1799 = vmatpush1.bf16.msra.mxu0 0
        %1800 = vmatprep.mubr.bf16.mxu0 0
        %1801 = vmatmul.mubr.bf16.gmra.mrb[0].mxu0 %v1766
        %v1802 = vpop.f32.mrb[0].mxu0
        %v1803 = vadd.f32 0.0, %v1802
        %v1804 = vpop.f32.mrb[0].mxu0
        %v1805 = vadd.f32 0.0, %v1804
        %v1806 = vpop.f32.mrb[0].mxu0
        %v1807 = vadd.f32 0.0, %v1806
        %v1808 = vpop.f32.mrb[0].mxu0
        %v1809 = vadd.f32 0.0, %v1808
        %1810 = vdwg.mxu0
        %v1811 = vadd.f32 %v1603, %v1803
        %v1812 = vadd.f32 %v1605, %v1805
        %v1813 = vadd.f32 %v1607, %v1807
        %v1814 = vadd.f32 %v1609, %v1809
        %1815 = vrot.lane.b32.xlu0 %v1207, 32
        %v1816 = vpop.permute.xlu0 %1815
        %1817 = vrot.lane.b32.xlu0 %v1209, 32
        %v1818 = vpop.permute.xlu0 %1817
        %1819 = vrot.lane.b32.xlu0 %v1211, 32
        %v1820 = vpop.permute.xlu0 %1819
        %v1822 = vsel %vm1217, %v1816, 0
        %v1825 = vsel %vm1217, %v1818, 0
        %v1828 = vsel %vm1217, %v1820, 0
        %1830 = vmatprep.subr.bf16.mxu0 0
        %1831 = vmatpush1.bf16.xpose.msra.mxu0 %v1825
        %1832 = vmatprep.subr.bf16.mxu0 0
        %1833 = vmatpush1.bf16.xpose.msra.mxu0 %v1828
        %1834 = vmatprep.subr.bf16.mxu0 0
        %1835 = vmatpush1.bf16.xpose.msra.mxu0 0
        %1836 = vmatprep.subr.bf16.mxu0 0
        %1837 = vmatpush1.bf16.xpose.msra.mxu0 0
        %1838 = vmatprep.subr.bf16.mxu0 0
        %1839 = vmatpush1.bf16.xpose.msra.mxu0 0
        %1840 = vmatprep.subr.bf16.mxu0 0
        %1841 = vmatpush1.bf16.xpose.msra.mxu0 0
        %1842 = vmatprep.subr.bf16.mxu0 0
        %1843 = vmatpush1.bf16.xpose.msra.mxu0 0
        %1844 = vmatprep.subr.bf16.mxu0 0
        %1845 = vmatpush1.bf16.xpose.msra.mxu0 0
        %1846 = vmatprep.subr.bf16.mxu0 0
        %1847 = vmatpush1.bf16.xpose.msra.mxu0 0
        %1848 = vmatprep.subr.bf16.mxu0 0
        %1849 = vmatpush1.bf16.xpose.msra.mxu0 0
        %1850 = vmatprep.subr.bf16.mxu0 0
        %1851 = vmatpush1.bf16.xpose.msra.mxu0 0
        %1852 = vmatprep.subr.bf16.mxu0 0
        %1853 = vmatpush1.bf16.xpose.msra.mxu0 0
        %1854 = vmatprep.subr.bf16.mxu0 0
        %1855 = vmatpush1.bf16.xpose.msra.mxu0 0
        %1856 = vmatprep.subr.bf16.mxu0 0
        %1857 = vmatpush1.bf16.xpose.msra.mxu0 0
        %1858 = vmatprep.subr.bf16.mxu0 0
        %1859 = vmatpush1.bf16.xpose.msra.mxu0 0
        %1860 = vmatprep.subr.bf16.mxu0 0
        %1861 = vmatpush1.bf16.xpose.msra.mxu0 0
        %1862 = vmatprep.mubr.bf16.mxu0 0
        %1863 = vmatmul.mubr.bf16.gmra.mrb[0].mxu0 %v1822
        %v1864 = vpop.f32.mrb[0].mxu0
        %v1865 = vadd.f32 0.0, %v1864
        %v1866 = vpop.f32.mrb[0].mxu0
        %v1867 = vpop.f32.mrb[0].mxu0
        %v1868 = vadd.f32 0.0, %v1867
        %v1869 = vpop.f32.mrb[0].mxu0
        %1870 = vdwg.mxu0
        %v1871 = vsel %vm1217, %v1865, -inf
        %1872 = vmax.xlane.f32.xlu0 %v1871
        %v1873 = vpop.xlane.xlu0 %1872
        %v1874 = vsel %vm1217, %v1868, -inf
        %1875 = vmax.xlane.f32.xlu0 %v1874
        %v1876 = vpop.xlane.xlu0 %1875
        %v1877 = vsub.f32 %v1865, %v1873
        %v1878 = vsub.f32 %v1868, %v1876
        %v1879 = vmul.f32 %v1877, 1.442695
        %v1880 = vpow.pop %v1879
        %v1881 = vmul.f32 %v1878, 1.442695
        %v1882 = vpow.pop %v1881
        %v1883 = vsel %vm1217, %v1880, 0.0
        %1884 = vadd.xlane.f32.xlu0 %v1883
        %v1885 = vpop.xlane.xlu0 %1884
        %v1886 = vsel %vm1217, %v1882, 0.0
        %1887 = vadd.xlane.f32.xlu0 %v1886
        %v1888 = vpop.xlane.xlu0 %1887
        %v1889 = vrcp.pop %v1885
        %v1890 = vrcp.pop %v1888
        %v1891 = vpack.c.bf16 %v1882, %v1880
        %1892 = vrot.lane.b32.xlu0 %v1213, 32
        %v1893 = vpop.permute.xlu0 %1892
        %1894 = vrot.lane.b32.xlu0 %v1215, 32
        %v1895 = vpop.permute.xlu0 %1894
        %v1899 = vsel %vm1217, %v1891, 0
        %1901 = vmatprep.subr.bf16.mxu0 0
        %1902 = vmatpush1.bf16.msra.mxu0 %v1893
        %1903 = vmatprep.subr.bf16.mxu0 0
        %1904 = vmatpush1.bf16.msra.mxu0 %v1895
        %1905 = vmatprep.subr.bf16.mxu0 0
        %1906 = vmatpush1.bf16.msra.mxu0 0
        %1907 = vmatprep.subr.bf16.mxu0 0
        %1908 = vmatpush1.bf16.msra.mxu0 0
        %1909 = vmatprep.subr.bf16.mxu0 0
        %1910 = vmatpush1.bf16.msra.mxu0 0
        %1911 = vmatprep.subr.bf16.mxu0 0
        %1912 = vmatpush1.bf16.msra.mxu0 0
        %1913 = vmatprep.subr.bf16.mxu0 0
        %1914 = vmatpush1.bf16.msra.mxu0 0
        %1915 = vmatprep.subr.bf16.mxu0 0
        %1916 = vmatpush1.bf16.msra.mxu0 0
        %1917 = vmatprep.subr.bf16.mxu0 0
        %1918 = vmatpush1.bf16.msra.mxu0 0
        %1919 = vmatprep.subr.bf16.mxu0 0
        %1920 = vmatpush1.bf16.msra.mxu0 0
        %1921 = vmatprep.subr.bf16.mxu0 0
        %1922 = vmatpush1.bf16.msra.mxu0 0
        %1923 = vmatprep.subr.bf16.mxu0 0
        %1924 = vmatpush1.bf16.msra.mxu0 0
        %1925 = vmatprep.subr.bf16.mxu0 0
        %1926 = vmatpush1.bf16.msra.mxu0 0
        %1927 = vmatprep.subr.bf16.mxu0 0
        %1928 = vmatpush1.bf16.msra.mxu0 0
        %1929 = vmatprep.subr.bf16.mxu0 0
        %1930 = vmatpush1.bf16.msra.mxu0 0
        %1931 = vmatprep.subr.bf16.mxu0 0
        %1932 = vmatpush1.bf16.msra.mxu0 0
        %1933 = vmatprep.mubr.bf16.mxu0 0
        %1934 = vmatmul.mubr.bf16.gmra.mrb[0].mxu0 %v1899
        %v1935 = vpop.f32.mrb[0].mxu0
        %v1936 = vadd.f32 0.0, %v1935
        %v1937 = vpop.f32.mrb[0].mxu0
        %v1938 = vpop.f32.mrb[0].mxu0
        %v1939 = vadd.f32 0.0, %v1938
        %v1940 = vpop.f32.mrb[0].mxu0
        %1941 = vdwg.mxu0
        %v1942 = vmul.f32 %v1936, %v1889
        %v1943 = vmul.f32 %v1939, %v1890
        %v1944 = vpack.c.bf16 %v1943, %v1942
        %v1945 = vld [vmem:[#allocation10 + $0x60] sm:$0xff]
        %v1946 = vld [vmem:[#allocation10 + $0x68] sm:$0xff]
        %v1947 = vld [vmem:[#allocation10 + $0x70] sm:$0xff]
        %v1948 = vld [vmem:[#allocation10 + $0x78] sm:$0xff]
        %v1953 = vunpack.c.l.b16 %v1945
        %v1954 = vunpack.c.h.b16 %v1945
        %v1955 = vunpack.c.l.b16 %v1946
        %v1956 = vunpack.c.h.b16 %v1946
        %v1957 = vunpack.c.l.b16 %v1947
        %v1958 = vunpack.c.h.b16 %v1947
        %v1959 = vunpack.c.l.b16 %v1948
        %v1960 = vunpack.c.h.b16 %v1948
        %v1961 = vpack.c.b16 %v1955, %v1953
        %v1962 = vpack.c.b16 %v1956, %v1954
        %v1963 = vpack.c.b16 %v1959, %v1957
        %v1964 = vpack.c.b16 %v1960, %v1958
        %v1970 = vsel %vm1217, %v1944, 0
        %1972 = vmatprep.subr.bf16.mxu0 %v1962
        %1973 = vmatpush1.bf16.msra.mxu0 %v1961
        %1974 = vmatprep.subr.bf16.mxu0 %v1964
        %1975 = vmatpush1.bf16.msra.mxu0 %v1963
        %1976 = vmatprep.subr.bf16.mxu0 0
        %1977 = vmatpush1.bf16.msra.mxu0 0
        %1978 = vmatprep.subr.bf16.mxu0 0
        %1979 = vmatpush1.bf16.msra.mxu0 0
        %1980 = vmatprep.subr.bf16.mxu0 0
        %1981 = vmatpush1.bf16.msra.mxu0 0
        %1982 = vmatprep.subr.bf16.mxu0 0
        %1983 = vmatpush1.bf16.msra.mxu0 0
        %1984 = vmatprep.subr.bf16.mxu0 0
        %1985 = vmatpush1.bf16.msra.mxu0 0
        %1986 = vmatprep.subr.bf16.mxu0 0
        %1987 = vmatpush1.bf16.msra.mxu0 0
        %1988 = vmatprep.subr.bf16.mxu0 0
        %1989 = vmatpush1.bf16.msra.mxu0 0
        %1990 = vmatprep.subr.bf16.mxu0 0
        %1991 = vmatpush1.bf16.msra.mxu0 0
        %1992 = vmatprep.subr.bf16.mxu0 0
        %1993 = vmatpush1.bf16.msra.mxu0 0
        %1994 = vmatprep.subr.bf16.mxu0 0
        %1995 = vmatpush1.bf16.msra.mxu0 0
        %1996 = vmatprep.subr.bf16.mxu0 0
        %1997 = vmatpush1.bf16.msra.mxu0 0
        %1998 = vmatprep.subr.bf16.mxu0 0
        %1999 = vmatpush1.bf16.msra.mxu0 0
        %2000 = vmatprep.subr.bf16.mxu0 0
        %2001 = vmatpush1.bf16.msra.mxu0 0
        %2002 = vmatprep.subr.bf16.mxu0 0
        %2003 = vmatpush1.bf16.msra.mxu0 0
        %2004 = vmatprep.mubr.bf16.mxu0 0
        %2005 = vmatmul.mubr.bf16.gmra.mrb[0].mxu0 %v1970
        %v2006 = vpop.f32.mrb[0].mxu0
        %v2007 = vadd.f32 0.0, %v2006
        %v2008 = vpop.f32.mrb[0].mxu0
        %v2009 = vadd.f32 0.0, %v2008
        %v2010 = vpop.f32.mrb[0].mxu0
        %v2011 = vadd.f32 0.0, %v2010
        %v2012 = vpop.f32.mrb[0].mxu0
        %v2013 = vadd.f32 0.0, %v2012
        %2014 = vdwg.mxu0
        %v2015 = vadd.f32 %v1811, %v2007
        %v2016 = vadd.f32 %v1812, %v2009
        %v2017 = vadd.f32 %v1813, %v2011
        %v2018 = vadd.f32 %v1814, %v2013
        %v2020 = vsel %vm1217, %v1208, 0
        %v2023 = vsel %vm1217, %v1210, 0
        %v2026 = vsel %vm1217, %v1212, 0
        %2028 = vmatprep.subr.bf16.mxu0 0
        %2029 = vmatpush1.bf16.xpose.msra.mxu0 %v2023
        %2030 = vmatprep.subr.bf16.mxu0 0
        %2031 = vmatpush1.bf16.xpose.msra.mxu0 %v2026
        %2032 = vmatprep.subr.bf16.mxu0 0
        %2033 = vmatpush1.bf16.xpose.msra.mxu0 0
        %2034 = vmatprep.subr.bf16.mxu0 0
        %2035 = vmatpush1.bf16.xpose.msra.mxu0 0
        %2036 = vmatprep.subr.bf16.mxu0 0
        %2037 = vmatpush1.bf16.xpose.msra.mxu0 0
        %2038 = vmatprep.subr.bf16.mxu0 0
        %2039 = vmatpush1.bf16.xpose.msra.mxu0 0
        %2040 = vmatprep.subr.bf16.mxu0 0
        %2041 = vmatpush1.bf16.xpose.msra.mxu0 0
        %2042 = vmatprep.subr.bf16.mxu0 0
        %2043 = vmatpush1.bf16.xpose.msra.mxu0 0
        %2044 = vmatprep.subr.bf16.mxu0 0
        %2045 = vmatpush1.bf16.xpose.msra.mxu0 0
        %2046 = vmatprep.subr.bf16.mxu0 0
        %2047 = vmatpush1.bf16.xpose.msra.mxu0 0
        %2048 = vmatprep.subr.bf16.mxu0 0
        %2049 = vmatpush1.bf16.xpose.msra.mxu0 0
        %2050 = vmatprep.subr.bf16.mxu0 0
        %2051 = vmatpush1.bf16.xpose.msra.mxu0 0
        %2052 = vmatprep.subr.bf16.mxu0 0
        %2053 = vmatpush1.bf16.xpose.msra.mxu0 0
        %2054 = vmatprep.subr.bf16.mxu0 0
        %2055 = vmatpush1.bf16.xpose.msra.mxu0 0
        %2056 = vmatprep.subr.bf16.mxu0 0
        %2057 = vmatpush1.bf16.xpose.msra.mxu0 0
        %2058 = vmatprep.subr.bf16.mxu0 0
        %2059 = vmatpush1.bf16.xpose.msra.mxu0 0
        %2060 = vmatprep.mubr.bf16.mxu0 0
        %2061 = vmatmul.mubr.bf16.gmra.mrb[0].mxu0 %v2020
        %v2062 = vpop.f32.mrb[0].mxu0
        %v2063 = vadd.f32 0.0, %v2062
        %v2064 = vpop.f32.mrb[0].mxu0
        %v2065 = vpop.f32.mrb[0].mxu0
        %v2066 = vadd.f32 0.0, %v2065
        %v2067 = vpop.f32.mrb[0].mxu0
        %2068 = vdwg.mxu0
        %v2069 = vsel %vm1217, %v2063, -inf
        %2070 = vmax.xlane.f32.xlu0 %v2069
        %v2071 = vpop.xlane.xlu0 %2070
        %v2072 = vsel %vm1217, %v2066, -inf
        %2073 = vmax.xlane.f32.xlu0 %v2072
        %v2074 = vpop.xlane.xlu0 %2073
        %v2075 = vsub.f32 %v2063, %v2071
        %v2076 = vsub.f32 %v2066, %v2074
        %v2077 = vmul.f32 %v2075, 1.442695
        %v2078 = vpow.pop %v2077
        %v2079 = vmul.f32 %v2076, 1.442695
        %v2080 = vpow.pop %v2079
        %v2081 = vsel %vm1217, %v2078, 0.0
        %2082 = vadd.xlane.f32.xlu0 %v2081
        %v2083 = vpop.xlane.xlu0 %2082
        %v2084 = vsel %vm1217, %v2080, 0.0
        %2085 = vadd.xlane.f32.xlu0 %v2084
        %v2086 = vpop.xlane.xlu0 %2085
        %v2087 = vrcp.pop %v2083
        %v2088 = vrcp.pop %v2086
        %v2089 = vpack.c.bf16 %v2080, %v2078
        %v2091 = vsel %vm1217, %v2089, 0
        %2093 = vmatprep.subr.bf16.mxu0 0
        %2094 = vmatpush1.bf16.msra.mxu0 %v1214
        %2095 = vmatprep.subr.bf16.mxu0 0
        %2096 = vmatpush1.bf16.msra.mxu0 %v1216
        %2097 = vmatprep.subr.bf16.mxu0 0
        %2098 = vmatpush1.bf16.msra.mxu0 0
        %2099 = vmatprep.subr.bf16.mxu0 0
        %2100 = vmatpush1.bf16.msra.mxu0 0
        %2101 = vmatprep.subr.bf16.mxu0 0
        %2102 = vmatpush1.bf16.msra.mxu0 0
        %2103 = vmatprep.subr.bf16.mxu0 0
        %2104 = vmatpush1.bf16.msra.mxu0 0
        %2105 = vmatprep.subr.bf16.mxu0 0
        %2106 = vmatpush1.bf16.msra.mxu0 0
        %2107 = vmatprep.subr.bf16.mxu0 0
        %2108 = vmatpush1.bf16.msra.mxu0 0
        %2109 = vmatprep.subr.bf16.mxu0 0
        %2110 = vmatpush1.bf16.msra.mxu0 0
        %2111 = vmatprep.subr.bf16.mxu0 0
        %2112 = vmatpush1.bf16.msra.mxu0 0
        %2113 = vmatprep.subr.bf16.mxu0 0
        %2114 = vmatpush1.bf16.msra.mxu0 0
        %2115 = vmatprep.subr.bf16.mxu0 0
        %2116 = vmatpush1.bf16.msra.mxu0 0
        %2117 = vmatprep.subr.bf16.mxu0 0
        %2118 = vmatpush1.bf16.msra.mxu0 0
        %2119 = vmatprep.subr.bf16.mxu0 0
        %2120 = vmatpush1.bf16.msra.mxu0 0
        %2121 = vmatprep.subr.bf16.mxu0 0
        %2122 = vmatpush1.bf16.msra.mxu0 0
        %2123 = vmatprep.subr.bf16.mxu0 0
        %2124 = vmatpush1.bf16.msra.mxu0 0
        %2125 = vmatprep.mubr.bf16.mxu0 0
        %2126 = vmatmul.mubr.bf16.gmra.mrb[0].mxu0 %v2091
        %v2127 = vpop.f32.mrb[0].mxu0
        %v2128 = vadd.f32 0.0, %v2127
        %v2129 = vpop.f32.mrb[0].mxu0
        %v2130 = vpop.f32.mrb[0].mxu0
        %v2131 = vadd.f32 0.0, %v2130
        %v2132 = vpop.f32.mrb[0].mxu0
        %2133 = vdwg.mxu0
        %v2134 = vmul.f32 %v2128, %v2087
        %v2135 = vmul.f32 %v2131, %v2088
        %v2136 = vpack.c.bf16 %v2135, %v2134
        %v2137 = vld [vmem:[#allocation10 + $0x80] sm:$0xff]
        %v2138 = vld [vmem:[#allocation10 + $0x88] sm:$0xff]
        %v2139 = vld [vmem:[#allocation10 + $0x90] sm:$0xff]
        %v2140 = vld [vmem:[#allocation10 + $0x98] sm:$0xff]
        %v2145 = vunpack.c.l.b16 %v2137
        %v2146 = vunpack.c.h.b16 %v2137
        %v2147 = vunpack.c.l.b16 %v2138
        %v2148 = vunpack.c.h.b16 %v2138
        %v2149 = vunpack.c.l.b16 %v2139
        %v2150 = vunpack.c.h.b16 %v2139
        %v2151 = vunpack.c.l.b16 %v2140
        %v2152 = vunpack.c.h.b16 %v2140
        %v2153 = vpack.c.b16 %v2147, %v2145
        %v2154 = vpack.c.b16 %v2148, %v2146
        %v2155 = vpack.c.b16 %v2151, %v2149
        %v2156 = vpack.c.b16 %v2152, %v2150
        %v2162 = vsel %vm1217, %v2136, 0
        %2164 = vmatprep.subr.bf16.mxu0 %v2154
        %2165 = vmatpush1.bf16.msra.mxu0 %v2153
        %2166 = vmatprep.subr.bf16.mxu0 %v2156
        %2167 = vmatpush1.bf16.msra.mxu0 %v2155
        %2168 = vmatprep.subr.bf16.mxu0 0
        %2169 = vmatpush1.bf16.msra.mxu0 0
        %2170 = vmatprep.subr.bf16.mxu0 0
        %2171 = vmatpush1.bf16.msra.mxu0 0
        %2172 = vmatprep.subr.bf16.mxu0 0
        %2173 = vmatpush1.bf16.msra.mxu0 0
        %2174 = vmatprep.subr.bf16.mxu0 0
        %2175 = vmatpush1.bf16.msra.mxu0 0
        %2176 = vmatprep.subr.bf16.mxu0 0
        %2177 = vmatpush1.bf16.msra.mxu0 0
        %2178 = vmatprep.subr.bf16.mxu0 0
        %2179 = vmatpush1.bf16.msra.mxu0 0
        %2180 = vmatprep.subr.bf16.mxu0 0
        %2181 = vmatpush1.bf16.msra.mxu0 0
        %2182 = vmatprep.subr.bf16.mxu0 0
        %2183 = vmatpush1.bf16.msra.mxu0 0
        %2184 = vmatprep.subr.bf16.mxu0 0
        %2185 = vmatpush1.bf16.msra.mxu0 0
        %2186 = vmatprep.subr.bf16.mxu0 0
        %2187 = vmatpush1.bf16.msra.mxu0 0
        %2188 = vmatprep.subr.bf16.mxu0 0
        %2189 = vmatpush1.bf16.msra.mxu0 0
        %2190 = vmatprep.subr.bf16.mxu0 0
        %2191 = vmatpush1.bf16.msra.mxu0 0
        %2192 = vmatprep.subr.bf16.mxu0 0
        %2193 = vmatpush1.bf16.msra.mxu0 0
        %2194 = vmatprep.subr.bf16.mxu0 0
        %2195 = vmatpush1.bf16.msra.mxu0 0
        %2196 = vmatprep.mubr.bf16.mxu0 0
        %2197 = vmatmul.mubr.bf16.gmra.mrb[0].mxu0 %v2162
        %v2198 = vpop.f32.mrb[0].mxu0
        %v2199 = vadd.f32 0.0, %v2198
        %v2200 = vpop.f32.mrb[0].mxu0
        %v2201 = vadd.f32 0.0, %v2200
        %v2202 = vpop.f32.mrb[0].mxu0
        %v2203 = vadd.f32 0.0, %v2202
        %v2204 = vpop.f32.mrb[0].mxu0
        %v2205 = vadd.f32 0.0, %v2204
        %2206 = vdwg.mxu0
        %v2207 = vadd.f32 %v2015, %v2199
        %v2208 = vadd.f32 %v2016, %v2201
        %v2209 = vadd.f32 %v2017, %v2203
        %v2210 = vadd.f32 %v2018, %v2205
        %2212 = vrot.lane.b32.xlu0 %v1208, 96
        %v2213 = vpop.permute.xlu0 %2212
        %2216 = vrot.lane.b32.xlu0 %v1210, 96
        %v2217 = vpop.permute.xlu0 %2216
        %2218 = vrot.lane.b32.xlu0 %v1212, 96
        %v2219 = vpop.permute.xlu0 %2218
        %v2221 = vsel %vm1217, %v2213, 0
        %v2224 = vsel %vm1217, %v2217, 0
        %v2227 = vsel %vm1217, %v2219, 0
        %2229 = vmatprep.subr.bf16.mxu0 0
        %2230 = vmatpush1.bf16.xpose.msra.mxu0 %v2224
        %2231 = vmatprep.subr.bf16.mxu0 0
        %2232 = vmatpush1.bf16.xpose.msra.mxu0 %v2227
        %2233 = vmatprep.subr.bf16.mxu0 0
        %2234 = vmatpush1.bf16.xpose.msra.mxu0 0
        %2235 = vmatprep.subr.bf16.mxu0 0
        %2236 = vmatpush1.bf16.xpose.msra.mxu0 0
        %2237 = vmatprep.subr.bf16.mxu0 0
        %2238 = vmatpush1.bf16.xpose.msra.mxu0 0
        %2239 = vmatprep.subr.bf16.mxu0 0
        %2240 = vmatpush1.bf16.xpose.msra.mxu0 0
        %2241 = vmatprep.subr.bf16.mxu0 0
        %2242 = vmatpush1.bf16.xpose.msra.mxu0 0
        %2243 = vmatprep.subr.bf16.mxu0 0
        %2244 = vmatpush1.bf16.xpose.msra.mxu0 0
        %2245 = vmatprep.subr.bf16.mxu0 0
        %2246 = vmatpush1.bf16.xpose.msra.mxu0 0
        %2247 = vmatprep.subr.bf16.mxu0 0
        %2248 = vmatpush1.bf16.xpose.msra.mxu0 0
        %2249 = vmatprep.subr.bf16.mxu0 0
        %2250 = vmatpush1.bf16.xpose.msra.mxu0 0
        %2251 = vmatprep.subr.bf16.mxu0 0
        %2252 = vmatpush1.bf16.xpose.msra.mxu0 0
        %2253 = vmatprep.subr.bf16.mxu0 0
        %2254 = vmatpush1.bf16.xpose.msra.mxu0 0
        %2255 = vmatprep.subr.bf16.mxu0 0
        %2256 = vmatpush1.bf16.xpose.msra.mxu0 0
        %2257 = vmatprep.subr.bf16.mxu0 0
        %2258 = vmatpush1.bf16.xpose.msra.mxu0 0
        %2259 = vmatprep.subr.bf16.mxu0 0
        %2260 = vmatpush1.bf16.xpose.msra.mxu0 0
        %2261 = vmatprep.mubr.bf16.mxu0 0
        %2262 = vmatmul.mubr.bf16.gmra.mrb[0].mxu0 %v2221
        %v2263 = vpop.f32.mrb[0].mxu0
        %v2264 = vadd.f32 0.0, %v2263
        %v2265 = vpop.f32.mrb[0].mxu0
        %v2266 = vpop.f32.mrb[0].mxu0
        %v2267 = vadd.f32 0.0, %v2266
        %v2268 = vpop.f32.mrb[0].mxu0
        %2269 = vdwg.mxu0
        %v2270 = vsel %vm1217, %v2264, -inf
        %2271 = vmax.xlane.f32.xlu0 %v2270
        %v2272 = vpop.xlane.xlu0 %2271
        %v2273 = vsel %vm1217, %v2267, -inf
        %2274 = vmax.xlane.f32.xlu0 %v2273
        %v2275 = vpop.xlane.xlu0 %2274
        %v2276 = vsub.f32 %v2264, %v2272
        %v2277 = vsub.f32 %v2267, %v2275
        %v2278 = vmul.f32 %v2276, 1.442695
        %v2279 = vpow.pop %v2278
        %v2280 = vmul.f32 %v2277, 1.442695
        %v2281 = vpow.pop %v2280
        %v2282 = vsel %vm1217, %v2279, 0.0
        %2283 = vadd.xlane.f32.xlu0 %v2282
        %v2284 = vpop.xlane.xlu0 %2283
        %v2285 = vsel %vm1217, %v2281, 0.0
        %2286 = vadd.xlane.f32.xlu0 %v2285
        %v2287 = vpop.xlane.xlu0 %2286
        %v2288 = vrcp.pop %v2284
        %v2289 = vrcp.pop %v2287
        %v2290 = vpack.c.bf16 %v2281, %v2279
        %2293 = vrot.lane.b32.xlu0 %v1214, 96
        %v2294 = vpop.permute.xlu0 %2293
        %2295 = vrot.lane.b32.xlu0 %v1216, 96
        %v2296 = vpop.permute.xlu0 %2295
        %v2300 = vsel %vm1217, %v2290, 0
        %2302 = vmatprep.subr.bf16.mxu0 0
        %2303 = vmatpush1.bf16.msra.mxu0 %v2294
        %2304 = vmatprep.subr.bf16.mxu0 0
        %2305 = vmatpush1.bf16.msra.mxu0 %v2296
        %2306 = vmatprep.subr.bf16.mxu0 0
        %2307 = vmatpush1.bf16.msra.mxu0 0
        %2308 = vmatprep.subr.bf16.mxu0 0
        %2309 = vmatpush1.bf16.msra.mxu0 0
        %2310 = vmatprep.subr.bf16.mxu0 0
        %2311 = vmatpush1.bf16.msra.mxu0 0
        %2312 = vmatprep.subr.bf16.mxu0 0
        %2313 = vmatpush1.bf16.msra.mxu0 0
        %2314 = vmatprep.subr.bf16.mxu0 0
        %2315 = vmatpush1.bf16.msra.mxu0 0
        %2316 = vmatprep.subr.bf16.mxu0 0
        %2317 = vmatpush1.bf16.msra.mxu0 0
        %2318 = vmatprep.subr.bf16.mxu0 0
        %2319 = vmatpush1.bf16.msra.mxu0 0
        %2320 = vmatprep.subr.bf16.mxu0 0
        %2321 = vmatpush1.bf16.msra.mxu0 0
        %2322 = vmatprep.subr.bf16.mxu0 0
        %2323 = vmatpush1.bf16.msra.mxu0 0
        %2324 = vmatprep.subr.bf16.mxu0 0
        %2325 = vmatpush1.bf16.msra.mxu0 0
        %2326 = vmatprep.subr.bf16.mxu0 0
        %2327 = vmatpush1.bf16.msra.mxu0 0
        %2328 = vmatprep.subr.bf16.mxu0 0
        %2329 = vmatpush1.bf16.msra.mxu0 0
        %2330 = vmatprep.subr.bf16.mxu0 0
        %2331 = vmatpush1.bf16.msra.mxu0 0
        %2332 = vmatprep.subr.bf16.mxu0 0
        %2333 = vmatpush1.bf16.msra.mxu0 0
        %2334 = vmatprep.mubr.bf16.mxu0 0
        %2335 = vmatmul.mubr.bf16.gmra.mrb[0].mxu0 %v2300
        %v2336 = vpop.f32.mrb[0].mxu0
        %v2337 = vadd.f32 0.0, %v2336
        %v2338 = vpop.f32.mrb[0].mxu0
        %v2339 = vpop.f32.mrb[0].mxu0
        %v2340 = vadd.f32 0.0, %v2339
        %v2341 = vpop.f32.mrb[0].mxu0
        %2342 = vdwg.mxu0
        %v2343 = vmul.f32 %v2337, %v2288
        %v2344 = vmul.f32 %v2340, %v2289
        %v2345 = vpack.c.bf16 %v2344, %v2343
        %v2346 = vld [vmem:[#allocation10 + $0xa0] sm:$0xff]
        %v2347 = vld [vmem:[#allocation10 + $0xa8] sm:$0xff]
        %v2348 = vld [vmem:[#allocation10 + $0xb0] sm:$0xff]
        %v2349 = vld [vmem:[#allocation10 + $0xb8] sm:$0xff]
        %v2354 = vunpack.c.l.b16 %v2346
        %v2355 = vunpack.c.h.b16 %v2346
        %v2356 = vunpack.c.l.b16 %v2347
        %v2357 = vunpack.c.h.b16 %v2347
        %v2358 = vunpack.c.l.b16 %v2348
        %v2359 = vunpack.c.h.b16 %v2348
        %v2360 = vunpack.c.l.b16 %v2349
        %v2361 = vunpack.c.h.b16 %v2349
        %v2362 = vpack.c.b16 %v2356, %v2354
        %v2363 = vpack.c.b16 %v2357, %v2355
        %v2364 = vpack.c.b16 %v2360, %v2358
        %v2365 = vpack.c.b16 %v2361, %v2359
        %v2371 = vsel %vm1217, %v2345, 0
        %2373 = vmatprep.subr.bf16.mxu0 %v2363
        %2374 = vmatpush1.bf16.msra.mxu0 %v2362
        %2375 = vmatprep.subr.bf16.mxu0 %v2365
        %2376 = vmatpush1.bf16.msra.mxu0 %v2364
        %2377 = vmatprep.subr.bf16.mxu0 0
        %2378 = vmatpush1.bf16.msra.mxu0 0
        %2379 = vmatprep.subr.bf16.mxu0 0
        %2380 = vmatpush1.bf16.msra.mxu0 0
        %2381 = vmatprep.subr.bf16.mxu0 0
        %2382 = vmatpush1.bf16.msra.mxu0 0
        %2383 = vmatprep.subr.bf16.mxu0 0
        %2384 = vmatpush1.bf16.msra.mxu0 0
        %2385 = vmatprep.subr.bf16.mxu0 0
        %2386 = vmatpush1.bf16.msra.mxu0 0
        %2387 = vmatprep.subr.bf16.mxu0 0
        %2388 = vmatpush1.bf16.msra.mxu0 0
        %2389 = vmatprep.subr.bf16.mxu0 0
        %2390 = vmatpush1.bf16.msra.mxu0 0
        %2391 = vmatprep.subr.bf16.mxu0 0
        %2392 = vmatpush1.bf16.msra.mxu0 0
        %2393 = vmatprep.subr.bf16.mxu0 0
        %2394 = vmatpush1.bf16.msra.mxu0 0
        %2395 = vmatprep.subr.bf16.mxu0 0
        %2396 = vmatpush1.bf16.msra.mxu0 0
        %2397 = vmatprep.subr.bf16.mxu0 0
        %2398 = vmatpush1.bf16.msra.mxu0 0
        %2399 = vmatprep.subr.bf16.mxu0 0
        %2400 = vmatpush1.bf16.msra.mxu0 0
        %2401 = vmatprep.subr.bf16.mxu0 0
        %2402 = vmatpush1.bf16.msra.mxu0 0
        %2403 = vmatprep.subr.bf16.mxu0 0
        %2404 = vmatpush1.bf16.msra.mxu0 0
        %2405 = vmatprep.mubr.bf16.mxu0 0
        %2406 = vmatmul.mubr.bf16.gmra.mrb[0].mxu0 %v2371
        %v2407 = vpop.f32.mrb[0].mxu0
        %v2408 = vadd.f32 0.0, %v2407
        %v2409 = vpop.f32.mrb[0].mxu0
        %v2410 = vadd.f32 0.0, %v2409
        %v2411 = vpop.f32.mrb[0].mxu0
        %v2412 = vadd.f32 0.0, %v2411
        %v2413 = vpop.f32.mrb[0].mxu0
        %v2414 = vadd.f32 0.0, %v2413
        %2415 = vdwg.mxu0
        %v2416 = vadd.f32 %v2207, %v2408
        %v2417 = vadd.f32 %v2208, %v2410
        %v2418 = vadd.f32 %v2209, %v2412
        %v2419 = vadd.f32 %v2210, %v2414
        %2420 = vrot.lane.b32.xlu0 %v1208, 64
        %v2421 = vpop.permute.xlu0 %2420
        %2422 = vrot.lane.b32.xlu0 %v1210, 64
        %v2423 = vpop.permute.xlu0 %2422
        %2424 = vrot.lane.b32.xlu0 %v1212, 64
        %v2425 = vpop.permute.xlu0 %2424
        %v2427 = vsel %vm1217, %v2421, 0
        %v2430 = vsel %vm1217, %v2423, 0
        %v2433 = vsel %vm1217, %v2425, 0
        %2435 = vmatprep.subr.bf16.mxu0 0
        %2436 = vmatpush1.bf16.xpose.msra.mxu0 %v2430
        %2437 = vmatprep.subr.bf16.mxu0 0
        %2438 = vmatpush1.bf16.xpose.msra.mxu0 %v2433
        %2439 = vmatprep.subr.bf16.mxu0 0
        %2440 = vmatpush1.bf16.xpose.msra.mxu0 0
        %2441 = vmatprep.subr.bf16.mxu0 0
        %2442 = vmatpush1.bf16.xpose.msra.mxu0 0
        %2443 = vmatprep.subr.bf16.mxu0 0
        %2444 = vmatpush1.bf16.xpose.msra.mxu0 0
        %2445 = vmatprep.subr.bf16.mxu0 0
        %2446 = vmatpush1.bf16.xpose.msra.mxu0 0
        %2447 = vmatprep.subr.bf16.mxu0 0
        %2448 = vmatpush1.bf16.xpose.msra.mxu0 0
        %2449 = vmatprep.subr.bf16.mxu0 0
        %2450 = vmatpush1.bf16.xpose.msra.mxu0 0
        %2451 = vmatprep.subr.bf16.mxu0 0
        %2452 = vmatpush1.bf16.xpose.msra.mxu0 0
        %2453 = vmatprep.subr.bf16.mxu0 0
        %2454 = vmatpush1.bf16.xpose.msra.mxu0 0
        %2455 = vmatprep.subr.bf16.mxu0 0
        %2456 = vmatpush1.bf16.xpose.msra.mxu0 0
        %2457 = vmatprep.subr.bf16.mxu0 0
        %2458 = vmatpush1.bf16.xpose.msra.mxu0 0
        %2459 = vmatprep.subr.bf16.mxu0 0
        %2460 = vmatpush1.bf16.xpose.msra.mxu0 0
        %2461 = vmatprep.subr.bf16.mxu0 0
        %2462 = vmatpush1.bf16.xpose.msra.mxu0 0
        %2463 = vmatprep.subr.bf16.mxu0 0
        %2464 = vmatpush1.bf16.xpose.msra.mxu0 0
        %2465 = vmatprep.subr.bf16.mxu0 0
        %2466 = vmatpush1.bf16.xpose.msra.mxu0 0
        %2467 = vmatprep.mubr.bf16.mxu0 0
        %2468 = vmatmul.mubr.bf16.gmra.mrb[0].mxu0 %v2427
        %v2469 = vpop.f32.mrb[0].mxu0
        %v2470 = vadd.f32 0.0, %v2469
        %v2471 = vpop.f32.mrb[0].mxu0
        %v2472 = vpop.f32.mrb[0].mxu0
        %v2473 = vadd.f32 0.0, %v2472
        %v2474 = vpop.f32.mrb[0].mxu0
        %2475 = vdwg.mxu0
        %v2476 = vsel %vm1217, %v2470, -inf
        %2477 = vmax.xlane.f32.xlu0 %v2476
        %v2478 = vpop.xlane.xlu0 %2477
        %v2479 = vsel %vm1217, %v2473, -inf
        %2480 = vmax.xlane.f32.xlu0 %v2479
        %v2481 = vpop.xlane.xlu0 %2480
        %v2482 = vsub.f32 %v2470, %v2478
        %v2483 = vsub.f32 %v2473, %v2481
        %v2484 = vmul.f32 %v2482, 1.442695
        %v2485 = vpow.pop %v2484
        %v2486 = vmul.f32 %v2483, 1.442695
        %v2487 = vpow.pop %v2486
        %v2488 = vsel %vm1217, %v2485, 0.0
        %2489 = vadd.xlane.f32.xlu0 %v2488
        %v2490 = vpop.xlane.xlu0 %2489
        %v2491 = vsel %vm1217, %v2487, 0.0
        %2492 = vadd.xlane.f32.xlu0 %v2491
        %v2493 = vpop.xlane.xlu0 %2492
        %v2494 = vrcp.pop %v2490
        %v2495 = vrcp.pop %v2493
        %v2496 = vpack.c.bf16 %v2487, %v2485
        %2497 = vrot.lane.b32.xlu0 %v1214, 64
        %v2498 = vpop.permute.xlu0 %2497
        %2499 = vrot.lane.b32.xlu0 %v1216, 64
        %v2500 = vpop.permute.xlu0 %2499
        %v2504 = vsel %vm1217, %v2496, 0
        %2506 = vmatprep.subr.bf16.mxu0 0
        %2507 = vmatpush1.bf16.msra.mxu0 %v2498
        %2508 = vmatprep.subr.bf16.mxu0 0
        %2509 = vmatpush1.bf16.msra.mxu0 %v2500
        %2510 = vmatprep.subr.bf16.mxu0 0
        %2511 = vmatpush1.bf16.msra.mxu0 0
        %2512 = vmatprep.subr.bf16.mxu0 0
        %2513 = vmatpush1.bf16.msra.mxu0 0
        %2514 = vmatprep.subr.bf16.mxu0 0
        %2515 = vmatpush1.bf16.msra.mxu0 0
        %2516 = vmatprep.subr.bf16.mxu0 0
        %2517 = vmatpush1.bf16.msra.mxu0 0
        %2518 = vmatprep.subr.bf16.mxu0 0
        %2519 = vmatpush1.bf16.msra.mxu0 0
        %2520 = vmatprep.subr.bf16.mxu0 0
        %2521 = vmatpush1.bf16.msra.mxu0 0
        %2522 = vmatprep.subr.bf16.mxu0 0
        %2523 = vmatpush1.bf16.msra.mxu0 0
        %2524 = vmatprep.subr.bf16.mxu0 0
        %2525 = vmatpush1.bf16.msra.mxu0 0
        %2526 = vmatprep.subr.bf16.mxu0 0
        %2527 = vmatpush1.bf16.msra.mxu0 0
        %2528 = vmatprep.subr.bf16.mxu0 0
        %2529 = vmatpush1.bf16.msra.mxu0 0
        %2530 = vmatprep.subr.bf16.mxu0 0
        %2531 = vmatpush1.bf16.msra.mxu0 0
        %2532 = vmatprep.subr.bf16.mxu0 0
        %2533 = vmatpush1.bf16.msra.mxu0 0
        %2534 = vmatprep.subr.bf16.mxu0 0
        %2535 = vmatpush1.bf16.msra.mxu0 0
        %2536 = vmatprep.subr.bf16.mxu0 0
        %2537 = vmatpush1.bf16.msra.mxu0 0
        %2538 = vmatprep.mubr.bf16.mxu0 0
        %2539 = vmatmul.mubr.bf16.gmra.mrb[0].mxu0 %v2504
        %v2540 = vpop.f32.mrb[0].mxu0
        %v2541 = vadd.f32 0.0, %v2540
        %v2542 = vpop.f32.mrb[0].mxu0
        %v2543 = vpop.f32.mrb[0].mxu0
        %v2544 = vadd.f32 0.0, %v2543
        %v2545 = vpop.f32.mrb[0].mxu0
        %2546 = vdwg.mxu0
        %v2547 = vmul.f32 %v2541, %v2494
        %v2548 = vmul.f32 %v2544, %v2495
        %v2549 = vpack.c.bf16 %v2548, %v2547
        %v2550 = vld [vmem:[#allocation10 + $0xc0] sm:$0xff]
        %v2551 = vld [vmem:[#allocation10 + $0xc8] sm:$0xff]
        %v2552 = vld [vmem:[#allocation10 + $0xd0] sm:$0xff]
        %v2553 = vld [vmem:[#allocation10 + $0xd8] sm:$0xff]
        %v2558 = vunpack.c.l.b16 %v2550
        %v2559 = vunpack.c.h.b16 %v2550
        %v2560 = vunpack.c.l.b16 %v2551
        %v2561 = vunpack.c.h.b16 %v2551
        %v2562 = vunpack.c.l.b16 %v2552
        %v2563 = vunpack.c.h.b16 %v2552
        %v2564 = vunpack.c.l.b16 %v2553
        %v2565 = vunpack.c.h.b16 %v2553
        %v2566 = vpack.c.b16 %v2560, %v2558
        %v2567 = vpack.c.b16 %v2561, %v2559
        %v2568 = vpack.c.b16 %v2564, %v2562
        %v2569 = vpack.c.b16 %v2565, %v2563
        %v2575 = vsel %vm1217, %v2549, 0
        %2577 = vmatprep.subr.bf16.mxu0 %v2567
        %2578 = vmatpush1.bf16.msra.mxu0 %v2566
        %2579 = vmatprep.subr.bf16.mxu0 %v2569
        %2580 = vmatpush1.bf16.msra.mxu0 %v2568
        %2581 = vmatprep.subr.bf16.mxu0 0
        %2582 = vmatpush1.bf16.msra.mxu0 0
        %2583 = vmatprep.subr.bf16.mxu0 0
        %2584 = vmatpush1.bf16.msra.mxu0 0
        %2585 = vmatprep.subr.bf16.mxu0 0
        %2586 = vmatpush1.bf16.msra.mxu0 0
        %2587 = vmatprep.subr.bf16.mxu0 0
        %2588 = vmatpush1.bf16.msra.mxu0 0
        %2589 = vmatprep.subr.bf16.mxu0 0
        %2590 = vmatpush1.bf16.msra.mxu0 0
        %2591 = vmatprep.subr.bf16.mxu0 0
        %2592 = vmatpush1.bf16.msra.mxu0 0
        %2593 = vmatprep.subr.bf16.mxu0 0
        %2594 = vmatpush1.bf16.msra.mxu0 0
        %2595 = vmatprep.subr.bf16.mxu0 0
        %2596 = vmatpush1.bf16.msra.mxu0 0
        %2597 = vmatprep.subr.bf16.mxu0 0
        %2598 = vmatpush1.bf16.msra.mxu0 0
        %2599 = vmatprep.subr.bf16.mxu0 0
        %2600 = vmatpush1.bf16.msra.mxu0 0
        %2601 = vmatprep.subr.bf16.mxu0 0
        %2602 = vmatpush1.bf16.msra.mxu0 0
        %2603 = vmatprep.subr.bf16.mxu0 0
        %2604 = vmatpush1.bf16.msra.mxu0 0
        %2605 = vmatprep.subr.bf16.mxu0 0
        %2606 = vmatpush1.bf16.msra.mxu0 0
        %2607 = vmatprep.subr.bf16.mxu0 0
        %2608 = vmatpush1.bf16.msra.mxu0 0
        %2609 = vmatprep.mubr.bf16.mxu0 0
        %2610 = vmatmul.mubr.bf16.gmra.mrb[0].mxu0 %v2575
        %v2611 = vpop.f32.mrb[0].mxu0
        %v2612 = vadd.f32 0.0, %v2611
        %v2613 = vpop.f32.mrb[0].mxu0
        %v2614 = vadd.f32 0.0, %v2613
        %v2615 = vpop.f32.mrb[0].mxu0
        %v2616 = vadd.f32 0.0, %v2615
        %v2617 = vpop.f32.mrb[0].mxu0
        %v2618 = vadd.f32 0.0, %v2617
        %2619 = vdwg.mxu0
        %v2620 = vadd.f32 %v2416, %v2612
        %v2621 = vadd.f32 %v2417, %v2614
        %v2622 = vadd.f32 %v2418, %v2616
        %v2623 = vadd.f32 %v2419, %v2618
        %2624 = vrot.lane.b32.xlu0 %v1208, 32
        %v2625 = vpop.permute.xlu0 %2624
        %2626 = vrot.lane.b32.xlu0 %v1210, 32
        %v2627 = vpop.permute.xlu0 %2626
        %2628 = vrot.lane.b32.xlu0 %v1212, 32
        %v2629 = vpop.permute.xlu0 %2628
        %v2631 = vsel %vm1217, %v2625, 0
        %v2634 = vsel %vm1217, %v2627, 0
        %v2637 = vsel %vm1217, %v2629, 0
        %2639 = vmatprep.subr.bf16.mxu0 0
        %2640 = vmatpush1.bf16.xpose.msra.mxu0 %v2634
        %2641 = vmatprep.subr.bf16.mxu0 0
        %2642 = vmatpush1.bf16.xpose.msra.mxu0 %v2637
        %2643 = vmatprep.subr.bf16.mxu0 0
        %2644 = vmatpush1.bf16.xpose.msra.mxu0 0
        %2645 = vmatprep.subr.bf16.mxu0 0
        %2646 = vmatpush1.bf16.xpose.msra.mxu0 0
        %2647 = vmatprep.subr.bf16.mxu0 0
        %2648 = vmatpush1.bf16.xpose.msra.mxu0 0
        %2649 = vmatprep.subr.bf16.mxu0 0
        %2650 = vmatpush1.bf16.xpose.msra.mxu0 0
        %2651 = vmatprep.subr.bf16.mxu0 0
        %2652 = vmatpush1.bf16.xpose.msra.mxu0 0
        %2653 = vmatprep.subr.bf16.mxu0 0
        %2654 = vmatpush1.bf16.xpose.msra.mxu0 0
        %2655 = vmatprep.subr.bf16.mxu0 0
        %2656 = vmatpush1.bf16.xpose.msra.mxu0 0
        %2657 = vmatprep.subr.bf16.mxu0 0
        %2658 = vmatpush1.bf16.xpose.msra.mxu0 0
        %2659 = vmatprep.subr.bf16.mxu0 0
        %2660 = vmatpush1.bf16.xpose.msra.mxu0 0
        %2661 = vmatprep.subr.bf16.mxu0 0
        %2662 = vmatpush1.bf16.xpose.msra.mxu0 0
        %2663 = vmatprep.subr.bf16.mxu0 0
        %2664 = vmatpush1.bf16.xpose.msra.mxu0 0
        %2665 = vmatprep.subr.bf16.mxu0 0
        %2666 = vmatpush1.bf16.xpose.msra.mxu0 0
        %2667 = vmatprep.subr.bf16.mxu0 0
        %2668 = vmatpush1.bf16.xpose.msra.mxu0 0
        %2669 = vmatprep.subr.bf16.mxu0 0
        %2670 = vmatpush1.bf16.xpose.msra.mxu0 0
        %2671 = vmatprep.mubr.bf16.mxu0 0
        %2672 = vmatmul.mubr.bf16.gmra.mrb[0].mxu0 %v2631
        %v2673 = vpop.f32.mrb[0].mxu0
        %v2674 = vadd.f32 0.0, %v2673
        %v2675 = vpop.f32.mrb[0].mxu0
        %v2676 = vpop.f32.mrb[0].mxu0
        %v2677 = vadd.f32 0.0, %v2676
        %v2678 = vpop.f32.mrb[0].mxu0
        %2679 = vdwg.mxu0
        %v2680 = vsel %vm1217, %v2674, -inf
        %2681 = vmax.xlane.f32.xlu0 %v2680
        %v2682 = vpop.xlane.xlu0 %2681
        %v2683 = vsel %vm1217, %v2677, -inf
        %2684 = vmax.xlane.f32.xlu0 %v2683
        %v2685 = vpop.xlane.xlu0 %2684
        %v2686 = vsub.f32 %v2674, %v2682
        %v2687 = vsub.f32 %v2677, %v2685
        %v2688 = vmul.f32 %v2686, 1.442695
        %v2689 = vpow.pop %v2688
        %v2690 = vmul.f32 %v2687, 1.442695
        %v2691 = vpow.pop %v2690
        %v2692 = vsel %vm1217, %v2689, 0.0
        %2693 = vadd.xlane.f32.xlu0 %v2692
        %v2694 = vpop.xlane.xlu0 %2693
        %v2695 = vsel %vm1217, %v2691, 0.0
        %2696 = vadd.xlane.f32.xlu0 %v2695
        %v2697 = vpop.xlane.xlu0 %2696
        %v2698 = vrcp.pop %v2694
        %v2699 = vrcp.pop %v2697
        %v2700 = vpack.c.bf16 %v2691, %v2689
        %2701 = vrot.lane.b32.xlu0 %v1214, 32
        %v2702 = vpop.permute.xlu0 %2701
        %2703 = vrot.lane.b32.xlu0 %v1216, 32
        %v2704 = vpop.permute.xlu0 %2703
        %v2708 = vsel %vm1217, %v2700, 0
        %2710 = vmatprep.subr.bf16.mxu0 0
        %2711 = vmatpush1.bf16.msra.mxu0 %v2702
        %2712 = vmatprep.subr.bf16.mxu0 0
        %2713 = vmatpush1.bf16.msra.mxu0 %v2704
        %2714 = vmatprep.subr.bf16.mxu0 0
        %2715 = vmatpush1.bf16.msra.mxu0 0
        %2716 = vmatprep.subr.bf16.mxu0 0
        %2717 = vmatpush1.bf16.msra.mxu0 0
        %2718 = vmatprep.subr.bf16.mxu0 0
        %2719 = vmatpush1.bf16.msra.mxu0 0
        %2720 = vmatprep.subr.bf16.mxu0 0
        %2721 = vmatpush1.bf16.msra.mxu0 0
        %2722 = vmatprep.subr.bf16.mxu0 0
        %2723 = vmatpush1.bf16.msra.mxu0 0
        %2724 = vmatprep.subr.bf16.mxu0 0
        %2725 = vmatpush1.bf16.msra.mxu0 0
        %2726 = vmatprep.subr.bf16.mxu0 0
        %2727 = vmatpush1.bf16.msra.mxu0 0
        %2728 = vmatprep.subr.bf16.mxu0 0
        %2729 = vmatpush1.bf16.msra.mxu0 0
        %2730 = vmatprep.subr.bf16.mxu0 0
        %2731 = vmatpush1.bf16.msra.mxu0 0
        %2732 = vmatprep.subr.bf16.mxu0 0
        %2733 = vmatpush1.bf16.msra.mxu0 0
        %2734 = vmatprep.subr.bf16.mxu0 0
        %2735 = vmatpush1.bf16.msra.mxu0 0
        %2736 = vmatprep.subr.bf16.mxu0 0
        %2737 = vmatpush1.bf16.msra.mxu0 0
        %2738 = vmatprep.subr.bf16.mxu0 0
        %2739 = vmatpush1.bf16.msra.mxu0 0
        %2740 = vmatprep.subr.bf16.mxu0 0
        %2741 = vmatpush1.bf16.msra.mxu0 0
        %2742 = vmatprep.mubr.bf16.mxu0 0
        %2743 = vmatmul.mubr.bf16.gmra.mrb[0].mxu0 %v2708
        %v2744 = vpop.f32.mrb[0].mxu0
        %v2745 = vadd.f32 0.0, %v2744
        %v2746 = vpop.f32.mrb[0].mxu0
        %v2747 = vpop.f32.mrb[0].mxu0
        %v2748 = vadd.f32 0.0, %v2747
        %v2749 = vpop.f32.mrb[0].mxu0
        %2750 = vdwg.mxu0
        %v2751 = vmul.f32 %v2745, %v2698
        %v2752 = vmul.f32 %v2748, %v2699
        %v2753 = vpack.c.bf16 %v2752, %v2751
        %v2754 = vld [vmem:[#allocation10 + $0xe0] sm:$0xff]
        %v2755 = vld [vmem:[#allocation10 + $0xe8] sm:$0xff]
        %v2756 = vld [vmem:[#allocation10 + $0xf0] sm:$0xff]
        %v2757 = vld [vmem:[#allocation10 + $0xf8] sm:$0xff]
        %v2762 = vunpack.c.l.b16 %v2754
        %v2763 = vunpack.c.h.b16 %v2754
        %v2764 = vunpack.c.l.b16 %v2755
        %v2765 = vunpack.c.h.b16 %v2755
        %v2766 = vunpack.c.l.b16 %v2756
        %v2767 = vunpack.c.h.b16 %v2756
        %v2768 = vunpack.c.l.b16 %v2757
        %v2769 = vunpack.c.h.b16 %v2757
        %v2770 = vpack.c.b16 %v2764, %v2762
        %v2771 = vpack.c.b16 %v2765, %v2763
        %v2772 = vpack.c.b16 %v2768, %v2766
        %v2773 = vpack.c.b16 %v2769, %v2767
        %v2779 = vsel %vm1217, %v2753, 0
        %2781 = vmatprep.subr.bf16.mxu0 %v2771
        %2782 = vmatpush1.bf16.msra.mxu0 %v2770
        %2783 = vmatprep.subr.bf16.mxu0 %v2773
        %2784 = vmatpush1.bf16.msra.mxu0 %v2772
        %2785 = vmatprep.subr.bf16.mxu0 0
        %2786 = vmatpush1.bf16.msra.mxu0 0
        %2787 = vmatprep.subr.bf16.mxu0 0
        %2788 = vmatpush1.bf16.msra.mxu0 0
        %2789 = vmatprep.subr.bf16.mxu0 0
        %2790 = vmatpush1.bf16.msra.mxu0 0
        %2791 = vmatprep.subr.bf16.mxu0 0
        %2792 = vmatpush1.bf16.msra.mxu0 0
        %2793 = vmatprep.subr.bf16.mxu0 0
        %2794 = vmatpush1.bf16.msra.mxu0 0
        %2795 = vmatprep.subr.bf16.mxu0 0
        %2796 = vmatpush1.bf16.msra.mxu0 0
        %2797 = vmatprep.subr.bf16.mxu0 0
        %2798 = vmatpush1.bf16.msra.mxu0 0
        %2799 = vmatprep.subr.bf16.mxu0 0
        %2800 = vmatpush1.bf16.msra.mxu0 0
        %2801 = vmatprep.subr.bf16.mxu0 0
        %2802 = vmatpush1.bf16.msra.mxu0 0
        %2803 = vmatprep.subr.bf16.mxu0 0
        %2804 = vmatpush1.bf16.msra.mxu0 0
        %2805 = vmatprep.subr.bf16.mxu0 0
        %2806 = vmatpush1.bf16.msra.mxu0 0
        %2807 = vmatprep.subr.bf16.mxu0 0
        %2808 = vmatpush1.bf16.msra.mxu0 0
        %2809 = vmatprep.subr.bf16.mxu0 0
        %2810 = vmatpush1.bf16.msra.mxu0 0
        %2811 = vmatprep.subr.bf16.mxu0 0
        %2812 = vmatpush1.bf16.msra.mxu0 0
        %2813 = vmatprep.mubr.bf16.mxu0 0
        %2814 = vmatmul.mubr.bf16.gmra.mrb[0].mxu0 %v2779
        %v2815 = vpop.f32.mrb[0].mxu0
        %v2816 = vadd.f32 0.0, %v2815
        %v2817 = vpop.f32.mrb[0].mxu0
        %v2818 = vadd.f32 0.0, %v2817
        %v2819 = vpop.f32.mrb[0].mxu0
        %v2820 = vadd.f32 0.0, %v2819
        %v2821 = vpop.f32.mrb[0].mxu0
        %v2822 = vadd.f32 0.0, %v2821
        %2823 = vdwg.mxu0
        %v2824 = vadd.f32 %v2620, %v2816
        %v2825 = vadd.f32 %v2621, %v2818
        %v2826 = vadd.f32 %v2622, %v2820
        %v2827 = vadd.f32 %v2623, %v2822
        %v2828 = vld [vmem:[%s7] sm:$0x3]
        %v2830 = vlaneseq
        %v2831 = vshrl.u32 %v2830, 7
        %v2832 = vsub.s32 0, %v2831
        %v2833 = vrot.slane %v2828, %v2832
        %v2834 = vlaneseq
        %v2835 = vshrl.u32 %v2834, 7
        %v2836 = vsub.s32 1, %v2835
        %v2837 = vrot.slane %v2828, %v2836
        %v2840 = vadd.f32 %v2824, %v2833
        %v2841 = vadd.f32 %v2825, %v2837
        %v2842 = vadd.f32 %v2826, %v2833
        %v2843 = vadd.f32 %v2827, %v2837
        %2844 = vst [vmem:[%s406] sm:$0xff] %v2840
        %2845 = vst [vmem:[%s406 + $0x8] sm:$0xff] %v2841
        %2846 = vst [vmem:[%s406 + $0x10] sm:$0xff] %v2842
        %2847 = vst [vmem:[%s406 + $0x18] sm:$0xff] %v2843
        %s2848 = sand.u32 %s215, 1
        %s2849 = scalar_lea.sflag [#allocation4], %s2848
        %s2850 = sand.u32 %s215, 1
        %s2851 = smul.addr %s2850, 32
        %s2852 = scalar_lea.vmem [#allocation11], %s2851
        // Predicated region
        $region73: #{tpu_custom_call.1} parent=51 // pred_check
          %p2853 = pneg %p225
        $region74: #{tpu_custom_call.1} parent=51 // pred_check_branch
          %2855 = sbr.rel (%p2853) target = $region76
        $region75: #{tpu_custom_call.1} parent=51 // pred_region
          %s2857 = ssub.s32 512, 512
          %2858 = vsyncadd %s2849, %s2857
          %s2859 = smul.addr %s29, 4
          %s2860 = smul.addr %s2859, 128
          %s2861 = scalar_lea.hbm %s8, %s2860
          %s2862 = sshll.u32 %s2852, 4
          %s2863 = int_to_ptr.vmem [resolvable:$true] %s2862
          %2868 = dma.vmem_to_hbm [thread:$0]  %s2863, 512, %s2861, %s2849, 256, 256, 16
        $region76: #{tpu_custom_call.1} parent=51 // pred_fallthru
          _
      $region52: #{tpu_custom_call.1} parent=5 // pred_fallthru
        _
      %p2869 = scmp.le.s32.totalorder 2, %s24
      // Predicated region
      $region77: #{tpu_custom_call.1} parent=5 // pred_check
        %p2870 = pneg %p2869
      $region78: #{tpu_custom_call.1} parent=5 // pred_check_branch
        %2872 = sbr.rel (%p2870) target = $region80
      $region79: #{tpu_custom_call.1} parent=5 // pred_region
        %s2873 = ssub.s32 %s24, 2
        // Predicated region
        $region81: #{tpu_custom_call.1} parent=79 // pred_check
          %p2874 = pneg %p231
        $region82: #{tpu_custom_call.1} parent=79 // pred_check_branch
          %2876 = sbr.rel (%p2874) target = $region84
        $region83: #{tpu_custom_call.1} parent=79 // pred_region
          %s2877 = sand.u32 %s216, 1
          %s2878 = scalar_lea.sflag [#allocation4], %s2877
          %s2879 = sand.u32 %s216, 1
          %s2880 = smul.addr %s2879, 32
          %s2881 = scalar_lea.vmem [#allocation11], %s2880
          %2882 = dma.done %s2878, 512
        $region84: #{tpu_custom_call.1} parent=79 // pred_fallthru
          _
      $region80: #{tpu_custom_call.1} parent=5 // pred_fallthru
        _
    $region6: #{tpu_custom_call.1} parent=1 // loop_footer
      %s28 = sadd.s32 1, %s24
    $region7: #{tpu_custom_call.1} parent=1 // loop_footer_branch
      %23 = sbr.rel target = $region3
    $region8: #{tpu_custom_call.1} parent=1 // loop_exit
      _
    %2883 = vsyncpa [#allocation3], 1
    %s2884 = scalar_lea.sflag [#allocation3], 1
    %2885 = vsyncpa %s2884, 1
    %2886 = vsyncpa [#allocation6], 1
    %s2887 = scalar_lea.sflag [#allocation6], 1
    %2888 = vsyncpa %s2887, 1
    %2889 = vsyncpa [#allocation9], 1
    %2890 = vsyncpa [#allocation4], 1
    %s2891 = scalar_lea.sflag [#allocation4], 1
    %2892 = vsyncpa %s2891, 1

</llo_original>
